<compile_context>
chip_gen: v5e
topology: v5e:2x2
jax: 0.10.0
libtpu: 0.0.40
codegen_flags: <defaults>
</compile_context>

<pallas_src>
import functools

import jax
import jax.numpy as jnp
from jax.experimental import pallas as pl
from jax.experimental.pallas import tpu as pltpu

_LANE = 128


def _round_up(n, m):
    return ((n + m - 1) // m) * m


def _zero_halo_rim(ref, H, W, LH):
    """Zero only the 1-element 'same'-padding rim that the conv taps read."""
    C = ref.shape[-1]
    zrow = jnp.zeros((1, W + 2, C), ref.dtype)
    ref[0:1, LH - 1:LH + W + 1, :] = zrow             # top halo row
    ref[H + 1:H + 2, LH - 1:LH + W + 1, :] = zrow     # bottom halo row
    zcol = jnp.zeros((H + 2, 1, C), ref.dtype)
    ref[:, LH - 1:LH, :] = zcol                       # left halo column
    ref[:, LH + W:LH + W + 1, :] = zcol               # right halo column


def _accum_taps(taps, w_ref, h0, rh, W):
    """Sum the 9 conv taps for one row sub-tile in a register accumulator.

    First tap is a plain assignment (no zero-fill), later taps add; the
    accumulator is written to memory exactly once by the caller.
    """
    acc = None
    for dy in range(3):
        for dx in range(3):
            patch = taps[dx][h0 + dy:h0 + dy + rh].reshape(
                rh * W, taps[dx].shape[-1])
            d = jnp.dot(patch, w_ref[dy, dx],
                        preferred_element_type=jnp.float32)
            acc = d if acc is None else acc + d
    return acc                                        # (rh*W, C_out) f32


def _double_conv_kernel(x_ref, w1_ref, b1_ref, w2_ref, b2_ref, o_ref,
                        pad1_ref, mid_ref, *, LH, RT):
    """Fused DoubleConv for one batch element (whole-image block).

    x_ref:    (1, H, W, Cin)      input, ORIGINAL channel count
    w1_ref:   (3, 3, Cp, Cm)      conv1 weights (HWIO, channel padded)
    b1_ref:   (1, Cm) f32         conv1 bias
    w2_ref:   (3, 3, Cm, Cq)      conv2 weights
    b2_ref:   (1, Cq) f32         conv2 bias
    o_ref:    (1, H, W, Cq)       output (channel padded, padded lanes == 0)
    pad1_ref: (H+2, WT, Cp) VMEM  conv1 input + zero halo (LH-col left halo)
    mid_ref:  (H+2, WT, Cm) VMEM  mid activation + zero halo
    """
    H, W = o_ref.shape[1], o_ref.shape[2]
    Cin = x_ref.shape[3]
    Cp = pad1_ref.shape[2]
    Cm = mid_ref.shape[2]
    Cq = o_ref.shape[3]

    # Cheap per-step rim zeroing (megacore-safe; interiors are fully
    # overwritten below so nothing else needs clearing).
    _zero_halo_rim(pad1_ref, H, W, LH)
    _zero_halo_rim(mid_ref, H, W, LH)

    # Stage-1 input: place the block into the haloed, channel-padded buffer.
    # The interior store starts at the sublane-aligned offset LH.
    pad1_ref[1:H + 1, LH:LH + W, :Cin] = x_ref[0].astype(pad1_ref.dtype)
    if Cp > Cin:
        # Padded channel lanes must be real zeros (uninitialized VMEM could be
        # NaN, and 0 * NaN would poison the MXU accumulation).
        pad1_ref[1:H + 1, LH:LH + W, Cin:] = jnp.zeros(
            (H, W, Cp - Cin), pad1_ref.dtype)

    # ---------------- conv1 + bias + ReLU -> mid (VMEM only) ----------------
    src1 = pad1_ref[...]
    # One sublane-shifted view per dx tap; dy / row-tile offsets below are
    # free leading-axis slices.
    taps1 = [src1[:, dx + LH - 1:dx + LH - 1 + W, :] for dx in range(3)]
    b1 = b1_ref[...]
    for h0 in range(0, H, RT):
        rh = min(RT, H - h0)
        a1 = jnp.maximum(_accum_taps(taps1, w1_ref, h0, rh, W) + b1, 0.0)
        mid_ref[1 + h0:1 + h0 + rh, LH:LH + W, :] = (
            a1.reshape(rh, W, Cm).astype(mid_ref.dtype))

    # ---------------- conv2 + bias + ReLU -> output --------------------------
    src2 = mid_ref[...]
    taps2 = [src2[:, dx + LH - 1:dx + LH - 1 + W, :] for dx in range(3)]
    b2 = b2_ref[...]
    for h0 in range(0, H, RT):
        rh = min(RT, H - h0)
        a2 = jnp.maximum(_accum_taps(taps2, w2_ref, h0, rh, W) + b2, 0.0)
        o_ref[0, h0:h0 + rh, :, :] = a2.reshape(rh, W, Cq).astype(o_ref.dtype)


def prepare_double_conv_params(params, *, compute_dtype=jnp.float32):
    """One-time weight/bias padding + cast (hoisted out of the per-call path)."""
    w1, b1, w2, b2 = params            # w1: (3,3,Cin,Cmid), w2: (3,3,Cmid,Cout)
    Cin, Cmid = w1.shape[2], w1.shape[3]
    Cout = w2.shape[3]
    Cp, Cm, Cq = (_round_up(c, _LANE) for c in (Cin, Cmid, Cout))
    w1p = jnp.pad(w1, ((0, 0), (0, 0), (0, Cp - Cin),
                       (0, Cm - Cmid))).astype(compute_dtype)
    w2p = jnp.pad(w2, ((0, 0), (0, 0), (0, Cm - Cmid),
                       (0, Cq - Cout))).astype(compute_dtype)
    b1p = jnp.pad(b1, (0, Cm - Cmid)).reshape(1, Cm).astype(jnp.float32)
    b2p = jnp.pad(b2, (0, Cq - Cout)).reshape(1, Cq).astype(jnp.float32)
    return dict(w1=w1p, b1=b1p, w2=w2p, b2=b2p, cin=Cin, cout=Cout,
                compute_dtype=compute_dtype)


def double_conv_nhwc(x_nhwc, prepped):
    """(B, H, W, Cin) -> (B, H, W, Cq), Cq = round_up(Cout, 128), padded lanes 0."""
    w1p, b1p = prepped["w1"], prepped["b1"]
    w2p, b2p = prepped["w2"], prepped["b2"]
    cdt = prepped["compute_dtype"]
    B, H, W, Cin = x_nhwc.shape
    assert Cin == prepped["cin"], (Cin, prepped["cin"])
    Cp, Cm = w1p.shape[2], w1p.shape[3]
    Cq = w2p.shape[3]

    sub = 8 * 4 // jnp.dtype(cdt).itemsize        # sublane packing: 8 f32 / 16 bf16
    LH = sub                                      # aligned left halo width
    WT = _round_up(LH + W + 1, sub)               # scratch W extent (with halo)
    RT = max(1, min(H, 128 // W))                 # output rows per register tile

    kernel = functools.partial(_double_conv_kernel, LH=LH, RT=RT)

    out_itemsize = x_nhwc.dtype.itemsize
    flops = 2 * 9 * B * H * W * (Cp * Cm + Cm * Cq)
    bytes_accessed = (x_nhwc.size * x_nhwc.dtype.itemsize
                      + w1p.size * w1p.dtype.itemsize
                      + w2p.size * w2p.dtype.itemsize
                      + (b1p.size + b2p.size) * 4
                      + B * H * W * Cq * out_itemsize)

    return pl.pallas_call(
        kernel,
        out_shape=jax.ShapeDtypeStruct((B, H, W, Cq), x_nhwc.dtype),
        grid_spec=pltpu.PrefetchScalarGridSpec(
            num_scalar_prefetch=0,
            grid=(B,),
            in_specs=[
                pl.BlockSpec((1, H, W, Cin), lambda b: (b, 0, 0, 0)),
                # Constant index maps: fetched once and kept VMEM-resident.
                pl.BlockSpec((3, 3, Cp, Cm), lambda b: (0, 0, 0, 0)),
                pl.BlockSpec((1, Cm), lambda b: (0, 0)),
                pl.BlockSpec((3, 3, Cm, Cq), lambda b: (0, 0, 0, 0)),
                pl.BlockSpec((1, Cq), lambda b: (0, 0)),
            ],
            out_specs=pl.BlockSpec((1, H, W, Cq), lambda b: (b, 0, 0, 0)),
            scratch_shapes=[
                pltpu.VMEM((H + 2, WT, Cp), cdt),   # conv1 input + halo
                pltpu.VMEM((H + 2, WT, Cm), cdt),   # mid activation + halo
            ],
        ),
        compiler_params=pltpu.CompilerParams(
            dimension_semantics=("parallel",)),
        cost_estimate=pl.CostEstimate(flops=flops, transcendentals=0,
                                      bytes_accessed=bytes_accessed),
    )(x_nhwc, w1p, b1p, w2p, b2p)


def double_conv(x_nchw, prepped):
    """PyTorch-layout convenience wrapper: (B, Cin, H, W) -> (B, Cout, H, W).

    In a full UNet keep activations NHWC channel-padded end-to-end and call
    double_conv_nhwc directly; the transposes / slice here are demo glue only.
    """
    x = jnp.transpose(x_nchw, (0, 2, 3, 1))               # NCHW -> NHWC
    y = double_conv_nhwc(x, prepped)
    y = y[..., :prepped["cout"]]
    return jnp.transpose(y, (0, 3, 1, 2))                 # NHWC -> NCHW


def init_double_conv_params(key, in_channels, out_channels, mid_channels=None):
    if not mid_channels:
        mid_channels = out_channels
    k1, k2, k3, k4 = jax.random.split(key, 4)
    # PyTorch Conv2d weight shape: (out, in, kh, kw). Kernel uses (kh, kw, in, out).
    fan1 = in_channels * 9
    w1_t = jax.random.uniform(k1, (mid_channels, in_channels, 3, 3),
                              minval=-1.0, maxval=1.0) / jnp.sqrt(fan1)
    b1 = jax.random.uniform(k2, (mid_channels,),
                            minval=-1.0, maxval=1.0) / jnp.sqrt(fan1)
    fan2 = mid_channels * 9
    w2_t = jax.random.uniform(k3, (out_channels, mid_channels, 3, 3),
                              minval=-1.0, maxval=1.0) / jnp.sqrt(fan2)
    b2 = jax.random.uniform(k4, (out_channels,),
                            minval=-1.0, maxval=1.0) / jnp.sqrt(fan2)
    w1 = jnp.transpose(w1_t, (2, 3, 1, 0)).astype(jnp.float32)  # (3,3,Cin,Cmid)
    w2 = jnp.transpose(w2_t, (2, 3, 1, 0)).astype(jnp.float32)  # (3,3,Cmid,Cout)
    return (w1, b1.astype(jnp.float32), w2, b2.astype(jnp.float32))


def _reference_double_conv(x_nchw, params, compute_dtype=jnp.float32):
    """Pure-JAX reference (XLA conv), mirroring the kernel's cast points."""
    w1, b1, w2, b2 = params
    dn = jax.lax.conv_dimension_numbers(x_nchw.shape, (3, 3, 1, 1),
                                        ("NCHW", "HWIO", "NCHW"))

    def conv(x, w, b):
        y = jax.lax.conv_general_dilated(
            x.astype(compute_dtype), w.astype(compute_dtype), (1, 1), "SAME",
            dimension_numbers=dn, preferred_element_type=jnp.float32)
        return jnp.maximum(y + b.reshape(1, -1, 1, 1).astype(jnp.float32), 0.0)

    return conv(conv(x_nchw, w1, b1), w2, b2).astype(x_nchw.dtype)


if __name__ == "__main__":
    key = jax.random.PRNGKey(0)
    kx, kp = jax.random.split(key)

    B, Cin, H, W = 2, 4, 16, 16
    Cout = 8
    x = jax.random.normal(kx, (B, Cin, H, W), dtype=jnp.float32)
    params = init_double_conv_params(kp, Cin, Cout)

    # f32 path: exact-semantics check against the XLA reference.
    prep_f32 = prepare_double_conv_params(params, compute_dtype=jnp.float32)
    out = jax.block_until_ready(double_conv(x, prep_f32))
    ref = _reference_double_conv(x, params)
    assert out.shape == (B, Cout, H, W)
    assert jnp.allclose(out, ref, atol=1e-4, rtol=1e-4), \
        float(jnp.max(jnp.abs(out - ref)))

    # bf16 compute path (halved VMEM / MXU-native): compare against a
    # reference that casts at the same points (f32 accumulation in both).
    prep_bf16 = prepare_double_conv_params(params, compute_dtype=jnp.bfloat16)
    out_bf16 = jax.block_until_ready(double_conv(x, prep_bf16))
    ref_bf16 = _reference_double_conv(x, params, compute_dtype=jnp.bfloat16)
    assert out_bf16.shape == (B, Cout, H, W)
    assert jnp.allclose(out_bf16, ref_bf16, atol=1e-2, rtol=1e-2), \
        float(jnp.max(jnp.abs(out_bf16 - ref_bf16)))

    print("KERNEL_OK")
</pallas_src>

<mosaic_0001>
module attributes {stable_mosaic.version = 11 : i64} {
  func.func @_double_conv_kernel(%arg0: i32, %arg1: memref<1x16x16x4xf32, #tpu.memory_space<vmem>>, %arg2: memref<3x3x128x128xf32, #tpu.memory_space<vmem>>, %arg3: memref<1x128xf32, #tpu.memory_space<vmem>>, %arg4: memref<3x3x128x128xf32, #tpu.memory_space<vmem>>, %arg5: memref<1x128xf32, #tpu.memory_space<vmem>>, %arg6: memref<1x16x16x128xf32, #tpu.memory_space<vmem>>, %arg7: memref<18x32x128xf32, #tpu.memory_space<vmem>>, %arg8: memref<18x32x128xf32, #tpu.memory_space<vmem>>) attributes {dimension_semantics = [#tpu.dimension_semantics<parallel>], iteration_bounds = array<i64: 2>, scalar_prefetch = 0 : i64, scratch_operands = 2 : i64, tpu.core_type = #tpu.core_type<tc>, window_params = [{transform_indices = @transform_0, window_bounds = array<i64: 1, 16, 16, 4>}, {pipeline_mode = #tpu.pipeline_mode<synchronous>, transform_indices = @transform_1, window_bounds = array<i64: 3, 3, 128, 128>}, {pipeline_mode = #tpu.pipeline_mode<synchronous>, transform_indices = @transform_2, window_bounds = array<i64: 1, 128>}, {pipeline_mode = #tpu.pipeline_mode<synchronous>, transform_indices = @transform_3, window_bounds = array<i64: 3, 3, 128, 128>}, {pipeline_mode = #tpu.pipeline_mode<synchronous>, transform_indices = @transform_4, window_bounds = array<i64: 1, 128>}, {transform_indices = @transform_5, window_bounds = array<i64: 1, 16, 16, 128>}]} {
    %cst = arith.constant 0.000000e+00 : f32
    %0 = vector.broadcast %cst : f32 to vector<1x18x128xf32>
    %c0 = arith.constant 0 : index
    %c7 = arith.constant 7 : index
    %c0_0 = arith.constant 0 : index
    %1 = vector.load %arg7[%c0, %c7, %c0_0] : memref<18x32x128xf32, #tpu.memory_space<vmem>>, vector<1x18x128xf32>
    tpu.vector_store %arg7[%c0, %c7, %c0_0], %0 {strides = array<i32>} : memref<18x32x128xf32, #tpu.memory_space<vmem>>, vector<1x18x128xf32>,
    %c17 = arith.constant 17 : index
    %c7_1 = arith.constant 7 : index
    %c0_2 = arith.constant 0 : index
    %2 = vector.load %arg7[%c17, %c7_1, %c0_2] : memref<18x32x128xf32, #tpu.memory_space<vmem>>, vector<1x18x128xf32>
    tpu.vector_store %arg7[%c17, %c7_1, %c0_2], %0 {strides = array<i32>} : memref<18x32x128xf32, #tpu.memory_space<vmem>>, vector<1x18x128xf32>,
    %cst_3 = arith.constant 0.000000e+00 : f32
    %3 = vector.broadcast %cst_3 : f32 to vector<18x1x128xf32>
    %c0_4 = arith.constant 0 : index
    %c7_5 = arith.constant 7 : index
    %c0_6 = arith.constant 0 : index
    %4 = vector.load %arg7[%c0_4, %c7_5, %c0_6] : memref<18x32x128xf32, #tpu.memory_space<vmem>>, vector<18x1x128xf32>
    tpu.vector_store %arg7[%c0_4, %c7_5, %c0_6], %3 {strides = array<i32>} : memref<18x32x128xf32, #tpu.memory_space<vmem>>, vector<18x1x128xf32>,
    %c0_7 = arith.constant 0 : index
    %c24 = arith.constant 24 : index
    %c0_8 = arith.constant 0 : index
    %5 = vector.load %arg7[%c0_7, %c24, %c0_8] : memref<18x32x128xf32, #tpu.memory_space<vmem>>, vector<18x1x128xf32>
    tpu.vector_store %arg7[%c0_7, %c24, %c0_8], %3 {strides = array<i32>} : memref<18x32x128xf32, #tpu.memory_space<vmem>>, vector<18x1x128xf32>,
    %cst_9 = arith.constant 0.000000e+00 : f32
    %6 = vector.broadcast %cst_9 : f32 to vector<1x18x128xf32>
    %c0_10 = arith.constant 0 : index
    %c7_11 = arith.constant 7 : index
    %c0_12 = arith.constant 0 : index
    %7 = vector.load %arg8[%c0_10, %c7_11, %c0_12] : memref<18x32x128xf32, #tpu.memory_space<vmem>>, vector<1x18x128xf32>
    tpu.vector_store %arg8[%c0_10, %c7_11, %c0_12], %6 {strides = array<i32>} : memref<18x32x128xf32, #tpu.memory_space<vmem>>, vector<1x18x128xf32>,
    %c17_13 = arith.constant 17 : index
    %c7_14 = arith.constant 7 : index
    %c0_15 = arith.constant 0 : index
    %8 = vector.load %arg8[%c17_13, %c7_14, %c0_15] : memref<18x32x128xf32, #tpu.memory_space<vmem>>, vector<1x18x128xf32>
    tpu.vector_store %arg8[%c17_13, %c7_14, %c0_15], %6 {strides = array<i32>} : memref<18x32x128xf32, #tpu.memory_space<vmem>>, vector<1x18x128xf32>,
    %cst_16 = arith.constant 0.000000e+00 : f32
    %9 = vector.broadcast %cst_16 : f32 to vector<18x1x128xf32>
    %c0_17 = arith.constant 0 : index
    %c7_18 = arith.constant 7 : index
    %c0_19 = arith.constant 0 : index
    %10 = vector.load %arg8[%c0_17, %c7_18, %c0_19] : memref<18x32x128xf32, #tpu.memory_space<vmem>>, vector<18x1x128xf32>
    tpu.vector_store %arg8[%c0_17, %c7_18, %c0_19], %9 {strides = array<i32>} : memref<18x32x128xf32, #tpu.memory_space<vmem>>, vector<18x1x128xf32>,
    %c0_20 = arith.constant 0 : index
    %c24_21 = arith.constant 24 : index
    %c0_22 = arith.constant 0 : index
    %11 = vector.load %arg8[%c0_20, %c24_21, %c0_22] : memref<18x32x128xf32, #tpu.memory_space<vmem>>, vector<18x1x128xf32>
    tpu.vector_store %arg8[%c0_20, %c24_21, %c0_22], %9 {strides = array<i32>} : memref<18x32x128xf32, #tpu.memory_space<vmem>>, vector<18x1x128xf32>,
    %c0_23 = arith.constant 0 : index
    %c0_24 = arith.constant 0 : index
    %c0_25 = arith.constant 0 : index
    %c0_26 = arith.constant 0 : index
    %12 = vector.load %arg1[%c0_23, %c0_24, %c0_25, %c0_26] : memref<1x16x16x4xf32, #tpu.memory_space<vmem>>, vector<1x16x16x4xf32>
    %13 = vector.shape_cast %12 : vector<1x16x16x4xf32> to vector<16x16x4xf32>
    %c1 = arith.constant 1 : index
    %c8 = arith.constant 8 : index
    %c0_27 = arith.constant 0 : index
    %14 = vector.load %arg7[%c1, %c8, %c0_27] : memref<18x32x128xf32, #tpu.memory_space<vmem>>, vector<16x16x4xf32>
    tpu.vector_store %arg7[%c1, %c8, %c0_27], %13 {strides = array<i32>} : memref<18x32x128xf32, #tpu.memory_space<vmem>>, vector<16x16x4xf32>,
    %cst_28 = arith.constant 0.000000e+00 : f32
    %15 = vector.broadcast %cst_28 : f32 to vector<16x16x124xf32>
    %c1_29 = arith.constant 1 : index
    %c8_30 = arith.constant 8 : index
    %c4 = arith.constant 4 : index
    %16 = vector.load %arg7[%c1_29, %c8_30, %c4] : memref<18x32x128xf32, #tpu.memory_space<vmem>>, vector<16x16x124xf32>
    tpu.vector_store %arg7[%c1_29, %c8_30, %c4], %15 {strides = array<i32>} : memref<18x32x128xf32, #tpu.memory_space<vmem>>, vector<16x16x124xf32>,
    %c0_31 = arith.constant 0 : index
    %c0_32 = arith.constant 0 : index
    %c0_33 = arith.constant 0 : index
    %17 = vector.load %arg7[%c0_31, %c0_32, %c0_33] : memref<18x32x128xf32, #tpu.memory_space<vmem>>, vector<18x32x128xf32>
    %18 = vector.extract_strided_slice %17 {offsets = [0, 7, 0], sizes = [18, 16, 128], strides = [1, 1, 1]} : vector<18x32x128xf32> to vector<18x16x128xf32>
    %19 = vector.extract_strided_slice %17 {offsets = [0, 8, 0], sizes = [18, 16, 128], strides = [1, 1, 1]} : vector<18x32x128xf32> to vector<18x16x128xf32>
    %20 = vector.extract_strided_slice %17 {offsets = [0, 9, 0], sizes = [18, 16, 128], strides = [1, 1, 1]} : vector<18x32x128xf32> to vector<18x16x128xf32>
    %c0_34 = arith.constant 0 : index
    %c0_35 = arith.constant 0 : index
    %21 = vector.load %arg3[%c0_34, %c0_35] : memref<1x128xf32, #tpu.memory_space<vmem>>, vector<1x128xf32>
    %22 = vector.extract_strided_slice %18 {offsets = [0, 0, 0], sizes = [8, 16, 128], strides = [1, 1, 1]} : vector<18x16x128xf32> to vector<8x16x128xf32>
    %23 = vector.shape_cast %22 : vector<8x16x128xf32> to vector<128x128xf32>
    %c0_36 = arith.constant 0 : index
    %c0_37 = arith.constant 0 : index
    %c0_38 = arith.constant 0 : index
    %c0_39 = arith.constant 0 : index
    %24 = vector.load %arg2[%c0_36, %c0_37, %c0_38, %c0_39] : memref<3x3x128x128xf32, #tpu.memory_space<vmem>>, vector<1x1x128x128xf32>
    %25 = vector.shape_cast %24 : vector<1x1x128x128xf32> to vector<128x128xf32>
    %cst_40 = arith.constant dense<0.000000e+00> : vector<128x128xf32>
    %26 = tpu.matmul %23, %25, %cst_40 {dimension_numbers = #tpu.dot_dimension_numbers<[1], [0], [0], [1], [0, 0, 1, 1], [], []>} : vector<128x128xf32>, vector<128x128xf32>, vector<128x128xf32> -> vector<128x128xf32>
    %27 = vector.extract_strided_slice %19 {offsets = [0, 0, 0], sizes = [8, 16, 128], strides = [1, 1, 1]} : vector<18x16x128xf32> to vector<8x16x128xf32>
    %28 = vector.shape_cast %27 : vector<8x16x128xf32> to vector<128x128xf32>
    %c0_41 = arith.constant 0 : index
    %c1_42 = arith.constant 1 : index
    %c0_43 = arith.constant 0 : index
    %c0_44 = arith.constant 0 : index
    %29 = vector.load %arg2[%c0_41, %c1_42, %c0_43, %c0_44] : memref<3x3x128x128xf32, #tpu.memory_space<vmem>>, vector<1x1x128x128xf32>
    %30 = vector.shape_cast %29 : vector<1x1x128x128xf32> to vector<128x128xf32>
    %cst_45 = arith.constant dense<0.000000e+00> : vector<128x128xf32>
    %31 = tpu.matmul %28, %30, %cst_45 {dimension_numbers = #tpu.dot_dimension_numbers<[1], [0], [0], [1], [0, 0, 1, 1], [], []>} : vector<128x128xf32>, vector<128x128xf32>, vector<128x128xf32> -> vector<128x128xf32>
    %32 = arith.addf %26, %31 : vector<128x128xf32>
    %33 = vector.extract_strided_slice %20 {offsets = [0, 0, 0], sizes = [8, 16, 128], strides = [1, 1, 1]} : vector<18x16x128xf32> to vector<8x16x128xf32>
    %34 = vector.shape_cast %33 : vector<8x16x128xf32> to vector<128x128xf32>
    %c0_46 = arith.constant 0 : index
    %c2 = arith.constant 2 : index
    %c0_47 = arith.constant 0 : index
    %c0_48 = arith.constant 0 : index
    %35 = vector.load %arg2[%c0_46, %c2, %c0_47, %c0_48] : memref<3x3x128x128xf32, #tpu.memory_space<vmem>>, vector<1x1x128x128xf32>
    %36 = vector.shape_cast %35 : vector<1x1x128x128xf32> to vector<128x128xf32>
    %cst_49 = arith.constant dense<0.000000e+00> : vector<128x128xf32>
    %37 = tpu.matmul %34, %36, %cst_49 {dimension_numbers = #tpu.dot_dimension_numbers<[1], [0], [0], [1], [0, 0, 1, 1], [], []>} : vector<128x128xf32>, vector<128x128xf32>, vector<128x128xf32> -> vector<128x128xf32>
    %38 = arith.addf %32, %37 : vector<128x128xf32>
    %39 = vector.extract_strided_slice %18 {offsets = [1, 0, 0], sizes = [8, 16, 128], strides = [1, 1, 1]} : vector<18x16x128xf32> to vector<8x16x128xf32>
    %40 = vector.shape_cast %39 : vector<8x16x128xf32> to vector<128x128xf32>
    %c1_50 = arith.constant 1 : index
    %c0_51 = arith.constant 0 : index
    %c0_52 = arith.constant 0 : index
    %c0_53 = arith.constant 0 : index
    %41 = vector.load %arg2[%c1_50, %c0_51, %c0_52, %c0_53] : memref<3x3x128x128xf32, #tpu.memory_space<vmem>>, vector<1x1x128x128xf32>
    %42 = vector.shape_cast %41 : vector<1x1x128x128xf32> to vector<128x128xf32>
    %cst_54 = arith.constant dense<0.000000e+00> : vector<128x128xf32>
    %43 = tpu.matmul %40, %42, %cst_54 {dimension_numbers = #tpu.dot_dimension_numbers<[1], [0], [0], [1], [0, 0, 1, 1], [], []>} : vector<128x128xf32>, vector<128x128xf32>, vector<128x128xf32> -> vector<128x128xf32>
    %44 = arith.addf %38, %43 : vector<128x128xf32>
    %45 = vector.extract_strided_slice %19 {offsets = [1, 0, 0], sizes = [8, 16, 128], strides = [1, 1, 1]} : vector<18x16x128xf32> to vector<8x16x128xf32>
    %46 = vector.shape_cast %45 : vector<8x16x128xf32> to vector<128x128xf32>
    %c1_55 = arith.constant 1 : index
    %c1_56 = arith.constant 1 : index
    %c0_57 = arith.constant 0 : index
    %c0_58 = arith.constant 0 : index
    %47 = vector.load %arg2[%c1_55, %c1_56, %c0_57, %c0_58] : memref<3x3x128x128xf32, #tpu.memory_space<vmem>>, vector<1x1x128x128xf32>
    %48 = vector.shape_cast %47 : vector<1x1x128x128xf32> to vector<128x128xf32>
    %cst_59 = arith.constant dense<0.000000e+00> : vector<128x128xf32>
    %49 = tpu.matmul %46, %48, %cst_59 {dimension_numbers = #tpu.dot_dimension_numbers<[1], [0], [0], [1], [0, 0, 1, 1], [], []>} : vector<128x128xf32>, vector<128x128xf32>, vector<128x128xf32> -> vector<128x128xf32>
    %50 = arith.addf %44, %49 : vector<128x128xf32>
    %51 = vector.extract_strided_slice %20 {offsets = [1, 0, 0], sizes = [8, 16, 128], strides = [1, 1, 1]} : vector<18x16x128xf32> to vector<8x16x128xf32>
    %52 = vector.shape_cast %51 : vector<8x16x128xf32> to vector<128x128xf32>
    %c1_60 = arith.constant 1 : index
    %c2_61 = arith.constant 2 : index
    %c0_62 = arith.constant 0 : index
    %c0_63 = arith.constant 0 : index
    %53 = vector.load %arg2[%c1_60, %c2_61, %c0_62, %c0_63] : memref<3x3x128x128xf32, #tpu.memory_space<vmem>>, vector<1x1x128x128xf32>
    %54 = vector.shape_cast %53 : vector<1x1x128x128xf32> to vector<128x128xf32>
    %cst_64 = arith.constant dense<0.000000e+00> : vector<128x128xf32>
    %55 = tpu.matmul %52, %54, %cst_64 {dimension_numbers = #tpu.dot_dimension_numbers<[1], [0], [0], [1], [0, 0, 1, 1], [], []>} : vector<128x128xf32>, vector<128x128xf32>, vector<128x128xf32> -> vector<128x128xf32>
    %56 = arith.addf %50, %55 : vector<128x128xf32>
    %57 = vector.extract_strided_slice %18 {offsets = [2, 0, 0], sizes = [8, 16, 128], strides = [1, 1, 1]} : vector<18x16x128xf32> to vector<8x16x128xf32>
    %58 = vector.shape_cast %57 : vector<8x16x128xf32> to vector<128x128xf32>
    %c2_65 = arith.constant 2 : index
    %c0_66 = arith.constant 0 : index
    %c0_67 = arith.constant 0 : index
    %c0_68 = arith.constant 0 : index
    %59 = vector.load %arg2[%c2_65, %c0_66, %c0_67, %c0_68] : memref<3x3x128x128xf32, #tpu.memory_space<vmem>>, vector<1x1x128x128xf32>
    %60 = vector.shape_cast %59 : vector<1x1x128x128xf32> to vector<128x128xf32>
    %cst_69 = arith.constant dense<0.000000e+00> : vector<128x128xf32>
    %61 = tpu.matmul %58, %60, %cst_69 {dimension_numbers = #tpu.dot_dimension_numbers<[1], [0], [0], [1], [0, 0, 1, 1], [], []>} : vector<128x128xf32>, vector<128x128xf32>, vector<128x128xf32> -> vector<128x128xf32>
    %62 = arith.addf %56, %61 : vector<128x128xf32>
    %63 = vector.extract_strided_slice %19 {offsets = [2, 0, 0], sizes = [8, 16, 128], strides = [1, 1, 1]} : vector<18x16x128xf32> to vector<8x16x128xf32>
    %64 = vector.shape_cast %63 : vector<8x16x128xf32> to vector<128x128xf32>
    %c2_70 = arith.constant 2 : index
    %c1_71 = arith.constant 1 : index
    %c0_72 = arith.constant 0 : index
    %c0_73 = arith.constant 0 : index
    %65 = vector.load %arg2[%c2_70, %c1_71, %c0_72, %c0_73] : memref<3x3x128x128xf32, #tpu.memory_space<vmem>>, vector<1x1x128x128xf32>
    %66 = vector.shape_cast %65 : vector<1x1x128x128xf32> to vector<128x128xf32>
    %cst_74 = arith.constant dense<0.000000e+00> : vector<128x128xf32>
    %67 = tpu.matmul %64, %66, %cst_74 {dimension_numbers = #tpu.dot_dimension_numbers<[1], [0], [0], [1], [0, 0, 1, 1], [], []>} : vector<128x128xf32>, vector<128x128xf32>, vector<128x128xf32> -> vector<128x128xf32>
    %68 = arith.addf %62, %67 : vector<128x128xf32>
    %69 = vector.extract_strided_slice %20 {offsets = [2, 0, 0], sizes = [8, 16, 128], strides = [1, 1, 1]} : vector<18x16x128xf32> to vector<8x16x128xf32>
    %70 = vector.shape_cast %69 : vector<8x16x128xf32> to vector<128x128xf32>
    %c2_75 = arith.constant 2 : index
    %c2_76 = arith.constant 2 : index
    %c0_77 = arith.constant 0 : index
    %c0_78 = arith.constant 0 : index
    %71 = vector.load %arg2[%c2_75, %c2_76, %c0_77, %c0_78] : memref<3x3x128x128xf32, #tpu.memory_space<vmem>>, vector<1x1x128x128xf32>
    %72 = vector.shape_cast %71 : vector<1x1x128x128xf32> to vector<128x128xf32>
    %cst_79 = arith.constant dense<0.000000e+00> : vector<128x128xf32>
    %73 = tpu.matmul %70, %72, %cst_79 {dimension_numbers = #tpu.dot_dimension_numbers<[1], [0], [0], [1], [0, 0, 1, 1], [], []>} : vector<128x128xf32>, vector<128x128xf32>, vector<128x128xf32> -> vector<128x128xf32>
    %74 = arith.addf %68, %73 : vector<128x128xf32>
    %75 = vector.broadcast %21 : vector<1x128xf32> to vector<128x128xf32>
    %76 = arith.addf %74, %75 : vector<128x128xf32>
    %cst_80 = arith.constant 0.000000e+00 : f32
    %77 = vector.broadcast %cst_80 : f32 to vector<128x128xf32>
    %78 = arith.maximumf %76, %77 : vector<128x128xf32>
    %79 = vector.shape_cast %78 : vector<128x128xf32> to vector<8x16x128xf32>
    %c1_81 = arith.constant 1 : index
    %c8_82 = arith.constant 8 : index
    %c0_83 = arith.constant 0 : index
    %80 = vector.load %arg8[%c1_81, %c8_82, %c0_83] : memref<18x32x128xf32, #tpu.memory_space<vmem>>, vector<8x16x128xf32>
    tpu.vector_store %arg8[%c1_81, %c8_82, %c0_83], %79 {strides = array<i32>} : memref<18x32x128xf32, #tpu.memory_space<vmem>>, vector<8x16x128xf32>,
    %81 = vector.extract_strided_slice %18 {offsets = [8, 0, 0], sizes = [8, 16, 128], strides = [1, 1, 1]} : vector<18x16x128xf32> to vector<8x16x128xf32>
    %82 = vector.shape_cast %81 : vector<8x16x128xf32> to vector<128x128xf32>
    %c0_84 = arith.constant 0 : index
    %c0_85 = arith.constant 0 : index
    %c0_86 = arith.constant 0 : index
    %c0_87 = arith.constant 0 : index
    %83 = vector.load %arg2[%c0_84, %c0_85, %c0_86, %c0_87] : memref<3x3x128x128xf32, #tpu.memory_space<vmem>>, vector<1x1x128x128xf32>
    %84 = vector.shape_cast %83 : vector<1x1x128x128xf32> to vector<128x128xf32>
    %cst_88 = arith.constant dense<0.000000e+00> : vector<128x128xf32>
    %85 = tpu.matmul %82, %84, %cst_88 {dimension_numbers = #tpu.dot_dimension_numbers<[1], [0], [0], [1], [0, 0, 1, 1], [], []>} : vector<128x128xf32>, vector<128x128xf32>, vector<128x128xf32> -> vector<128x128xf32>
    %86 = vector.extract_strided_slice %19 {offsets = [8, 0, 0], sizes = [8, 16, 128], strides = [1, 1, 1]} : vector<18x16x128xf32> to vector<8x16x128xf32>
    %87 = vector.shape_cast %86 : vector<8x16x128xf32> to vector<128x128xf32>
    %c0_89 = arith.constant 0 : index
    %c1_90 = arith.constant 1 : index
    %c0_91 = arith.constant 0 : index
    %c0_92 = arith.constant 0 : index
    %88 = vector.load %arg2[%c0_89, %c1_90, %c0_91, %c0_92] : memref<3x3x128x128xf32, #tpu.memory_space<vmem>>, vector<1x1x128x128xf32>
    %89 = vector.shape_cast %88 : vector<1x1x128x128xf32> to vector<128x128xf32>
    %cst_93 = arith.constant dense<0.000000e+00> : vector<128x128xf32>
    %90 = tpu.matmul %87, %89, %cst_93 {dimension_numbers = #tpu.dot_dimension_numbers<[1], [0], [0], [1], [0, 0, 1, 1], [], []>} : vector<128x128xf32>, vector<128x128xf32>, vector<128x128xf32> -> vector<128x128xf32>
    %91 = arith.addf %85, %90 : vector<128x128xf32>
    %92 = vector.extract_strided_slice %20 {offsets = [8, 0, 0], sizes = [8, 16, 128], strides = [1, 1, 1]} : vector<18x16x128xf32> to vector<8x16x128xf32>
    %93 = vector.shape_cast %92 : vector<8x16x128xf32> to vector<128x128xf32>
    %c0_94 = arith.constant 0 : index
    %c2_95 = arith.constant 2 : index
    %c0_96 = arith.constant 0 : index
    %c0_97 = arith.constant 0 : index
    %94 = vector.load %arg2[%c0_94, %c2_95, %c0_96, %c0_97] : memref<3x3x128x128xf32, #tpu.memory_space<vmem>>, vector<1x1x128x128xf32>
    %95 = vector.shape_cast %94 : vector<1x1x128x128xf32> to vector<128x128xf32>
    %cst_98 = arith.constant dense<0.000000e+00> : vector<128x128xf32>
    %96 = tpu.matmul %93, %95, %cst_98 {dimension_numbers = #tpu.dot_dimension_numbers<[1], [0], [0], [1], [0, 0, 1, 1], [], []>} : vector<128x128xf32>, vector<128x128xf32>, vector<128x128xf32> -> vector<128x128xf32>
    %97 = arith.addf %91, %96 : vector<128x128xf32>
    %98 = vector.extract_strided_slice %18 {offsets = [9, 0, 0], sizes = [8, 16, 128], strides = [1, 1, 1]} : vector<18x16x128xf32> to vector<8x16x128xf32>
    %99 = vector.shape_cast %98 : vector<8x16x128xf32> to vector<128x128xf32>
    %c1_99 = arith.constant 1 : index
    %c0_100 = arith.constant 0 : index
    %c0_101 = arith.constant 0 : index
    %c0_102 = arith.constant 0 : index
    %100 = vector.load %arg2[%c1_99, %c0_100, %c0_101, %c0_102] : memref<3x3x128x128xf32, #tpu.memory_space<vmem>>, vector<1x1x128x128xf32>
    %101 = vector.shape_cast %100 : vector<1x1x128x128xf32> to vector<128x128xf32>
    %cst_103 = arith.constant dense<0.000000e+00> : vector<128x128xf32>
    %102 = tpu.matmul %99, %101, %cst_103 {dimension_numbers = #tpu.dot_dimension_numbers<[1], [0], [0], [1], [0, 0, 1, 1], [], []>} : vector<128x128xf32>, vector<128x128xf32>, vector<128x128xf32> -> vector<128x128xf32>
    %103 = arith.addf %97, %102 : vector<128x128xf32>
    %104 = vector.extract_strided_slice %19 {offsets = [9, 0, 0], sizes = [8, 16, 128], strides = [1, 1, 1]} : vector<18x16x128xf32> to vector<8x16x128xf32>
    %105 = vector.shape_cast %104 : vector<8x16x128xf32> to vector<128x128xf32>
    %c1_104 = arith.constant 1 : index
    %c1_105 = arith.constant 1 : index
    %c0_106 = arith.constant 0 : index
    %c0_107 = arith.constant 0 : index
    %106 = vector.load %arg2[%c1_104, %c1_105, %c0_106, %c0_107] : memref<3x3x128x128xf32, #tpu.memory_space<vmem>>, vector<1x1x128x128xf32>
    %107 = vector.shape_cast %106 : vector<1x1x128x128xf32> to vector<128x128xf32>
    %cst_108 = arith.constant dense<0.000000e+00> : vector<128x128xf32>
    %108 = tpu.matmul %105, %107, %cst_108 {dimension_numbers = #tpu.dot_dimension_numbers<[1], [0], [0], [1], [0, 0, 1, 1], [], []>} : vector<128x128xf32>, vector<128x128xf32>, vector<128x128xf32> -> vector<128x128xf32>
    %109 = arith.addf %103, %108 : vector<128x128xf32>
    %110 = vector.extract_strided_slice %20 {offsets = [9, 0, 0], sizes = [8, 16, 128], strides = [1, 1, 1]} : vector<18x16x128xf32> to vector<8x16x128xf32>
    %111 = vector.shape_cast %110 : vector<8x16x128xf32> to vector<128x128xf32>
    %c1_109 = arith.constant 1 : index
    %c2_110 = arith.constant 2 : index
    %c0_111 = arith.constant 0 : index
    %c0_112 = arith.constant 0 : index
    %112 = vector.load %arg2[%c1_109, %c2_110, %c0_111, %c0_112] : memref<3x3x128x128xf32, #tpu.memory_space<vmem>>, vector<1x1x128x128xf32>
    %113 = vector.shape_cast %112 : vector<1x1x128x128xf32> to vector<128x128xf32>
    %cst_113 = arith.constant dense<0.000000e+00> : vector<128x128xf32>
    %114 = tpu.matmul %111, %113, %cst_113 {dimension_numbers = #tpu.dot_dimension_numbers<[1], [0], [0], [1], [0, 0, 1, 1], [], []>} : vector<128x128xf32>, vector<128x128xf32>, vector<128x128xf32> -> vector<128x128xf32>
    %115 = arith.addf %109, %114 : vector<128x128xf32>
    %116 = vector.extract_strided_slice %18 {offsets = [10, 0, 0], sizes = [8, 16, 128], strides = [1, 1, 1]} : vector<18x16x128xf32> to vector<8x16x128xf32>
    %117 = vector.shape_cast %116 : vector<8x16x128xf32> to vector<128x128xf32>
    %c2_114 = arith.constant 2 : index
    %c0_115 = arith.constant 0 : index
    %c0_116 = arith.constant 0 : index
    %c0_117 = arith.constant 0 : index
    %118 = vector.load %arg2[%c2_114, %c0_115, %c0_116, %c0_117] : memref<3x3x128x128xf32, #tpu.memory_space<vmem>>, vector<1x1x128x128xf32>
    %119 = vector.shape_cast %118 : vector<1x1x128x128xf32> to vector<128x128xf32>
    %cst_118 = arith.constant dense<0.000000e+00> : vector<128x128xf32>
    %120 = tpu.matmul %117, %119, %cst_118 {dimension_numbers = #tpu.dot_dimension_numbers<[1], [0], [0], [1], [0, 0, 1, 1], [], []>} : vector<128x128xf32>, vector<128x128xf32>, vector<128x128xf32> -> vector<128x128xf32>
    %121 = arith.addf %115, %120 : vector<128x128xf32>
    %122 = vector.extract_strided_slice %19 {offsets = [10, 0, 0], sizes = [8, 16, 128], strides = [1, 1, 1]} : vector<18x16x128xf32> to vector<8x16x128xf32>
    %123 = vector.shape_cast %122 : vector<8x16x128xf32> to vector<128x128xf32>
    %c2_119 = arith.constant 2 : index
    %c1_120 = arith.constant 1 : index
    %c0_121 = arith.constant 0 : index
    %c0_122 = arith.constant 0 : index
    %124 = vector.load %arg2[%c2_119, %c1_120, %c0_121, %c0_122] : memref<3x3x128x128xf32, #tpu.memory_space<vmem>>, vector<1x1x128x128xf32>
    %125 = vector.shape_cast %124 : vector<1x1x128x128xf32> to vector<128x128xf32>
    %cst_123 = arith.constant dense<0.000000e+00> : vector<128x128xf32>
    %126 = tpu.matmul %123, %125, %cst_123 {dimension_numbers = #tpu.dot_dimension_numbers<[1], [0], [0], [1], [0, 0, 1, 1], [], []>} : vector<128x128xf32>, vector<128x128xf32>, vector<128x128xf32> -> vector<128x128xf32>
    %127 = arith.addf %121, %126 : vector<128x128xf32>
    %128 = vector.extract_strided_slice %20 {offsets = [10, 0, 0], sizes = [8, 16, 128], strides = [1, 1, 1]} : vector<18x16x128xf32> to vector<8x16x128xf32>
    %129 = vector.shape_cast %128 : vector<8x16x128xf32> to vector<128x128xf32>
    %c2_124 = arith.constant 2 : index
    %c2_125 = arith.constant 2 : index
    %c0_126 = arith.constant 0 : index
    %c0_127 = arith.constant 0 : index
    %130 = vector.load %arg2[%c2_124, %c2_125, %c0_126, %c0_127] : memref<3x3x128x128xf32, #tpu.memory_space<vmem>>, vector<1x1x128x128xf32>
    %131 = vector.shape_cast %130 : vector<1x1x128x128xf32> to vector<128x128xf32>
    %cst_128 = arith.constant dense<0.000000e+00> : vector<128x128xf32>
    %132 = tpu.matmul %129, %131, %cst_128 {dimension_numbers = #tpu.dot_dimension_numbers<[1], [0], [0], [1], [0, 0, 1, 1], [], []>} : vector<128x128xf32>, vector<128x128xf32>, vector<128x128xf32> -> vector<128x128xf32>
    %133 = arith.addf %127, %132 : vector<128x128xf32>
    %134 = vector.broadcast %21 : vector<1x128xf32> to vector<128x128xf32>
    %135 = arith.addf %133, %134 : vector<128x128xf32>
    %cst_129 = arith.constant 0.000000e+00 : f32
    %136 = vector.broadcast %cst_129 : f32 to vector<128x128xf32>
    %137 = arith.maximumf %135, %136 : vector<128x128xf32>
    %138 = vector.shape_cast %137 : vector<128x128xf32> to vector<8x16x128xf32>
    %c9 = arith.constant 9 : index
    %c8_130 = arith.constant 8 : index
    %c0_131 = arith.constant 0 : index
    %139 = vector.load %arg8[%c9, %c8_130, %c0_131] : memref<18x32x128xf32, #tpu.memory_space<vmem>>, vector<8x16x128xf32>
    tpu.vector_store %arg8[%c9, %c8_130, %c0_131], %138 {strides = array<i32>} : memref<18x32x128xf32, #tpu.memory_space<vmem>>, vector<8x16x128xf32>,
    %c0_132 = arith.constant 0 : index
    %c0_133 = arith.constant 0 : index
    %c0_134 = arith.constant 0 : index
    %140 = vector.load %arg8[%c0_132, %c0_133, %c0_134] : memref<18x32x128xf32, #tpu.memory_space<vmem>>, vector<18x32x128xf32>
    %141 = vector.extract_strided_slice %140 {offsets = [0, 7, 0], sizes = [18, 16, 128], strides = [1, 1, 1]} : vector<18x32x128xf32> to vector<18x16x128xf32>
    %142 = vector.extract_strided_slice %140 {offsets = [0, 8, 0], sizes = [18, 16, 128], strides = [1, 1, 1]} : vector<18x32x128xf32> to vector<18x16x128xf32>
    %143 = vector.extract_strided_slice %140 {offsets = [0, 9, 0], sizes = [18, 16, 128], strides = [1, 1, 1]} : vector<18x32x128xf32> to vector<18x16x128xf32>
    %c0_135 = arith.constant 0 : index
    %c0_136 = arith.constant 0 : index
    %144 = vector.load %arg5[%c0_135, %c0_136] : memref<1x128xf32, #tpu.memory_space<vmem>>, vector<1x128xf32>
    %145 = vector.extract_strided_slice %141 {offsets = [0, 0, 0], sizes = [8, 16, 128], strides = [1, 1, 1]} : vector<18x16x128xf32> to vector<8x16x128xf32>
    %146 = vector.shape_cast %145 : vector<8x16x128xf32> to vector<128x128xf32>
    %c0_137 = arith.constant 0 : index
    %c0_138 = arith.constant 0 : index
    %c0_139 = arith.constant 0 : index
    %c0_140 = arith.constant 0 : index
    %147 = vector.load %arg4[%c0_137, %c0_138, %c0_139, %c0_140] : memref<3x3x128x128xf32, #tpu.memory_space<vmem>>, vector<1x1x128x128xf32>
    %148 = vector.shape_cast %147 : vector<1x1x128x128xf32> to vector<128x128xf32>
    %cst_141 = arith.constant dense<0.000000e+00> : vector<128x128xf32>
    %149 = tpu.matmul %146, %148, %cst_141 {dimension_numbers = #tpu.dot_dimension_numbers<[1], [0], [0], [1], [0, 0, 1, 1], [], []>} : vector<128x128xf32>, vector<128x128xf32>, vector<128x128xf32> -> vector<128x128xf32>
    %150 = vector.extract_strided_slice %142 {offsets = [0, 0, 0], sizes = [8, 16, 128], strides = [1, 1, 1]} : vector<18x16x128xf32> to vector<8x16x128xf32>
    %151 = vector.shape_cast %150 : vector<8x16x128xf32> to vector<128x128xf32>
    %c0_142 = arith.constant 0 : index
    %c1_143 = arith.constant 1 : index
    %c0_144 = arith.constant 0 : index
    %c0_145 = arith.constant 0 : index
    %152 = vector.load %arg4[%c0_142, %c1_143, %c0_144, %c0_145] : memref<3x3x128x128xf32, #tpu.memory_space<vmem>>, vector<1x1x128x128xf32>
    %153 = vector.shape_cast %152 : vector<1x1x128x128xf32> to vector<128x128xf32>
    %cst_146 = arith.constant dense<0.000000e+00> : vector<128x128xf32>
    %154 = tpu.matmul %151, %153, %cst_146 {dimension_numbers = #tpu.dot_dimension_numbers<[1], [0], [0], [1], [0, 0, 1, 1], [], []>} : vector<128x128xf32>, vector<128x128xf32>, vector<128x128xf32> -> vector<128x128xf32>
    %155 = arith.addf %149, %154 : vector<128x128xf32>
    %156 = vector.extract_strided_slice %143 {offsets = [0, 0, 0], sizes = [8, 16, 128], strides = [1, 1, 1]} : vector<18x16x128xf32> to vector<8x16x128xf32>
    %157 = vector.shape_cast %156 : vector<8x16x128xf32> to vector<128x128xf32>
    %c0_147 = arith.constant 0 : index
    %c2_148 = arith.constant 2 : index
    %c0_149 = arith.constant 0 : index
    %c0_150 = arith.constant 0 : index
    %158 = vector.load %arg4[%c0_147, %c2_148, %c0_149, %c0_150] : memref<3x3x128x128xf32, #tpu.memory_space<vmem>>, vector<1x1x128x128xf32>
    %159 = vector.shape_cast %158 : vector<1x1x128x128xf32> to vector<128x128xf32>
    %cst_151 = arith.constant dense<0.000000e+00> : vector<128x128xf32>
    %160 = tpu.matmul %157, %159, %cst_151 {dimension_numbers = #tpu.dot_dimension_numbers<[1], [0], [0], [1], [0, 0, 1, 1], [], []>} : vector<128x128xf32>, vector<128x128xf32>, vector<128x128xf32> -> vector<128x128xf32>
    %161 = arith.addf %155, %160 : vector<128x128xf32>
    %162 = vector.extract_strided_slice %141 {offsets = [1, 0, 0], sizes = [8, 16, 128], strides = [1, 1, 1]} : vector<18x16x128xf32> to vector<8x16x128xf32>
    %163 = vector.shape_cast %162 : vector<8x16x128xf32> to vector<128x128xf32>
    %c1_152 = arith.constant 1 : index
    %c0_153 = arith.constant 0 : index
    %c0_154 = arith.constant 0 : index
    %c0_155 = arith.constant 0 : index
    %164 = vector.load %arg4[%c1_152, %c0_153, %c0_154, %c0_155] : memref<3x3x128x128xf32, #tpu.memory_space<vmem>>, vector<1x1x128x128xf32>
    %165 = vector.shape_cast %164 : vector<1x1x128x128xf32> to vector<128x128xf32>
    %cst_156 = arith.constant dense<0.000000e+00> : vector<128x128xf32>
    %166 = tpu.matmul %163, %165, %cst_156 {dimension_numbers = #tpu.dot_dimension_numbers<[1], [0], [0], [1], [0, 0, 1, 1], [], []>} : vector<128x128xf32>, vector<128x128xf32>, vector<128x128xf32> -> vector<128x128xf32>
    %167 = arith.addf %161, %166 : vector<128x128xf32>
    %168 = vector.extract_strided_slice %142 {offsets = [1, 0, 0], sizes = [8, 16, 128], strides = [1, 1, 1]} : vector<18x16x128xf32> to vector<8x16x128xf32>
    %169 = vector.shape_cast %168 : vector<8x16x128xf32> to vector<128x128xf32>
    %c1_157 = arith.constant 1 : index
    %c1_158 = arith.constant 1 : index
    %c0_159 = arith.constant 0 : index
    %c0_160 = arith.constant 0 : index
    %170 = vector.load %arg4[%c1_157, %c1_158, %c0_159, %c0_160] : memref<3x3x128x128xf32, #tpu.memory_space<vmem>>, vector<1x1x128x128xf32>
    %171 = vector.shape_cast %170 : vector<1x1x128x128xf32> to vector<128x128xf32>
    %cst_161 = arith.constant dense<0.000000e+00> : vector<128x128xf32>
    %172 = tpu.matmul %169, %171, %cst_161 {dimension_numbers = #tpu.dot_dimension_numbers<[1], [0], [0], [1], [0, 0, 1, 1], [], []>} : vector<128x128xf32>, vector<128x128xf32>, vector<128x128xf32> -> vector<128x128xf32>
    %173 = arith.addf %167, %172 : vector<128x128xf32>
    %174 = vector.extract_strided_slice %143 {offsets = [1, 0, 0], sizes = [8, 16, 128], strides = [1, 1, 1]} : vector<18x16x128xf32> to vector<8x16x128xf32>
    %175 = vector.shape_cast %174 : vector<8x16x128xf32> to vector<128x128xf32>
    %c1_162 = arith.constant 1 : index
    %c2_163 = arith.constant 2 : index
    %c0_164 = arith.constant 0 : index
    %c0_165 = arith.constant 0 : index
    %176 = vector.load %arg4[%c1_162, %c2_163, %c0_164, %c0_165] : memref<3x3x128x128xf32, #tpu.memory_space<vmem>>, vector<1x1x128x128xf32>
    %177 = vector.shape_cast %176 : vector<1x1x128x128xf32> to vector<128x128xf32>
    %cst_166 = arith.constant dense<0.000000e+00> : vector<128x128xf32>
    %178 = tpu.matmul %175, %177, %cst_166 {dimension_numbers = #tpu.dot_dimension_numbers<[1], [0], [0], [1], [0, 0, 1, 1], [], []>} : vector<128x128xf32>, vector<128x128xf32>, vector<128x128xf32> -> vector<128x128xf32>
    %179 = arith.addf %173, %178 : vector<128x128xf32>
    %180 = vector.extract_strided_slice %141 {offsets = [2, 0, 0], sizes = [8, 16, 128], strides = [1, 1, 1]} : vector<18x16x128xf32> to vector<8x16x128xf32>
    %181 = vector.shape_cast %180 : vector<8x16x128xf32> to vector<128x128xf32>
    %c2_167 = arith.constant 2 : index
    %c0_168 = arith.constant 0 : index
    %c0_169 = arith.constant 0 : index
    %c0_170 = arith.constant 0 : index
    %182 = vector.load %arg4[%c2_167, %c0_168, %c0_169, %c0_170] : memref<3x3x128x128xf32, #tpu.memory_space<vmem>>, vector<1x1x128x128xf32>
    %183 = vector.shape_cast %182 : vector<1x1x128x128xf32> to vector<128x128xf32>
    %cst_171 = arith.constant dense<0.000000e+00> : vector<128x128xf32>
    %184 = tpu.matmul %181, %183, %cst_171 {dimension_numbers = #tpu.dot_dimension_numbers<[1], [0], [0], [1], [0, 0, 1, 1], [], []>} : vector<128x128xf32>, vector<128x128xf32>, vector<128x128xf32> -> vector<128x128xf32>
    %185 = arith.addf %179, %184 : vector<128x128xf32>
    %186 = vector.extract_strided_slice %142 {offsets = [2, 0, 0], sizes = [8, 16, 128], strides = [1, 1, 1]} : vector<18x16x128xf32> to vector<8x16x128xf32>
    %187 = vector.shape_cast %186 : vector<8x16x128xf32> to vector<128x128xf32>
    %c2_172 = arith.constant 2 : index
    %c1_173 = arith.constant 1 : index
    %c0_174 = arith.constant 0 : index
    %c0_175 = arith.constant 0 : index
    %188 = vector.load %arg4[%c2_172, %c1_173, %c0_174, %c0_175] : memref<3x3x128x128xf32, #tpu.memory_space<vmem>>, vector<1x1x128x128xf32>
    %189 = vector.shape_cast %188 : vector<1x1x128x128xf32> to vector<128x128xf32>
    %cst_176 = arith.constant dense<0.000000e+00> : vector<128x128xf32>
    %190 = tpu.matmul %187, %189, %cst_176 {dimension_numbers = #tpu.dot_dimension_numbers<[1], [0], [0], [1], [0, 0, 1, 1], [], []>} : vector<128x128xf32>, vector<128x128xf32>, vector<128x128xf32> -> vector<128x128xf32>
    %191 = arith.addf %185, %190 : vector<128x128xf32>
    %192 = vector.extract_strided_slice %143 {offsets = [2, 0, 0], sizes = [8, 16, 128], strides = [1, 1, 1]} : vector<18x16x128xf32> to vector<8x16x128xf32>
    %193 = vector.shape_cast %192 : vector<8x16x128xf32> to vector<128x128xf32>
    %c2_177 = arith.constant 2 : index
    %c2_178 = arith.constant 2 : index
    %c0_179 = arith.constant 0 : index
    %c0_180 = arith.constant 0 : index
    %194 = vector.load %arg4[%c2_177, %c2_178, %c0_179, %c0_180] : memref<3x3x128x128xf32, #tpu.memory_space<vmem>>, vector<1x1x128x128xf32>
    %195 = vector.shape_cast %194 : vector<1x1x128x128xf32> to vector<128x128xf32>
    %cst_181 = arith.constant dense<0.000000e+00> : vector<128x128xf32>
    %196 = tpu.matmul %193, %195, %cst_181 {dimension_numbers = #tpu.dot_dimension_numbers<[1], [0], [0], [1], [0, 0, 1, 1], [], []>} : vector<128x128xf32>, vector<128x128xf32>, vector<128x128xf32> -> vector<128x128xf32>
    %197 = arith.addf %191, %196 : vector<128x128xf32>
    %198 = vector.broadcast %144 : vector<1x128xf32> to vector<128x128xf32>
    %199 = arith.addf %197, %198 : vector<128x128xf32>
    %cst_182 = arith.constant 0.000000e+00 : f32
    %200 = vector.broadcast %cst_182 : f32 to vector<128x128xf32>
    %201 = arith.maximumf %199, %200 : vector<128x128xf32>
    %202 = vector.shape_cast %201 : vector<128x128xf32> to vector<8x16x128xf32>
    %c0_183 = arith.constant 0 : index
    %c0_184 = arith.constant 0 : index
    %c0_185 = arith.constant 0 : index
    %c0_186 = arith.constant 0 : index
    %203 = vector.load %arg6[%c0_183, %c0_184, %c0_185, %c0_186] : memref<1x16x16x128xf32, #tpu.memory_space<vmem>>, vector<1x8x16x128xf32>
    %204 = vector.shape_cast %203 : vector<1x8x16x128xf32> to vector<8x16x128xf32>
    %205 = vector.shape_cast %202 : vector<8x16x128xf32> to vector<1x8x16x128xf32>
    tpu.vector_store %arg6[%c0_183, %c0_184, %c0_185, %c0_186], %205 {strides = array<i32>} : memref<1x16x16x128xf32, #tpu.memory_space<vmem>>, vector<1x8x16x128xf32>,
    %206 = vector.extract_strided_slice %141 {offsets = [8, 0, 0], sizes = [8, 16, 128], strides = [1, 1, 1]} : vector<18x16x128xf32> to vector<8x16x128xf32>
    %207 = vector.shape_cast %206 : vector<8x16x128xf32> to vector<128x128xf32>
    %c0_187 = arith.constant 0 : index
    %c0_188 = arith.constant 0 : index
    %c0_189 = arith.constant 0 : index
    %c0_190 = arith.constant 0 : index
    %208 = vector.load %arg4[%c0_187, %c0_188, %c0_189, %c0_190] : memref<3x3x128x128xf32, #tpu.memory_space<vmem>>, vector<1x1x128x128xf32>
    %209 = vector.shape_cast %208 : vector<1x1x128x128xf32> to vector<128x128xf32>
    %cst_191 = arith.constant dense<0.000000e+00> : vector<128x128xf32>
    %210 = tpu.matmul %207, %209, %cst_191 {dimension_numbers = #tpu.dot_dimension_numbers<[1], [0], [0], [1], [0, 0, 1, 1], [], []>} : vector<128x128xf32>, vector<128x128xf32>, vector<128x128xf32> -> vector<128x128xf32>
    %211 = vector.extract_strided_slice %142 {offsets = [8, 0, 0], sizes = [8, 16, 128], strides = [1, 1, 1]} : vector<18x16x128xf32> to vector<8x16x128xf32>
    %212 = vector.shape_cast %211 : vector<8x16x128xf32> to vector<128x128xf32>
    %c0_192 = arith.constant 0 : index
    %c1_193 = arith.constant 1 : index
    %c0_194 = arith.constant 0 : index
    %c0_195 = arith.constant 0 : index
    %213 = vector.load %arg4[%c0_192, %c1_193, %c0_194, %c0_195] : memref<3x3x128x128xf32, #tpu.memory_space<vmem>>, vector<1x1x128x128xf32>
    %214 = vector.shape_cast %213 : vector<1x1x128x128xf32> to vector<128x128xf32>
    %cst_196 = arith.constant dense<0.000000e+00> : vector<128x128xf32>
    %215 = tpu.matmul %212, %214, %cst_196 {dimension_numbers = #tpu.dot_dimension_numbers<[1], [0], [0], [1], [0, 0, 1, 1], [], []>} : vector<128x128xf32>, vector<128x128xf32>, vector<128x128xf32> -> vector<128x128xf32>
    %216 = arith.addf %210, %215 : vector<128x128xf32>
    %217 = vector.extract_strided_slice %143 {offsets = [8, 0, 0], sizes = [8, 16, 128], strides = [1, 1, 1]} : vector<18x16x128xf32> to vector<8x16x128xf32>
    %218 = vector.shape_cast %217 : vector<8x16x128xf32> to vector<128x128xf32>
    %c0_197 = arith.constant 0 : index
    %c2_198 = arith.constant 2 : index
    %c0_199 = arith.constant 0 : index
    %c0_200 = arith.constant 0 : index
    %219 = vector.load %arg4[%c0_197, %c2_198, %c0_199, %c0_200] : memref<3x3x128x128xf32, #tpu.memory_space<vmem>>, vector<1x1x128x128xf32>
    %220 = vector.shape_cast %219 : vector<1x1x128x128xf32> to vector<128x128xf32>
    %cst_201 = arith.constant dense<0.000000e+00> : vector<128x128xf32>
    %221 = tpu.matmul %218, %220, %cst_201 {dimension_numbers = #tpu.dot_dimension_numbers<[1], [0], [0], [1], [0, 0, 1, 1], [], []>} : vector<128x128xf32>, vector<128x128xf32>, vector<128x128xf32> -> vector<128x128xf32>
    %222 = arith.addf %216, %221 : vector<128x128xf32>
    %223 = vector.extract_strided_slice %141 {offsets = [9, 0, 0], sizes = [8, 16, 128], strides = [1, 1, 1]} : vector<18x16x128xf32> to vector<8x16x128xf32>
    %224 = vector.shape_cast %223 : vector<8x16x128xf32> to vector<128x128xf32>
    %c1_202 = arith.constant 1 : index
    %c0_203 = arith.constant 0 : index
    %c0_204 = arith.constant 0 : index
    %c0_205 = arith.constant 0 : index
    %225 = vector.load %arg4[%c1_202, %c0_203, %c0_204, %c0_205] : memref<3x3x128x128xf32, #tpu.memory_space<vmem>>, vector<1x1x128x128xf32>
    %226 = vector.shape_cast %225 : vector<1x1x128x128xf32> to vector<128x128xf32>
    %cst_206 = arith.constant dense<0.000000e+00> : vector<128x128xf32>
    %227 = tpu.matmul %224, %226, %cst_206 {dimension_numbers = #tpu.dot_dimension_numbers<[1], [0], [0], [1], [0, 0, 1, 1], [], []>} : vector<128x128xf32>, vector<128x128xf32>, vector<128x128xf32> -> vector<128x128xf32>
    %228 = arith.addf %222, %227 : vector<128x128xf32>
    %229 = vector.extract_strided_slice %142 {offsets = [9, 0, 0], sizes = [8, 16, 128], strides = [1, 1, 1]} : vector<18x16x128xf32> to vector<8x16x128xf32>
    %230 = vector.shape_cast %229 : vector<8x16x128xf32> to vector<128x128xf32>
    %c1_207 = arith.constant 1 : index
    %c1_208 = arith.constant 1 : index
    %c0_209 = arith.constant 0 : index
    %c0_210 = arith.constant 0 : index
    %231 = vector.load %arg4[%c1_207, %c1_208, %c0_209, %c0_210] : memref<3x3x128x128xf32, #tpu.memory_space<vmem>>, vector<1x1x128x128xf32>
    %232 = vector.shape_cast %231 : vector<1x1x128x128xf32> to vector<128x128xf32>
    %cst_211 = arith.constant dense<0.000000e+00> : vector<128x128xf32>
    %233 = tpu.matmul %230, %232, %cst_211 {dimension_numbers = #tpu.dot_dimension_numbers<[1], [0], [0], [1], [0, 0, 1, 1], [], []>} : vector<128x128xf32>, vector<128x128xf32>, vector<128x128xf32> -> vector<128x128xf32>
    %234 = arith.addf %228, %233 : vector<128x128xf32>
    %235 = vector.extract_strided_slice %143 {offsets = [9, 0, 0], sizes = [8, 16, 128], strides = [1, 1, 1]} : vector<18x16x128xf32> to vector<8x16x128xf32>
    %236 = vector.shape_cast %235 : vector<8x16x128xf32> to vector<128x128xf32>
    %c1_212 = arith.constant 1 : index
    %c2_213 = arith.constant 2 : index
    %c0_214 = arith.constant 0 : index
    %c0_215 = arith.constant 0 : index
    %237 = vector.load %arg4[%c1_212, %c2_213, %c0_214, %c0_215] : memref<3x3x128x128xf32, #tpu.memory_space<vmem>>, vector<1x1x128x128xf32>
    %238 = vector.shape_cast %237 : vector<1x1x128x128xf32> to vector<128x128xf32>
    %cst_216 = arith.constant dense<0.000000e+00> : vector<128x128xf32>
    %239 = tpu.matmul %236, %238, %cst_216 {dimension_numbers = #tpu.dot_dimension_numbers<[1], [0], [0], [1], [0, 0, 1, 1], [], []>} : vector<128x128xf32>, vector<128x128xf32>, vector<128x128xf32> -> vector<128x128xf32>
    %240 = arith.addf %234, %239 : vector<128x128xf32>
    %241 = vector.extract_strided_slice %141 {offsets = [10, 0, 0], sizes = [8, 16, 128], strides = [1, 1, 1]} : vector<18x16x128xf32> to vector<8x16x128xf32>
    %242 = vector.shape_cast %241 : vector<8x16x128xf32> to vector<128x128xf32>
    %c2_217 = arith.constant 2 : index
    %c0_218 = arith.constant 0 : index
    %c0_219 = arith.constant 0 : index
    %c0_220 = arith.constant 0 : index
    %243 = vector.load %arg4[%c2_217, %c0_218, %c0_219, %c0_220] : memref<3x3x128x128xf32, #tpu.memory_space<vmem>>, vector<1x1x128x128xf32>
    %244 = vector.shape_cast %243 : vector<1x1x128x128xf32> to vector<128x128xf32>
    %cst_221 = arith.constant dense<0.000000e+00> : vector<128x128xf32>
    %245 = tpu.matmul %242, %244, %cst_221 {dimension_numbers = #tpu.dot_dimension_numbers<[1], [0], [0], [1], [0, 0, 1, 1], [], []>} : vector<128x128xf32>, vector<128x128xf32>, vector<128x128xf32> -> vector<128x128xf32>
    %246 = arith.addf %240, %245 : vector<128x128xf32>
    %247 = vector.extract_strided_slice %142 {offsets = [10, 0, 0], sizes = [8, 16, 128], strides = [1, 1, 1]} : vector<18x16x128xf32> to vector<8x16x128xf32>
    %248 = vector.shape_cast %247 : vector<8x16x128xf32> to vector<128x128xf32>
    %c2_222 = arith.constant 2 : index
    %c1_223 = arith.constant 1 : index
    %c0_224 = arith.constant 0 : index
    %c0_225 = arith.constant 0 : index
    %249 = vector.load %arg4[%c2_222, %c1_223, %c0_224, %c0_225] : memref<3x3x128x128xf32, #tpu.memory_space<vmem>>, vector<1x1x128x128xf32>
    %250 = vector.shape_cast %249 : vector<1x1x128x128xf32> to vector<128x128xf32>
    %cst_226 = arith.constant dense<0.000000e+00> : vector<128x128xf32>
    %251 = tpu.matmul %248, %250, %cst_226 {dimension_numbers = #tpu.dot_dimension_numbers<[1], [0], [0], [1], [0, 0, 1, 1], [], []>} : vector<128x128xf32>, vector<128x128xf32>, vector<128x128xf32> -> vector<128x128xf32>
    %252 = arith.addf %246, %251 : vector<128x128xf32>
    %253 = vector.extract_strided_slice %143 {offsets = [10, 0, 0], sizes = [8, 16, 128], strides = [1, 1, 1]} : vector<18x16x128xf32> to vector<8x16x128xf32>
    %254 = vector.shape_cast %253 : vector<8x16x128xf32> to vector<128x128xf32>
    %c2_227 = arith.constant 2 : index
    %c2_228 = arith.constant 2 : index
    %c0_229 = arith.constant 0 : index
    %c0_230 = arith.constant 0 : index
    %255 = vector.load %arg4[%c2_227, %c2_228, %c0_229, %c0_230] : memref<3x3x128x128xf32, #tpu.memory_space<vmem>>, vector<1x1x128x128xf32>
    %256 = vector.shape_cast %255 : vector<1x1x128x128xf32> to vector<128x128xf32>
    %cst_231 = arith.constant dense<0.000000e+00> : vector<128x128xf32>
    %257 = tpu.matmul %254, %256, %cst_231 {dimension_numbers = #tpu.dot_dimension_numbers<[1], [0], [0], [1], [0, 0, 1, 1], [], []>} : vector<128x128xf32>, vector<128x128xf32>, vector<128x128xf32> -> vector<128x128xf32>
    %258 = arith.addf %252, %257 : vector<128x128xf32>
    %259 = vector.broadcast %144 : vector<1x128xf32> to vector<128x128xf32>
    %260 = arith.addf %258, %259 : vector<128x128xf32>
    %cst_232 = arith.constant 0.000000e+00 : f32
    %261 = vector.broadcast %cst_232 : f32 to vector<128x128xf32>
    %262 = arith.maximumf %260, %261 : vector<128x128xf32>
    %263 = vector.shape_cast %262 : vector<128x128xf32> to vector<8x16x128xf32>
    %c0_233 = arith.constant 0 : index
    %c8_234 = arith.constant 8 : index
    %c0_235 = arith.constant 0 : index
    %c0_236 = arith.constant 0 : index
    %264 = vector.load %arg6[%c0_233, %c8_234, %c0_235, %c0_236] : memref<1x16x16x128xf32, #tpu.memory_space<vmem>>, vector<1x8x16x128xf32>
    %265 = vector.shape_cast %264 : vector<1x8x16x128xf32> to vector<8x16x128xf32>
    %266 = vector.shape_cast %263 : vector<8x16x128xf32> to vector<1x8x16x128xf32>
    tpu.vector_store %arg6[%c0_233, %c8_234, %c0_235, %c0_236], %266 {strides = array<i32>} : memref<1x16x16x128xf32, #tpu.memory_space<vmem>>, vector<1x8x16x128xf32>,
    return
  }
  func.func @transform_0(%arg0: i32) -> (i32, i32, i32, i32) {
    %c0_i32 = arith.constant 0 : i32
    %c0_i32_0 = arith.constant 0 : i32
    %c0_i32_1 = arith.constant 0 : i32
    %c0_i32_2 = arith.constant 0 : i32
    return %arg0, %c0_i32, %c0_i32_0, %c0_i32_1 : i32, i32, i32, i32
  }
  func.func @transform_1(%arg0: i32) -> (i32, i32, i32, i32) {
    %c0_i32 = arith.constant 0 : i32
    %c0_i32_0 = arith.constant 0 : i32
    %c0_i32_1 = arith.constant 0 : i32
    %c0_i32_2 = arith.constant 0 : i32
    %c0_i32_3 = arith.constant 0 : i32
    return %c0_i32, %c0_i32_0, %c0_i32_1, %c0_i32_2 : i32, i32, i32, i32
  }
  func.func @transform_2(%arg0: i32) -> (i32, i32) {
    %c0_i32 = arith.constant 0 : i32
    %c0_i32_0 = arith.constant 0 : i32
    %c0_i32_1 = arith.constant 0 : i32
    return %c0_i32, %c0_i32_0 : i32, i32
  }
  func.func @transform_3(%arg0: i32) -> (i32, i32, i32, i32) {
    %c0_i32 = arith.constant 0 : i32
    %c0_i32_0 = arith.constant 0 : i32
    %c0_i32_1 = arith.constant 0 : i32
    %c0_i32_2 = arith.constant 0 : i32
    %c0_i32_3 = arith.constant 0 : i32
    return %c0_i32, %c0_i32_0, %c0_i32_1, %c0_i32_2 : i32, i32, i32, i32
  }
  func.func @transform_4(%arg0: i32) -> (i32, i32) {
    %c0_i32 = arith.constant 0 : i32
    %c0_i32_0 = arith.constant 0 : i32
    %c0_i32_1 = arith.constant 0 : i32
    return %c0_i32, %c0_i32_0 : i32, i32
  }
  func.func @transform_5(%arg0: i32) -> (i32, i32, i32, i32) {
    %c0_i32 = arith.constant 0 : i32
    %c0_i32_0 = arith.constant 0 : i32
    %c0_i32_1 = arith.constant 0 : i32
    %c0_i32_2 = arith.constant 0 : i32
    return %arg0, %c0_i32, %c0_i32_0, %c0_i32_1 : i32, i32, i32, i32
  }
}

</mosaic_0001>

<llo_original>
// kernel: tpu_custom_call.1
$region0: #{tpu_custom_call.1}
  #allocation0 [shape = 'u32[]', space=smem, size = 0x4, offset = 0x4, fixed_abs, tag = 'smem constant byte address 0x4 - core index']
  #allocation1 [shape = 'u32[72,128]{1,0:T(1,128)}', space=vmem, size = 0x9000, scoped, tag = 'internal scratch']
  #allocation2 [shape = 'f32[18,32,128]{2,1,0:T(8,128)}', space=vmem, size = 0x48000, scoped, tag = 'scratch operand']
  #allocation3 [shape = 'f32[18,32,128]{2,1,0:T(8,128)}', space=vmem, size = 0x48000, scoped, tag = 'scratch operand']
  %s0 = inlined_call_operand.vmem [shape: f32[2,16,16,4], index: 0, kind: input, shape index: {}]
  %s1 = inlined_call_operand.hbm [shape: f32[3,3,128,128], index: 1, kind: input, shape index: {}]
  %s2 = inlined_call_operand.vmem [shape: f32[1,128], index: 2, kind: input, shape index: {}]
  %s3 = inlined_call_operand.hbm [shape: f32[3,3,128,128], index: 3, kind: input, shape index: {}]
  %s4 = inlined_call_operand.vmem [shape: f32[1,128], index: 4, kind: input, shape index: {}]
  %s5 = inlined_call_operand.hbm [shape: f32[2,16,16,128], index: 5, kind: output, shape index: {}]
  %s6 = sld [smem:[#allocation0]]
  $region61: #{tpu_custom_call.1} parent=0
    _
  %s8 = ssub.s32 1, %s6
  %s9 = scalar_select 0, %s8, %s6
  $region1: #{tpu_custom_call.1} parent=0
    #allocation4 [shape = 'u8[589824]{0}', space=vmem, size = 0x90000, scoped, tag = 'input window, operand 1, single buffered']
    #allocation5 [shape = 's32[2]{0}', space=sflag, size = 0x8, scoped, tag = 'scoped memory for tpu_custom_call.1']
    #allocation6 [shape = 's32[2]{0}', space=sflag, size = 0x8, scoped, tag = 'scoped memory for tpu_custom_call.1']
    #allocation7 [shape = 'u8[589824]{0}', space=vmem, size = 0x90000, scoped, tag = 'input window, operand 3, single buffered']
    #allocation8 [shape = 's32[1]{0}', space=sflag, size = 0x4, scoped, tag = 'scoped memory for tpu_custom_call.1']
    #allocation9 [shape = 'u8[262144]{0}', space=vmem, size = 0x40000, scoped, tag = 'output window, operand 0']
    %10 = vsyncpa [#allocation5], 0
    %11 = vsyncpa [#allocation8], 0
    %12 = vsyncpa [#allocation6], 0
    %s13 = scalar_lea.sflag [#allocation6], 1
    %14 = vsyncpa %s13, 0
    loop: start=0, step=1, limit=4
    $region2: #{tpu_custom_call.1} parent=1 // loop_pre_header
      _
    $region3: #{tpu_custom_call.1} parent=1 // loop_header
      %s16 = sphi 0, %s20
      %p17 = scmp.ge.s32.totalorder %s16, 4
      %s26 = sphi 0, %s28
      %s29 = sphi 0, %s26
      %s30 = sphi 0, %s29
      %s46 = sphi 0, %s30
      %s50 = sphi 0, %s50
      %s52 = sphi 0, %s50
      %s53 = sphi 0, %s52
      %s67 = sphi 0, %s53
      %s71 = sphi 0, %s71
      %s73 = sphi 0, %s71
      %s74 = sphi 0, %s73
      %s88 = sphi 0, %s74
      %s92 = sphi 0, %s92
      %s94 = sphi 0, %s92
      %s95 = sphi 0, %s94
      %s109 = sphi 0, %s95
      %s113 = sphi 0, %s113
      %s115 = sphi 0, %s113
      %s116 = sphi 0, %s115
      %s130 = sphi 0, %s116
      %s136 = sphi 0, %s138
      %s139 = sphi 0, %s136
      %s140 = sphi 0, %s139
      %s156 = sphi 0, %s140
    $region4: #{tpu_custom_call.1} parent=1 // loop_header_branch
      %19 = sbr.rel (%p17) target = $region8
    $region5: #{tpu_custom_call.1} parent=1 // loop_body
      %s21 = ssub.s32 %s16, 1
      %s22 = ssub.s32 %s16, 2
      %s23 = sadd.s32 %s16, 1
      %s24 = ssub.s32 %s16, %s23
      %p25 = scmp.eq.s32.totalorder %s24, 0
      %s27 = sadd.s32 %s26, 1
      %s28 = scalar_select %p25, %s26, %s27
      %p31 = pneg %p25
      %p32 = scmp.eq.s32.totalorder %s16, 1
      %p33 = por %p31, %p32
      %p34 = scmp.ne.s32.totalorder %s26, %s29
      %p35 = scmp.eq.s32.totalorder %s16, 0
      %p36 = por %p34, %p35
      %p37 = scmp.ne.s32.totalorder %s26, %s29
      %p38 = scmp.eq.s32.totalorder %s21, 1
      %p39 = por %p37, %p38
      %p40 = scmp.ne.s32.totalorder %s29, %s30
      %p41 = scmp.eq.s32.totalorder %s21, 0
      %p42 = por %p40, %p41
      %p43 = scmp.ne.s32.totalorder %s29, %s30
      %p44 = scmp.eq.s32.totalorder %s22, 1
      %p45 = por %p43, %p44
      %p47 = scmp.ne.s32.totalorder %s30, %s46
      %p48 = scmp.eq.s32.totalorder %s22, 0
      %p49 = por %p47, %p48
      %s51 = sadd.s32 %s50, 1
      %p54 = scmp.eq.s32.totalorder %s16, 1
      %p55 = scmp.ne.s32.totalorder %s50, %s52
      %p56 = scmp.eq.s32.totalorder %s16, 0
      %p57 = por %p55, %p56
      %p58 = scmp.ne.s32.totalorder %s50, %s52
      %p59 = scmp.eq.s32.totalorder %s21, 1
      %p60 = por %p58, %p59
      %p61 = scmp.ne.s32.totalorder %s52, %s53
      %p62 = scmp.eq.s32.totalorder %s21, 0
      %p63 = por %p61, %p62
      %p64 = scmp.ne.s32.totalorder %s52, %s53
      %p65 = scmp.eq.s32.totalorder %s22, 1
      %p66 = por %p64, %p65
      %p68 = scmp.ne.s32.totalorder %s53, %s67
      %p69 = scmp.eq.s32.totalorder %s22, 0
      %p70 = por %p68, %p69
      %s72 = sadd.s32 %s71, 1
      %p75 = scmp.eq.s32.totalorder %s16, 1
      %p76 = scmp.ne.s32.totalorder %s71, %s73
      %p77 = scmp.eq.s32.totalorder %s16, 0
      %p78 = por %p76, %p77
      %p79 = scmp.ne.s32.totalorder %s71, %s73
      %p80 = scmp.eq.s32.totalorder %s21, 1
      %p81 = por %p79, %p80
      %p82 = scmp.ne.s32.totalorder %s73, %s74
      %p83 = scmp.eq.s32.totalorder %s21, 0
      %p84 = por %p82, %p83
      %p85 = scmp.ne.s32.totalorder %s73, %s74
      %p86 = scmp.eq.s32.totalorder %s22, 1
      %p87 = por %p85, %p86
      %p89 = scmp.ne.s32.totalorder %s74, %s88
      %p90 = scmp.eq.s32.totalorder %s22, 0
      %p91 = por %p89, %p90
      %s93 = sadd.s32 %s92, 1
      %p96 = scmp.eq.s32.totalorder %s16, 1
      %p97 = scmp.ne.s32.totalorder %s92, %s94
      %p98 = scmp.eq.s32.totalorder %s16, 0
      %p99 = por %p97, %p98
      %p100 = scmp.ne.s32.totalorder %s92, %s94
      %p101 = scmp.eq.s32.totalorder %s21, 1
      %p102 = por %p100, %p101
      %p103 = scmp.ne.s32.totalorder %s94, %s95
      %p104 = scmp.eq.s32.totalorder %s21, 0
      %p105 = por %p103, %p104
      %p106 = scmp.ne.s32.totalorder %s94, %s95
      %p107 = scmp.eq.s32.totalorder %s22, 1
      %p108 = por %p106, %p107
      %p110 = scmp.ne.s32.totalorder %s95, %s109
      %p111 = scmp.eq.s32.totalorder %s22, 0
      %p112 = por %p110, %p111
      %s114 = sadd.s32 %s113, 1
      %p117 = scmp.eq.s32.totalorder %s16, 1
      %p118 = scmp.ne.s32.totalorder %s113, %s115
      %p119 = scmp.eq.s32.totalorder %s16, 0
      %p120 = por %p118, %p119
      %p121 = scmp.ne.s32.totalorder %s113, %s115
      %p122 = scmp.eq.s32.totalorder %s21, 1
      %p123 = por %p121, %p122
      %p124 = scmp.ne.s32.totalorder %s115, %s116
      %p125 = scmp.eq.s32.totalorder %s21, 0
      %p126 = por %p124, %p125
      %p127 = scmp.ne.s32.totalorder %s115, %s116
      %p128 = scmp.eq.s32.totalorder %s22, 1
      %p129 = por %p127, %p128
      %p131 = scmp.ne.s32.totalorder %s116, %s130
      %p132 = scmp.eq.s32.totalorder %s22, 0
      %p133 = por %p131, %p132
      %s134 = ssub.s32 %s16, %s23
      %p135 = scmp.eq.s32.totalorder %s134, 0
      %s137 = sadd.s32 %s136, 1
      %s138 = scalar_select %p135, %s136, %s137
      %p141 = pneg %p135
      %p142 = scmp.eq.s32.totalorder %s16, 1
      %p143 = por %p141, %p142
      %p144 = scmp.ne.s32.totalorder %s136, %s139
      %p145 = scmp.eq.s32.totalorder %s16, 0
      %p146 = por %p144, %p145
      %p147 = scmp.ne.s32.totalorder %s136, %s139
      %p148 = scmp.eq.s32.totalorder %s21, 1
      %p149 = por %p147, %p148
      %p150 = scmp.ne.s32.totalorder %s139, %s140
      %p151 = scmp.eq.s32.totalorder %s21, 0
      %p152 = por %p150, %p151
      %p153 = scmp.ne.s32.totalorder %s139, %s140
      %p154 = scmp.eq.s32.totalorder %s22, 1
      %p155 = por %p153, %p154
      %p157 = scmp.ne.s32.totalorder %s140, %s156
      %p158 = scmp.eq.s32.totalorder %s22, 0
      %p159 = por %p157, %p158
      %p160 = scmp.le.s32.totalorder 1, %s16
      %p161 = scmp.lt.s32.totalorder %s16, 3
      %p162 = pnand %p160, %p161
      %p163 = pneg %p162
      // Predicated region
      $region9: #{tpu_custom_call.1} parent=5 // pred_check
        _
      $region10: #{tpu_custom_call.1} parent=5 // pred_check_branch
        %165 = sbr.rel (%p162) target = $region12
      $region11: #{tpu_custom_call.1} parent=5 // pred_region
        %s166 = ssub.s32 %s16, 1
        // Predicated region
        $region13: #{tpu_custom_call.1} parent=11 // pred_check
          %p167 = pneg %p63
        $region14: #{tpu_custom_call.1} parent=11 // pred_check_branch
          %169 = sbr.rel (%p167) target = $region16
        $region15: #{tpu_custom_call.1} parent=11 // pred_region
          %171 = vsyncadd [#allocation5], 0
          %s172 = sshll.u32 %s1, 4
          %s173 = int_to_ptr.hbm [resolvable:$true] %s172
          %s174 = sshll.u32 [#allocation4], 4
          %s175 = int_to_ptr.vmem [resolvable:$true] %s174
          %180 = dma.hbm_to_vmem [thread:$0]  %s173, 18432, %s175, [#allocation5], 128, 128, 8
        $region16: #{tpu_custom_call.1} parent=11 // pred_fallthru
          _
        // Predicated region
        $region17: #{tpu_custom_call.1} parent=11 // pred_check
          %p181 = pneg %p84
        $region18: #{tpu_custom_call.1} parent=11 // pred_check_branch
          %183 = sbr.rel (%p181) target = $region20
        $region19: #{tpu_custom_call.1} parent=11 // pred_region
          _
        $region20: #{tpu_custom_call.1} parent=11 // pred_fallthru
          _
        // Predicated region
        $region21: #{tpu_custom_call.1} parent=11 // pred_check
          %p184 = pneg %p105
        $region22: #{tpu_custom_call.1} parent=11 // pred_check_branch
          %186 = sbr.rel (%p184) target = $region24
        $region23: #{tpu_custom_call.1} parent=11 // pred_region
          %188 = vsyncadd [#allocation8], 0
          %s189 = sshll.u32 %s3, 4
          %s190 = int_to_ptr.hbm [resolvable:$true] %s189
          %s191 = sshll.u32 [#allocation7], 4
          %s192 = int_to_ptr.vmem [resolvable:$true] %s191
          %197 = dma.hbm_to_vmem [thread:$0]  %s190, 18432, %s192, [#allocation8], 128, 128, 8
        $region24: #{tpu_custom_call.1} parent=11 // pred_fallthru
          _
        // Predicated region
        $region25: #{tpu_custom_call.1} parent=11 // pred_check
          %p198 = pneg %p126
        $region26: #{tpu_custom_call.1} parent=11 // pred_check_branch
          %200 = sbr.rel (%p198) target = $region28
        $region27: #{tpu_custom_call.1} parent=11 // pred_region
          _
        $region28: #{tpu_custom_call.1} parent=11 // pred_fallthru
          _
      $region12: #{tpu_custom_call.1} parent=5 // pred_fallthru
        _
      %p201 = scmp.lt.s32.totalorder %s16, 2
      // Predicated region
      $region29: #{tpu_custom_call.1} parent=5 // pred_check
        %p202 = pneg %p201
      $region30: #{tpu_custom_call.1} parent=5 // pred_check_branch
        %204 = sbr.rel (%p202) target = $region32
      $region31: #{tpu_custom_call.1} parent=5 // pred_region
        // Predicated region
        $region33: #{tpu_custom_call.1} parent=31 // pred_check
          %p205 = pneg %p36
        $region34: #{tpu_custom_call.1} parent=31 // pred_check_branch
          %207 = sbr.rel (%p205) target = $region36
        $region35: #{tpu_custom_call.1} parent=31 // pred_region
          %p208 = scmp.lt.s32.totalorder %s16, 1
          %s209 = scalar_select %p208, %s16, 1
          %s210 = smul.addr %s209, 32
          %s211 = smul.addr %s210, 8
          %s212 = scalar_lea.vmem %s0, %s211
        $region36: #{tpu_custom_call.1} parent=31 // pred_fallthru
          _
      $region32: #{tpu_custom_call.1} parent=5 // pred_fallthru
        _
      %p213 = scmp.le.s32.totalorder 1, %s16
      %p214 = scmp.lt.s32.totalorder %s16, 3
      %p215 = pnand %p213, %p214
      %p216 = pneg %p215
      // Predicated region
      $region37: #{tpu_custom_call.1} parent=5 // pred_check
        _
      $region38: #{tpu_custom_call.1} parent=5 // pred_check_branch
        %218 = sbr.rel (%p215) target = $region40
      $region39: #{tpu_custom_call.1} parent=5 // pred_region
        %s219 = ssub.s32 %s16, 1
        // Predicated region
        $region41: #{tpu_custom_call.1} parent=39 // pred_check
          %p220 = pneg %p63
        $region42: #{tpu_custom_call.1} parent=39 // pred_check_branch
          %222 = sbr.rel (%p220) target = $region44
        $region43: #{tpu_custom_call.1} parent=39 // pred_region
          %224 = dma.done [#allocation5], 18432
        $region44: #{tpu_custom_call.1} parent=39 // pred_fallthru
          _
        // Predicated region
        $region45: #{tpu_custom_call.1} parent=39 // pred_check
          %p225 = pneg %p105
        $region46: #{tpu_custom_call.1} parent=39 // pred_check_branch
          %227 = sbr.rel (%p225) target = $region48
        $region47: #{tpu_custom_call.1} parent=39 // pred_region
          %229 = dma.done [#allocation8], 18432
        $region48: #{tpu_custom_call.1} parent=39 // pred_fallthru
          _
        %p230 = scmp.lt.s32.totalorder %s21, 1
        %s231 = scalar_select %p230, %s21, 1
        %s232 = smul.addr %s231, 32
        %s233 = smul.addr %s232, 8
        %s234 = scalar_lea.vmem %s0, %s233
        %p235 = pneg %p42
        %p236 = pneg %p39
        %p237 = pneg %p63
        %p238 = pneg %p60
        %p239 = pneg %p84
        %p240 = pneg %p81
        %p241 = pneg %p105
        %p242 = pneg %p102
        %p243 = pneg %p126
        %p244 = pneg %p123
        %p245 = pneg %p152
        %p246 = pneg %p149
        %s247 = sand.u32 %s139, 1
        %s248 = scalar_lea.sflag [#allocation6], %s247
        %s249 = sand.u32 %s139, 1
        %s250 = smul.addr %s249, 256
        %s251 = scalar_lea.vmem [#allocation9], %s250
        %p252 = scmp.lt.s32.totalorder %s21, 1
        %s253 = scalar_select %p252, %s21, 1
        %s254 = smul.addr %s253, 32
        %s255 = smul.addr %s254, 8
        %s256 = scalar_lea.vmem %s0, %s255
        %257 = vst [vmem:[#allocation2 + $0x7] sm:$0xff] 0.0
        %258 = vst [vmem:[#allocation2 + $0xf] sm:$0xff] 0.0
        %259 = vst [vmem:[#allocation2 + $0x17] sm:$0x3] 0.0
        %s260 = scalar_lea.vmem [#allocation2], 544
        %261 = vst [vmem:[%s260 + $0x7] sm:$0xff] 0.0
        %262 = vst [vmem:[%s260 + $0xf] sm:$0xff] 0.0
        %263 = vst [vmem:[%s260 + $0x17] sm:$0x3] 0.0
        %264 = vst [vmem:[#allocation2 + $0x7] sm:$0x1] 0.0
        %265 = vst [vmem:[#allocation2 + $0x27] sm:$0x1] 0.0
        %266 = vst [vmem:[#allocation2 + $0x47] sm:$0x1] 0.0
        %267 = vst [vmem:[#allocation2 + $0x67] sm:$0x1] 0.0
        %268 = vst [vmem:[#allocation2 + $0x87] sm:$0x1] 0.0
        %269 = vst [vmem:[#allocation2 + $0xa7] sm:$0x1] 0.0
        %270 = vst [vmem:[#allocation2 + $0xc7] sm:$0x1] 0.0
        %271 = vst [vmem:[#allocation2 + $0xe7] sm:$0x1] 0.0
        %272 = vst [vmem:[#allocation2 + $0x107] sm:$0x1] 0.0
        %273 = vst [vmem:[#allocation2 + $0x127] sm:$0x1] 0.0
        %274 = vst [vmem:[#allocation2 + $0x147] sm:$0x1] 0.0
        %275 = vst [vmem:[#allocation2 + $0x167] sm:$0x1] 0.0
        %276 = vst [vmem:[#allocation2 + $0x187] sm:$0x1] 0.0
        %277 = vst [vmem:[#allocation2 + $0x1a7] sm:$0x1] 0.0
        %278 = vst [vmem:[#allocation2 + $0x1c7] sm:$0x1] 0.0
        %279 = vst [vmem:[#allocation2 + $0x1e7] sm:$0x1] 0.0
        %280 = vst [vmem:[#allocation2 + $0x207] sm:$0x1] 0.0
        %281 = vst [vmem:[#allocation2 + $0x227] sm:$0x1] 0.0
        %282 = vst [vmem:[#allocation2 + $0x18] sm:$0x1] 0.0
        %283 = vst [vmem:[#allocation2 + $0x38] sm:$0x1] 0.0
        %284 = vst [vmem:[#allocation2 + $0x58] sm:$0x1] 0.0
        %285 = vst [vmem:[#allocation2 + $0x78] sm:$0x1] 0.0
        %286 = vst [vmem:[#allocation2 + $0x98] sm:$0x1] 0.0
        %287 = vst [vmem:[#allocation2 + $0xb8] sm:$0x1] 0.0
        %288 = vst [vmem:[#allocation2 + $0xd8] sm:$0x1] 0.0
        %289 = vst [vmem:[#allocation2 + $0xf8] sm:$0x1] 0.0
        %290 = vst [vmem:[#allocation2 + $0x118] sm:$0x1] 0.0
        %291 = vst [vmem:[#allocation2 + $0x138] sm:$0x1] 0.0
        %292 = vst [vmem:[#allocation2 + $0x158] sm:$0x1] 0.0
        %293 = vst [vmem:[#allocation2 + $0x178] sm:$0x1] 0.0
        %294 = vst [vmem:[#allocation2 + $0x198] sm:$0x1] 0.0
        %295 = vst [vmem:[#allocation2 + $0x1b8] sm:$0x1] 0.0
        %296 = vst [vmem:[#allocation2 + $0x1d8] sm:$0x1] 0.0
        %297 = vst [vmem:[#allocation2 + $0x1f8] sm:$0x1] 0.0
        %298 = vst [vmem:[#allocation2 + $0x218] sm:$0x1] 0.0
        %299 = vst [vmem:[#allocation2 + $0x238] sm:$0x1] 0.0
        %300 = vst [vmem:[#allocation3 + $0x7] sm:$0xff] 0.0
        %301 = vst [vmem:[#allocation3 + $0xf] sm:$0xff] 0.0
        %302 = vst [vmem:[#allocation3 + $0x17] sm:$0x3] 0.0
        %s303 = scalar_lea.vmem [#allocation3], 544
        %304 = vst [vmem:[%s303 + $0x7] sm:$0xff] 0.0
        %305 = vst [vmem:[%s303 + $0xf] sm:$0xff] 0.0
        %306 = vst [vmem:[%s303 + $0x17] sm:$0x3] 0.0
        %307 = vst [vmem:[#allocation3 + $0x7] sm:$0x1] 0.0
        %308 = vst [vmem:[#allocation3 + $0x27] sm:$0x1] 0.0
        %309 = vst [vmem:[#allocation3 + $0x47] sm:$0x1] 0.0
        %310 = vst [vmem:[#allocation3 + $0x67] sm:$0x1] 0.0
        %311 = vst [vmem:[#allocation3 + $0x87] sm:$0x1] 0.0
        %312 = vst [vmem:[#allocation3 + $0xa7] sm:$0x1] 0.0
        %313 = vst [vmem:[#allocation3 + $0xc7] sm:$0x1] 0.0
        %314 = vst [vmem:[#allocation3 + $0xe7] sm:$0x1] 0.0
        %315 = vst [vmem:[#allocation3 + $0x107] sm:$0x1] 0.0
        %316 = vst [vmem:[#allocation3 + $0x127] sm:$0x1] 0.0
        %317 = vst [vmem:[#allocation3 + $0x147] sm:$0x1] 0.0
        %318 = vst [vmem:[#allocation3 + $0x167] sm:$0x1] 0.0
        %319 = vst [vmem:[#allocation3 + $0x187] sm:$0x1] 0.0
        %320 = vst [vmem:[#allocation3 + $0x1a7] sm:$0x1] 0.0
        %321 = vst [vmem:[#allocation3 + $0x1c7] sm:$0x1] 0.0
        %322 = vst [vmem:[#allocation3 + $0x1e7] sm:$0x1] 0.0
        %323 = vst [vmem:[#allocation3 + $0x207] sm:$0x1] 0.0
        %324 = vst [vmem:[#allocation3 + $0x227] sm:$0x1] 0.0
        %325 = vst [vmem:[#allocation3 + $0x18] sm:$0x1] 0.0
        %326 = vst [vmem:[#allocation3 + $0x38] sm:$0x1] 0.0
        %327 = vst [vmem:[#allocation3 + $0x58] sm:$0x1] 0.0
        %328 = vst [vmem:[#allocation3 + $0x78] sm:$0x1] 0.0
        %329 = vst [vmem:[#allocation3 + $0x98] sm:$0x1] 0.0
        %330 = vst [vmem:[#allocation3 + $0xb8] sm:$0x1] 0.0
        %331 = vst [vmem:[#allocation3 + $0xd8] sm:$0x1] 0.0
        %332 = vst [vmem:[#allocation3 + $0xf8] sm:$0x1] 0.0
        %333 = vst [vmem:[#allocation3 + $0x118] sm:$0x1] 0.0
        %334 = vst [vmem:[#allocation3 + $0x138] sm:$0x1] 0.0
        %335 = vst [vmem:[#allocation3 + $0x158] sm:$0x1] 0.0
        %336 = vst [vmem:[#allocation3 + $0x178] sm:$0x1] 0.0
        %337 = vst [vmem:[#allocation3 + $0x198] sm:$0x1] 0.0
        %338 = vst [vmem:[#allocation3 + $0x1b8] sm:$0x1] 0.0
        %339 = vst [vmem:[#allocation3 + $0x1d8] sm:$0x1] 0.0
        %340 = vst [vmem:[#allocation3 + $0x1f8] sm:$0x1] 0.0
        %341 = vst [vmem:[#allocation3 + $0x218] sm:$0x1] 0.0
        %342 = vst [vmem:[#allocation3 + $0x238] sm:$0x1] 0.0
        %v343 = vld [vmem:[%s256] sm:$0xff]
        %v344 = vld [vmem:[%s256 + $0x8] sm:$0xff]
        %v345 = vld [vmem:[%s256 + $0x10] sm:$0xff]
        %v346 = vld [vmem:[%s256 + $0x18] sm:$0xff]
        %v347 = vld [vmem:[%s256 + $0x20] sm:$0xff]
        %v348 = vld [vmem:[%s256 + $0x28] sm:$0xff]
        %v349 = vld [vmem:[%s256 + $0x30] sm:$0xff]
        %v350 = vld [vmem:[%s256 + $0x38] sm:$0xff]
        %v351 = vld [vmem:[%s256 + $0x40] sm:$0xff]
        %v352 = vld [vmem:[%s256 + $0x48] sm:$0xff]
        %v353 = vld [vmem:[%s256 + $0x50] sm:$0xff]
        %v354 = vld [vmem:[%s256 + $0x58] sm:$0xff]
        %v355 = vld [vmem:[%s256 + $0x60] sm:$0xff]
        %v356 = vld [vmem:[%s256 + $0x68] sm:$0xff]
        %v357 = vld [vmem:[%s256 + $0x70] sm:$0xff]
        %v358 = vld [vmem:[%s256 + $0x78] sm:$0xff]
        %v359 = vld [vmem:[%s256 + $0x80] sm:$0xff]
        %v360 = vld [vmem:[%s256 + $0x88] sm:$0xff]
        %v361 = vld [vmem:[%s256 + $0x90] sm:$0xff]
        %v362 = vld [vmem:[%s256 + $0x98] sm:$0xff]
        %v363 = vld [vmem:[%s256 + $0xa0] sm:$0xff]
        %v364 = vld [vmem:[%s256 + $0xa8] sm:$0xff]
        %v365 = vld [vmem:[%s256 + $0xb0] sm:$0xff]
        %v366 = vld [vmem:[%s256 + $0xb8] sm:$0xff]
        %v367 = vld [vmem:[%s256 + $0xc0] sm:$0xff]
        %v368 = vld [vmem:[%s256 + $0xc8] sm:$0xff]
        %v369 = vld [vmem:[%s256 + $0xd0] sm:$0xff]
        %v370 = vld [vmem:[%s256 + $0xd8] sm:$0xff]
        %v371 = vld [vmem:[%s256 + $0xe0] sm:$0xff]
        %v372 = vld [vmem:[%s256 + $0xe8] sm:$0xff]
        %v373 = vld [vmem:[%s256 + $0xf0] sm:$0xff]
        %v374 = vld [vmem:[%s256 + $0xf8] sm:$0xff]
        %s375 = scalar_lea.vmem [#allocation2], 32
        %vm376 = vcmask 31744
        %377 = vst.msk [vmem:[%s375 + $0x8] sm:$0xff] %vm376, %v343
        %378 = vst.msk [vmem:[%s375 + $0x10] sm:$0xff] %vm376, %v344
        %379 = vst.msk [vmem:[%s375 + $0x28] sm:$0xff] %vm376, %v345
        %380 = vst.msk [vmem:[%s375 + $0x30] sm:$0xff] %vm376, %v346
        %381 = vst.msk [vmem:[%s375 + $0x48] sm:$0xff] %vm376, %v347
        %382 = vst.msk [vmem:[%s375 + $0x50] sm:$0xff] %vm376, %v348
        %383 = vst.msk [vmem:[%s375 + $0x68] sm:$0xff] %vm376, %v349
        %384 = vst.msk [vmem:[%s375 + $0x70] sm:$0xff] %vm376, %v350
        %385 = vst.msk [vmem:[%s375 + $0x88] sm:$0xff] %vm376, %v351
        %386 = vst.msk [vmem:[%s375 + $0x90] sm:$0xff] %vm376, %v352
        %387 = vst.msk [vmem:[%s375 + $0xa8] sm:$0xff] %vm376, %v353
        %388 = vst.msk [vmem:[%s375 + $0xb0] sm:$0xff] %vm376, %v354
        %389 = vst.msk [vmem:[%s375 + $0xc8] sm:$0xff] %vm376, %v355
        %390 = vst.msk [vmem:[%s375 + $0xd0] sm:$0xff] %vm376, %v356
        %391 = vst.msk [vmem:[%s375 + $0xe8] sm:$0xff] %vm376, %v357
        %392 = vst.msk [vmem:[%s375 + $0xf0] sm:$0xff] %vm376, %v358
        %393 = vst.msk [vmem:[%s375 + $0x108] sm:$0xff] %vm376, %v359
        %394 = vst.msk [vmem:[%s375 + $0x110] sm:$0xff] %vm376, %v360
        %395 = vst.msk [vmem:[%s375 + $0x128] sm:$0xff] %vm376, %v361
        %396 = vst.msk [vmem:[%s375 + $0x130] sm:$0xff] %vm376, %v362
        %397 = vst.msk [vmem:[%s375 + $0x148] sm:$0xff] %vm376, %v363
        %398 = vst.msk [vmem:[%s375 + $0x150] sm:$0xff] %vm376, %v364
        %399 = vst.msk [vmem:[%s375 + $0x168] sm:$0xff] %vm376, %v365
        %400 = vst.msk [vmem:[%s375 + $0x170] sm:$0xff] %vm376, %v366
        %401 = vst.msk [vmem:[%s375 + $0x188] sm:$0xff] %vm376, %v367
        %402 = vst.msk [vmem:[%s375 + $0x190] sm:$0xff] %vm376, %v368
        %403 = vst.msk [vmem:[%s375 + $0x1a8] sm:$0xff] %vm376, %v369
        %404 = vst.msk [vmem:[%s375 + $0x1b0] sm:$0xff] %vm376, %v370
        %405 = vst.msk [vmem:[%s375 + $0x1c8] sm:$0xff] %vm376, %v371
        %406 = vst.msk [vmem:[%s375 + $0x1d0] sm:$0xff] %vm376, %v372
        %407 = vst.msk [vmem:[%s375 + $0x1e8] sm:$0xff] %vm376, %v373
        %408 = vst.msk [vmem:[%s375 + $0x1f0] sm:$0xff] %vm376, %v374
        %vm409 = vcmask 1047584
        %410 = vst.msk [vmem:[%s375 + $0x8] sm:$0xff] %vm409, 0.0
        %411 = vst.msk [vmem:[%s375 + $0x10] sm:$0xff] %vm409, 0.0
        %412 = vst.msk [vmem:[%s375 + $0x28] sm:$0xff] %vm409, 0.0
        %413 = vst.msk [vmem:[%s375 + $0x30] sm:$0xff] %vm409, 0.0
        %414 = vst.msk [vmem:[%s375 + $0x48] sm:$0xff] %vm409, 0.0
        %415 = vst.msk [vmem:[%s375 + $0x50] sm:$0xff] %vm409, 0.0
        %416 = vst.msk [vmem:[%s375 + $0x68] sm:$0xff] %vm409, 0.0
        %417 = vst.msk [vmem:[%s375 + $0x70] sm:$0xff] %vm409, 0.0
        %418 = vst.msk [vmem:[%s375 + $0x88] sm:$0xff] %vm409, 0.0
        %419 = vst.msk [vmem:[%s375 + $0x90] sm:$0xff] %vm409, 0.0
        %420 = vst.msk [vmem:[%s375 + $0xa8] sm:$0xff] %vm409, 0.0
        %421 = vst.msk [vmem:[%s375 + $0xb0] sm:$0xff] %vm409, 0.0
        %422 = vst.msk [vmem:[%s375 + $0xc8] sm:$0xff] %vm409, 0.0
        %423 = vst.msk [vmem:[%s375 + $0xd0] sm:$0xff] %vm409, 0.0
        %424 = vst.msk [vmem:[%s375 + $0xe8] sm:$0xff] %vm409, 0.0
        %425 = vst.msk [vmem:[%s375 + $0xf0] sm:$0xff] %vm409, 0.0
        %426 = vst.msk [vmem:[%s375 + $0x108] sm:$0xff] %vm409, 0.0
        %427 = vst.msk [vmem:[%s375 + $0x110] sm:$0xff] %vm409, 0.0
        %428 = vst.msk [vmem:[%s375 + $0x128] sm:$0xff] %vm409, 0.0
        %429 = vst.msk [vmem:[%s375 + $0x130] sm:$0xff] %vm409, 0.0
        %430 = vst.msk [vmem:[%s375 + $0x148] sm:$0xff] %vm409, 0.0
        %431 = vst.msk [vmem:[%s375 + $0x150] sm:$0xff] %vm409, 0.0
        %432 = vst.msk [vmem:[%s375 + $0x168] sm:$0xff] %vm409, 0.0
        %433 = vst.msk [vmem:[%s375 + $0x170] sm:$0xff] %vm409, 0.0
        %434 = vst.msk [vmem:[%s375 + $0x188] sm:$0xff] %vm409, 0.0
        %435 = vst.msk [vmem:[%s375 + $0x190] sm:$0xff] %vm409, 0.0
        %436 = vst.msk [vmem:[%s375 + $0x1a8] sm:$0xff] %vm409, 0.0
        %437 = vst.msk [vmem:[%s375 + $0x1b0] sm:$0xff] %vm409, 0.0
        %438 = vst.msk [vmem:[%s375 + $0x1c8] sm:$0xff] %vm409, 0.0
        %439 = vst.msk [vmem:[%s375 + $0x1d0] sm:$0xff] %vm409, 0.0
        %440 = vst.msk [vmem:[%s375 + $0x1e8] sm:$0xff] %vm409, 0.0
        %441 = vst.msk [vmem:[%s375 + $0x1f0] sm:$0xff] %vm409, 0.0
        %v442 = vld [vmem:[#allocation2] sm:$0xff]
        %v443 = vld [vmem:[#allocation2 + $0x8] sm:$0xff]
        %v444 = vld [vmem:[#allocation2 + $0x10] sm:$0xff]
        %v445 = vld [vmem:[#allocation2 + $0x18] sm:$0xff]
        %v446 = vld [vmem:[#allocation2 + $0x20] sm:$0xff]
        %v447 = vld [vmem:[#allocation2 + $0x28] sm:$0xff]
        %v448 = vld [vmem:[#allocation2 + $0x30] sm:$0xff]
        %v449 = vld [vmem:[#allocation2 + $0x38] sm:$0xff]
        %v450 = vld [vmem:[#allocation2 + $0x40] sm:$0xff]
        %v451 = vld [vmem:[#allocation2 + $0x48] sm:$0xff]
        %v452 = vld [vmem:[#allocation2 + $0x50] sm:$0xff]
        %v453 = vld [vmem:[#allocation2 + $0x58] sm:$0xff]
        %v454 = vld [vmem:[#allocation2 + $0x60] sm:$0xff]
        %v455 = vld [vmem:[#allocation2 + $0x68] sm:$0xff]
        %v456 = vld [vmem:[#allocation2 + $0x70] sm:$0xff]
        %v457 = vld [vmem:[#allocation2 + $0x78] sm:$0xff]
        %v458 = vld [vmem:[#allocation2 + $0x80] sm:$0xff]
        %v459 = vld [vmem:[#allocation2 + $0x88] sm:$0xff]
        %v460 = vld [vmem:[#allocation2 + $0x90] sm:$0xff]
        %v461 = vld [vmem:[#allocation2 + $0x98] sm:$0xff]
        %v462 = vld [vmem:[#allocation2 + $0xa0] sm:$0xff]
        %v463 = vld [vmem:[#allocation2 + $0xa8] sm:$0xff]
        %v464 = vld [vmem:[#allocation2 + $0xb0] sm:$0xff]
        %v465 = vld [vmem:[#allocation2 + $0xb8] sm:$0xff]
        %v466 = vld [vmem:[#allocation2 + $0xc0] sm:$0xff]
        %v467 = vld [vmem:[#allocation2 + $0xc8] sm:$0xff]
        %v468 = vld [vmem:[#allocation2 + $0xd0] sm:$0xff]
        %v469 = vld [vmem:[#allocation2 + $0xd8] sm:$0xff]
        %v470 = vld [vmem:[#allocation2 + $0xe0] sm:$0xff]
        %v471 = vld [vmem:[#allocation2 + $0xe8] sm:$0xff]
        %v472 = vld [vmem:[#allocation2 + $0xf0] sm:$0xff]
        %v473 = vld [vmem:[#allocation2 + $0xf8] sm:$0xff]
        %v474 = vld [vmem:[#allocation2 + $0x100] sm:$0xff]
        %v475 = vld [vmem:[#allocation2 + $0x108] sm:$0xff]
        %v476 = vld [vmem:[#allocation2 + $0x110] sm:$0xff]
        %v477 = vld [vmem:[#allocation2 + $0x118] sm:$0xff]
        %v478 = vld [vmem:[#allocation2 + $0x120] sm:$0xff]
        %v479 = vld [vmem:[#allocation2 + $0x128] sm:$0xff]
        %v480 = vld [vmem:[#allocation2 + $0x130] sm:$0xff]
        %v481 = vld [vmem:[#allocation2 + $0x138] sm:$0xff]
        %v482 = vld [vmem:[#allocation2 + $0x140] sm:$0xff]
        %v483 = vld [vmem:[#allocation2 + $0x148] sm:$0xff]
        %v484 = vld [vmem:[#allocation2 + $0x150] sm:$0xff]
        %v485 = vld [vmem:[#allocation2 + $0x158] sm:$0xff]
        %v486 = vld [vmem:[#allocation2 + $0x160] sm:$0xff]
        %v487 = vld [vmem:[#allocation2 + $0x168] sm:$0xff]
        %v488 = vld [vmem:[#allocation2 + $0x170] sm:$0xff]
        %v489 = vld [vmem:[#allocation2 + $0x178] sm:$0xff]
        %v490 = vld [vmem:[#allocation2 + $0x180] sm:$0xff]
        %v491 = vld [vmem:[#allocation2 + $0x188] sm:$0xff]
        %v492 = vld [vmem:[#allocation2 + $0x190] sm:$0xff]
        %v493 = vld [vmem:[#allocation2 + $0x198] sm:$0xff]
        %v494 = vld [vmem:[#allocation2 + $0x1a0] sm:$0xff]
        %v495 = vld [vmem:[#allocation2 + $0x1a8] sm:$0xff]
        %v496 = vld [vmem:[#allocation2 + $0x1b0] sm:$0xff]
        %v497 = vld [vmem:[#allocation2 + $0x1b8] sm:$0xff]
        %v498 = vld [vmem:[#allocation2 + $0x1c0] sm:$0xff]
        %v499 = vld [vmem:[#allocation2 + $0x1c8] sm:$0xff]
        %v500 = vld [vmem:[#allocation2 + $0x1d0] sm:$0xff]
        %v501 = vld [vmem:[#allocation2 + $0x1d8] sm:$0xff]
        %v502 = vld [vmem:[#allocation2 + $0x1e0] sm:$0xff]
        %v503 = vld [vmem:[#allocation2 + $0x1e8] sm:$0xff]
        %v504 = vld [vmem:[#allocation2 + $0x1f0] sm:$0xff]
        %v505 = vld [vmem:[#allocation2 + $0x1f8] sm:$0xff]
        %v506 = vld [vmem:[#allocation2 + $0x200] sm:$0xff]
        %v507 = vld [vmem:[#allocation2 + $0x208] sm:$0xff]
        %v508 = vld [vmem:[#allocation2 + $0x210] sm:$0xff]
        %v509 = vld [vmem:[#allocation2 + $0x218] sm:$0xff]
        %v510 = vld [vmem:[#allocation2 + $0x220] sm:$0xff]
        %v511 = vld [vmem:[#allocation2 + $0x228] sm:$0xff]
        %v512 = vld [vmem:[#allocation2 + $0x230] sm:$0xff]
        %v513 = vld [vmem:[#allocation2 + $0x238] sm:$0xff]
        %v514 = vld [vmem:[%s2] sm:$0x1]
        %vm539 = vcmask 1040384
        %v540 = vrot.slane %v442, 7
        %v541 = vrot.slane %v443, 7
        %v542 = vsel %vm539, %v540, %v541
        %v543 = vrot.slane %v444, 7
        %v544 = vsel %vm539, %v541, %v543
        %v545 = vrot.slane %v446, 7
        %v546 = vrot.slane %v447, 7
        %v547 = vsel %vm539, %v545, %v546
        %v548 = vrot.slane %v448, 7
        %v549 = vsel %vm539, %v546, %v548
        %v550 = vrot.slane %v450, 7
        %v551 = vrot.slane %v451, 7
        %v552 = vsel %vm539, %v550, %v551
        %v553 = vrot.slane %v452, 7
        %v554 = vsel %vm539, %v551, %v553
        %v555 = vrot.slane %v454, 7
        %v556 = vrot.slane %v455, 7
        %v557 = vsel %vm539, %v555, %v556
        %v558 = vrot.slane %v456, 7
        %v559 = vsel %vm539, %v556, %v558
        %v560 = vrot.slane %v458, 7
        %v561 = vrot.slane %v459, 7
        %v562 = vsel %vm539, %v560, %v561
        %v563 = vrot.slane %v460, 7
        %v564 = vsel %vm539, %v561, %v563
        %v565 = vrot.slane %v462, 7
        %v566 = vrot.slane %v463, 7
        %v567 = vsel %vm539, %v565, %v566
        %v568 = vrot.slane %v464, 7
        %v569 = vsel %vm539, %v566, %v568
        %v570 = vrot.slane %v466, 7
        %v571 = vrot.slane %v467, 7
        %v572 = vsel %vm539, %v570, %v571
        %v573 = vrot.slane %v468, 7
        %v574 = vsel %vm539, %v571, %v573
        %v575 = vrot.slane %v470, 7
        %v576 = vrot.slane %v471, 7
        %v577 = vsel %vm539, %v575, %v576
        %v578 = vrot.slane %v472, 7
        %v579 = vsel %vm539, %v576, %v578
        %v596 = vld [vmem:[#allocation4] sm:$0xff]
        %v597 = vld [vmem:[#allocation4 + $0x8] sm:$0xff]
        %v598 = vld [vmem:[#allocation4 + $0x10] sm:$0xff]
        %v599 = vld [vmem:[#allocation4 + $0x18] sm:$0xff]
        %v600 = vld [vmem:[#allocation4 + $0x20] sm:$0xff]
        %v601 = vld [vmem:[#allocation4 + $0x28] sm:$0xff]
        %v602 = vld [vmem:[#allocation4 + $0x30] sm:$0xff]
        %v603 = vld [vmem:[#allocation4 + $0x38] sm:$0xff]
        %v604 = vld [vmem:[#allocation4 + $0x40] sm:$0xff]
        %v605 = vld [vmem:[#allocation4 + $0x48] sm:$0xff]
        %v606 = vld [vmem:[#allocation4 + $0x50] sm:$0xff]
        %v607 = vld [vmem:[#allocation4 + $0x58] sm:$0xff]
        %v608 = vld [vmem:[#allocation4 + $0x60] sm:$0xff]
        %v609 = vld [vmem:[#allocation4 + $0x68] sm:$0xff]
        %v610 = vld [vmem:[#allocation4 + $0x70] sm:$0xff]
        %v611 = vld [vmem:[#allocation4 + $0x78] sm:$0xff]
        %s612 = scalar_lea.vmem [#allocation4], 128
        %v613 = vld [vmem:[%s612] sm:$0xff]
        %v614 = vld [vmem:[%s612 + $0x8] sm:$0xff]
        %v615 = vld [vmem:[%s612 + $0x10] sm:$0xff]
        %v616 = vld [vmem:[%s612 + $0x18] sm:$0xff]
        %v617 = vld [vmem:[%s612 + $0x20] sm:$0xff]
        %v618 = vld [vmem:[%s612 + $0x28] sm:$0xff]
        %v619 = vld [vmem:[%s612 + $0x30] sm:$0xff]
        %v620 = vld [vmem:[%s612 + $0x38] sm:$0xff]
        %v621 = vld [vmem:[%s612 + $0x40] sm:$0xff]
        %v622 = vld [vmem:[%s612 + $0x48] sm:$0xff]
        %v623 = vld [vmem:[%s612 + $0x50] sm:$0xff]
        %v624 = vld [vmem:[%s612 + $0x58] sm:$0xff]
        %v625 = vld [vmem:[%s612 + $0x60] sm:$0xff]
        %v626 = vld [vmem:[%s612 + $0x68] sm:$0xff]
        %v627 = vld [vmem:[%s612 + $0x70] sm:$0xff]
        %v628 = vld [vmem:[%s612 + $0x78] sm:$0xff]
        %629 = vmatpush.msra.mxu0 %v628
        %630 = vmatpush.msra.mxu0 %v627
        %631 = vmatpush.msra.mxu0 %v626
        %632 = vmatpush.msra.mxu0 %v625
        %633 = vmatpush.msra.mxu0 %v624
        %634 = vmatpush.msra.mxu0 %v623
        %635 = vmatpush.msra.mxu0 %v622
        %636 = vmatpush.msra.mxu0 %v621
        %637 = vmatpush.msra.mxu0 %v620
        %638 = vmatpush.msra.mxu0 %v619
        %639 = vmatpush.msra.mxu0 %v618
        %640 = vmatpush.msra.mxu0 %v617
        %641 = vmatpush.msra.mxu0 %v616
        %642 = vmatpush.msra.mxu0 %v615
        %643 = vmatpush.msra.mxu0 %v614
        %644 = vmatpush.msra.mxu0 %v613
        %645 = vmatmul.f32.gmra.mxu0 %v443
        %v646 = vpop.f32.mrf.mxu0
        %v647 = vadd.f32 0.0, %v646
        %648 = vmatmul.f32.gmra.mxu0 %v444
        %v649 = vpop.f32.mrf.mxu0
        %v650 = vadd.f32 0.0, %v649
        %651 = vmatmul.f32.gmra.mxu0 %v447
        %v652 = vpop.f32.mrf.mxu0
        %v653 = vadd.f32 0.0, %v652
        %654 = vmatmul.f32.gmra.mxu0 %v448
        %v655 = vpop.f32.mrf.mxu0
        %v656 = vadd.f32 0.0, %v655
        %657 = vmatmul.f32.gmra.mxu0 %v451
        %v658 = vpop.f32.mrf.mxu0
        %v659 = vadd.f32 0.0, %v658
        %660 = vmatmul.f32.gmra.mxu0 %v452
        %v661 = vpop.f32.mrf.mxu0
        %v662 = vadd.f32 0.0, %v661
        %663 = vmatmul.f32.gmra.mxu0 %v455
        %v664 = vpop.f32.mrf.mxu0
        %v665 = vadd.f32 0.0, %v664
        %666 = vmatmul.f32.gmra.mxu0 %v456
        %v667 = vpop.f32.mrf.mxu0
        %v668 = vadd.f32 0.0, %v667
        %669 = vmatmul.f32.gmra.mxu0 %v459
        %v670 = vpop.f32.mrf.mxu0
        %v671 = vadd.f32 0.0, %v670
        %672 = vmatmul.f32.gmra.mxu0 %v460
        %v673 = vpop.f32.mrf.mxu0
        %v674 = vadd.f32 0.0, %v673
        %675 = vmatmul.f32.gmra.mxu0 %v463
        %v676 = vpop.f32.mrf.mxu0
        %v677 = vadd.f32 0.0, %v676
        %678 = vmatmul.f32.gmra.mxu0 %v464
        %v679 = vpop.f32.mrf.mxu0
        %v680 = vadd.f32 0.0, %v679
        %681 = vmatmul.f32.gmra.mxu0 %v467
        %v682 = vpop.f32.mrf.mxu0
        %v683 = vadd.f32 0.0, %v682
        %684 = vmatmul.f32.gmra.mxu0 %v468
        %v685 = vpop.f32.mrf.mxu0
        %v686 = vadd.f32 0.0, %v685
        %687 = vmatmul.f32.gmra.mxu0 %v471
        %v688 = vpop.f32.mrf.mxu0
        %v689 = vadd.f32 0.0, %v688
        %690 = vmatmul.f32.gmra.mxu0 %v472
        %v691 = vpop.f32.mrf.mxu0
        %v692 = vadd.f32 0.0, %v691
        %693 = vdwg.mxu0
        %694 = vmatpush.msra.mxu0 %v611
        %695 = vmatpush.msra.mxu0 %v610
        %696 = vmatpush.msra.mxu0 %v609
        %697 = vmatpush.msra.mxu0 %v608
        %698 = vmatpush.msra.mxu0 %v607
        %699 = vmatpush.msra.mxu0 %v606
        %700 = vmatpush.msra.mxu0 %v605
        %701 = vmatpush.msra.mxu0 %v604
        %702 = vmatpush.msra.mxu0 %v603
        %703 = vmatpush.msra.mxu0 %v602
        %704 = vmatpush.msra.mxu0 %v601
        %705 = vmatpush.msra.mxu0 %v600
        %706 = vmatpush.msra.mxu0 %v599
        %707 = vmatpush.msra.mxu0 %v598
        %708 = vmatpush.msra.mxu0 %v597
        %709 = vmatpush.msra.mxu0 %v596
        %710 = vmatmul.f32.gmra.mxu0 %v542
        %v711 = vpop.f32.mrf.mxu0
        %v712 = vadd.f32 %v647, %v711
        %713 = vmatmul.f32.gmra.mxu0 %v544
        %v714 = vpop.f32.mrf.mxu0
        %v715 = vadd.f32 %v650, %v714
        %716 = vmatmul.f32.gmra.mxu0 %v547
        %v717 = vpop.f32.mrf.mxu0
        %v718 = vadd.f32 %v653, %v717
        %719 = vmatmul.f32.gmra.mxu0 %v549
        %v720 = vpop.f32.mrf.mxu0
        %v721 = vadd.f32 %v656, %v720
        %722 = vmatmul.f32.gmra.mxu0 %v552
        %v723 = vpop.f32.mrf.mxu0
        %v724 = vadd.f32 %v659, %v723
        %725 = vmatmul.f32.gmra.mxu0 %v554
        %v726 = vpop.f32.mrf.mxu0
        %v727 = vadd.f32 %v662, %v726
        %728 = vmatmul.f32.gmra.mxu0 %v557
        %v729 = vpop.f32.mrf.mxu0
        %v730 = vadd.f32 %v665, %v729
        %731 = vmatmul.f32.gmra.mxu0 %v559
        %v732 = vpop.f32.mrf.mxu0
        %v733 = vadd.f32 %v668, %v732
        %734 = vmatmul.f32.gmra.mxu0 %v562
        %v735 = vpop.f32.mrf.mxu0
        %v736 = vadd.f32 %v671, %v735
        %737 = vmatmul.f32.gmra.mxu0 %v564
        %v738 = vpop.f32.mrf.mxu0
        %v739 = vadd.f32 %v674, %v738
        %740 = vmatmul.f32.gmra.mxu0 %v567
        %v741 = vpop.f32.mrf.mxu0
        %v742 = vadd.f32 %v677, %v741
        %743 = vmatmul.f32.gmra.mxu0 %v569
        %v744 = vpop.f32.mrf.mxu0
        %v745 = vadd.f32 %v680, %v744
        %746 = vmatmul.f32.gmra.mxu0 %v572
        %v747 = vpop.f32.mrf.mxu0
        %v748 = vadd.f32 %v683, %v747
        %749 = vmatmul.f32.gmra.mxu0 %v574
        %v750 = vpop.f32.mrf.mxu0
        %v751 = vadd.f32 %v686, %v750
        %752 = vmatmul.f32.gmra.mxu0 %v577
        %v753 = vpop.f32.mrf.mxu0
        %v754 = vadd.f32 %v689, %v753
        %755 = vmatmul.f32.gmra.mxu0 %v579
        %v756 = vpop.f32.mrf.mxu0
        %v757 = vadd.f32 %v692, %v756
        %758 = vdwg.mxu0
        %vm767 = vcmask 1046528
        %v768 = vrot.slane %v443, 1
        %v769 = vrot.slane %v444, 1
        %v770 = vsel %vm767, %v768, %v769
        %v771 = vrot.slane %v445, 1
        %v772 = vsel %vm767, %v769, %v771
        %v773 = vrot.slane %v447, 1
        %v774 = vrot.slane %v448, 1
        %v775 = vsel %vm767, %v773, %v774
        %v776 = vrot.slane %v449, 1
        %v777 = vsel %vm767, %v774, %v776
        %v778 = vrot.slane %v451, 1
        %v779 = vrot.slane %v452, 1
        %v780 = vsel %vm767, %v778, %v779
        %v781 = vrot.slane %v453, 1
        %v782 = vsel %vm767, %v779, %v781
        %v783 = vrot.slane %v455, 1
        %v784 = vrot.slane %v456, 1
        %v785 = vsel %vm767, %v783, %v784
        %v786 = vrot.slane %v457, 1
        %v787 = vsel %vm767, %v784, %v786
        %v788 = vrot.slane %v459, 1
        %v789 = vrot.slane %v460, 1
        %v790 = vsel %vm767, %v788, %v789
        %v791 = vrot.slane %v461, 1
        %v792 = vsel %vm767, %v789, %v791
        %v793 = vrot.slane %v463, 1
        %v794 = vrot.slane %v464, 1
        %v795 = vsel %vm767, %v793, %v794
        %v796 = vrot.slane %v465, 1
        %v797 = vsel %vm767, %v794, %v796
        %v798 = vrot.slane %v467, 1
        %v799 = vrot.slane %v468, 1
        %v800 = vsel %vm767, %v798, %v799
        %v801 = vrot.slane %v469, 1
        %v802 = vsel %vm767, %v799, %v801
        %v803 = vrot.slane %v471, 1
        %v804 = vrot.slane %v472, 1
        %v805 = vsel %vm767, %v803, %v804
        %v806 = vrot.slane %v473, 1
        %v807 = vsel %vm767, %v804, %v806
        %s824 = scalar_lea.vmem [#allocation4], 256
        %v825 = vld [vmem:[%s824] sm:$0xff]
        %v826 = vld [vmem:[%s824 + $0x8] sm:$0xff]
        %v827 = vld [vmem:[%s824 + $0x10] sm:$0xff]
        %v828 = vld [vmem:[%s824 + $0x18] sm:$0xff]
        %v829 = vld [vmem:[%s824 + $0x20] sm:$0xff]
        %v830 = vld [vmem:[%s824 + $0x28] sm:$0xff]
        %v831 = vld [vmem:[%s824 + $0x30] sm:$0xff]
        %v832 = vld [vmem:[%s824 + $0x38] sm:$0xff]
        %v833 = vld [vmem:[%s824 + $0x40] sm:$0xff]
        %v834 = vld [vmem:[%s824 + $0x48] sm:$0xff]
        %v835 = vld [vmem:[%s824 + $0x50] sm:$0xff]
        %v836 = vld [vmem:[%s824 + $0x58] sm:$0xff]
        %v837 = vld [vmem:[%s824 + $0x60] sm:$0xff]
        %v838 = vld [vmem:[%s824 + $0x68] sm:$0xff]
        %v839 = vld [vmem:[%s824 + $0x70] sm:$0xff]
        %v840 = vld [vmem:[%s824 + $0x78] sm:$0xff]
        %841 = vmatpush.msra.mxu0 %v840
        %842 = vmatpush.msra.mxu0 %v839
        %843 = vmatpush.msra.mxu0 %v838
        %844 = vmatpush.msra.mxu0 %v837
        %845 = vmatpush.msra.mxu0 %v836
        %846 = vmatpush.msra.mxu0 %v835
        %847 = vmatpush.msra.mxu0 %v834
        %848 = vmatpush.msra.mxu0 %v833
        %849 = vmatpush.msra.mxu0 %v832
        %850 = vmatpush.msra.mxu0 %v831
        %851 = vmatpush.msra.mxu0 %v830
        %852 = vmatpush.msra.mxu0 %v829
        %853 = vmatpush.msra.mxu0 %v828
        %854 = vmatpush.msra.mxu0 %v827
        %855 = vmatpush.msra.mxu0 %v826
        %856 = vmatpush.msra.mxu0 %v825
        %857 = vmatmul.f32.gmra.mxu0 %v770
        %v858 = vpop.f32.mrf.mxu0
        %v859 = vadd.f32 0.0, %v858
        %860 = vmatmul.f32.gmra.mxu0 %v772
        %v861 = vpop.f32.mrf.mxu0
        %v862 = vadd.f32 0.0, %v861
        %863 = vmatmul.f32.gmra.mxu0 %v775
        %v864 = vpop.f32.mrf.mxu0
        %v865 = vadd.f32 0.0, %v864
        %866 = vmatmul.f32.gmra.mxu0 %v777
        %v867 = vpop.f32.mrf.mxu0
        %v868 = vadd.f32 0.0, %v867
        %869 = vmatmul.f32.gmra.mxu0 %v780
        %v870 = vpop.f32.mrf.mxu0
        %v871 = vadd.f32 0.0, %v870
        %872 = vmatmul.f32.gmra.mxu0 %v782
        %v873 = vpop.f32.mrf.mxu0
        %v874 = vadd.f32 0.0, %v873
        %875 = vmatmul.f32.gmra.mxu0 %v785
        %v876 = vpop.f32.mrf.mxu0
        %v877 = vadd.f32 0.0, %v876
        %878 = vmatmul.f32.gmra.mxu0 %v787
        %v879 = vpop.f32.mrf.mxu0
        %v880 = vadd.f32 0.0, %v879
        %881 = vmatmul.f32.gmra.mxu0 %v790
        %v882 = vpop.f32.mrf.mxu0
        %v883 = vadd.f32 0.0, %v882
        %884 = vmatmul.f32.gmra.mxu0 %v792
        %v885 = vpop.f32.mrf.mxu0
        %v886 = vadd.f32 0.0, %v885
        %887 = vmatmul.f32.gmra.mxu0 %v795
        %v888 = vpop.f32.mrf.mxu0
        %v889 = vadd.f32 0.0, %v888
        %890 = vmatmul.f32.gmra.mxu0 %v797
        %v891 = vpop.f32.mrf.mxu0
        %v892 = vadd.f32 0.0, %v891
        %893 = vmatmul.f32.gmra.mxu0 %v800
        %v894 = vpop.f32.mrf.mxu0
        %v895 = vadd.f32 0.0, %v894
        %896 = vmatmul.f32.gmra.mxu0 %v802
        %v897 = vpop.f32.mrf.mxu0
        %v898 = vadd.f32 0.0, %v897
        %899 = vmatmul.f32.gmra.mxu0 %v805
        %v900 = vpop.f32.mrf.mxu0
        %v901 = vadd.f32 0.0, %v900
        %902 = vmatmul.f32.gmra.mxu0 %v807
        %v903 = vpop.f32.mrf.mxu0
        %v904 = vadd.f32 0.0, %v903
        %905 = vdwg.mxu0
        %v906 = vadd.f32 %v712, %v859
        %v907 = vadd.f32 %v715, %v862
        %v908 = vadd.f32 %v718, %v865
        %v909 = vadd.f32 %v721, %v868
        %v910 = vadd.f32 %v724, %v871
        %v911 = vadd.f32 %v727, %v874
        %v912 = vadd.f32 %v730, %v877
        %v913 = vadd.f32 %v733, %v880
        %v914 = vadd.f32 %v736, %v883
        %v915 = vadd.f32 %v739, %v886
        %v916 = vadd.f32 %v742, %v889
        %v917 = vadd.f32 %v745, %v892
        %v918 = vadd.f32 %v748, %v895
        %v919 = vadd.f32 %v751, %v898
        %v920 = vadd.f32 %v754, %v901
        %v921 = vadd.f32 %v757, %v904
        %v925 = vrot.slane %v474, 7
        %v926 = vrot.slane %v475, 7
        %v927 = vsel %vm539, %v925, %v926
        %v928 = vrot.slane %v476, 7
        %v929 = vsel %vm539, %v926, %v928
        %s932 = scalar_lea.vmem [#allocation4], 384
        %v933 = vld [vmem:[%s932] sm:$0xff]
        %v934 = vld [vmem:[%s932 + $0x8] sm:$0xff]
        %v935 = vld [vmem:[%s932 + $0x10] sm:$0xff]
        %v936 = vld [vmem:[%s932 + $0x18] sm:$0xff]
        %v937 = vld [vmem:[%s932 + $0x20] sm:$0xff]
        %v938 = vld [vmem:[%s932 + $0x28] sm:$0xff]
        %v939 = vld [vmem:[%s932 + $0x30] sm:$0xff]
        %v940 = vld [vmem:[%s932 + $0x38] sm:$0xff]
        %v941 = vld [vmem:[%s932 + $0x40] sm:$0xff]
        %v942 = vld [vmem:[%s932 + $0x48] sm:$0xff]
        %v943 = vld [vmem:[%s932 + $0x50] sm:$0xff]
        %v944 = vld [vmem:[%s932 + $0x58] sm:$0xff]
        %v945 = vld [vmem:[%s932 + $0x60] sm:$0xff]
        %v946 = vld [vmem:[%s932 + $0x68] sm:$0xff]
        %v947 = vld [vmem:[%s932 + $0x70] sm:$0xff]
        %v948 = vld [vmem:[%s932 + $0x78] sm:$0xff]
        %949 = vmatpush.msra.mxu0 %v948
        %950 = vmatpush.msra.mxu0 %v947
        %951 = vmatpush.msra.mxu0 %v946
        %952 = vmatpush.msra.mxu0 %v945
        %953 = vmatpush.msra.mxu0 %v944
        %954 = vmatpush.msra.mxu0 %v943
        %955 = vmatpush.msra.mxu0 %v942
        %956 = vmatpush.msra.mxu0 %v941
        %957 = vmatpush.msra.mxu0 %v940
        %958 = vmatpush.msra.mxu0 %v939
        %959 = vmatpush.msra.mxu0 %v938
        %960 = vmatpush.msra.mxu0 %v937
        %961 = vmatpush.msra.mxu0 %v936
        %962 = vmatpush.msra.mxu0 %v935
        %963 = vmatpush.msra.mxu0 %v934
        %964 = vmatpush.msra.mxu0 %v933
        %965 = vmatmul.f32.gmra.mxu0 %v547
        %v966 = vpop.f32.mrf.mxu0
        %v967 = vadd.f32 0.0, %v966
        %968 = vmatmul.f32.gmra.mxu0 %v549
        %v969 = vpop.f32.mrf.mxu0
        %v970 = vadd.f32 0.0, %v969
        %971 = vmatmul.f32.gmra.mxu0 %v552
        %v972 = vpop.f32.mrf.mxu0
        %v973 = vadd.f32 0.0, %v972
        %974 = vmatmul.f32.gmra.mxu0 %v554
        %v975 = vpop.f32.mrf.mxu0
        %v976 = vadd.f32 0.0, %v975
        %977 = vmatmul.f32.gmra.mxu0 %v557
        %v978 = vpop.f32.mrf.mxu0
        %v979 = vadd.f32 0.0, %v978
        %980 = vmatmul.f32.gmra.mxu0 %v559
        %v981 = vpop.f32.mrf.mxu0
        %v982 = vadd.f32 0.0, %v981
        %983 = vmatmul.f32.gmra.mxu0 %v562
        %v984 = vpop.f32.mrf.mxu0
        %v985 = vadd.f32 0.0, %v984
        %986 = vmatmul.f32.gmra.mxu0 %v564
        %v987 = vpop.f32.mrf.mxu0
        %v988 = vadd.f32 0.0, %v987
        %989 = vmatmul.f32.gmra.mxu0 %v567
        %v990 = vpop.f32.mrf.mxu0
        %v991 = vadd.f32 0.0, %v990
        %992 = vmatmul.f32.gmra.mxu0 %v569
        %v993 = vpop.f32.mrf.mxu0
        %v994 = vadd.f32 0.0, %v993
        %995 = vmatmul.f32.gmra.mxu0 %v572
        %v996 = vpop.f32.mrf.mxu0
        %v997 = vadd.f32 0.0, %v996
        %998 = vmatmul.f32.gmra.mxu0 %v574
        %v999 = vpop.f32.mrf.mxu0
        %v1000 = vadd.f32 0.0, %v999
        %1001 = vmatmul.f32.gmra.mxu0 %v577
        %v1002 = vpop.f32.mrf.mxu0
        %v1003 = vadd.f32 0.0, %v1002
        %1004 = vmatmul.f32.gmra.mxu0 %v579
        %v1005 = vpop.f32.mrf.mxu0
        %v1006 = vadd.f32 0.0, %v1005
        %1007 = vmatmul.f32.gmra.mxu0 %v927
        %v1008 = vpop.f32.mrf.mxu0
        %v1009 = vadd.f32 0.0, %v1008
        %1010 = vmatmul.f32.gmra.mxu0 %v929
        %v1011 = vpop.f32.mrf.mxu0
        %v1012 = vadd.f32 0.0, %v1011
        %1013 = vdwg.mxu0
        %v1014 = vadd.f32 %v906, %v967
        %v1015 = vadd.f32 %v907, %v970
        %v1016 = vadd.f32 %v908, %v973
        %v1017 = vadd.f32 %v909, %v976
        %v1018 = vadd.f32 %v910, %v979
        %v1019 = vadd.f32 %v911, %v982
        %v1020 = vadd.f32 %v912, %v985
        %v1021 = vadd.f32 %v913, %v988
        %v1022 = vadd.f32 %v914, %v991
        %v1023 = vadd.f32 %v915, %v994
        %v1024 = vadd.f32 %v916, %v997
        %v1025 = vadd.f32 %v917, %v1000
        %v1026 = vadd.f32 %v918, %v1003
        %v1027 = vadd.f32 %v919, %v1006
        %v1028 = vadd.f32 %v920, %v1009
        %v1029 = vadd.f32 %v921, %v1012
        %s1030 = scalar_lea.vmem [#allocation4], 512
        %v1031 = vld [vmem:[%s1030] sm:$0xff]
        %v1032 = vld [vmem:[%s1030 + $0x8] sm:$0xff]
        %v1033 = vld [vmem:[%s1030 + $0x10] sm:$0xff]
        %v1034 = vld [vmem:[%s1030 + $0x18] sm:$0xff]
        %v1035 = vld [vmem:[%s1030 + $0x20] sm:$0xff]
        %v1036 = vld [vmem:[%s1030 + $0x28] sm:$0xff]
        %v1037 = vld [vmem:[%s1030 + $0x30] sm:$0xff]
        %v1038 = vld [vmem:[%s1030 + $0x38] sm:$0xff]
        %v1039 = vld [vmem:[%s1030 + $0x40] sm:$0xff]
        %v1040 = vld [vmem:[%s1030 + $0x48] sm:$0xff]
        %v1041 = vld [vmem:[%s1030 + $0x50] sm:$0xff]
        %v1042 = vld [vmem:[%s1030 + $0x58] sm:$0xff]
        %v1043 = vld [vmem:[%s1030 + $0x60] sm:$0xff]
        %v1044 = vld [vmem:[%s1030 + $0x68] sm:$0xff]
        %v1045 = vld [vmem:[%s1030 + $0x70] sm:$0xff]
        %v1046 = vld [vmem:[%s1030 + $0x78] sm:$0xff]
        %1047 = vmatpush.msra.mxu0 %v1046
        %1048 = vmatpush.msra.mxu0 %v1045
        %1049 = vmatpush.msra.mxu0 %v1044
        %1050 = vmatpush.msra.mxu0 %v1043
        %1051 = vmatpush.msra.mxu0 %v1042
        %1052 = vmatpush.msra.mxu0 %v1041
        %1053 = vmatpush.msra.mxu0 %v1040
        %1054 = vmatpush.msra.mxu0 %v1039
        %1055 = vmatpush.msra.mxu0 %v1038
        %1056 = vmatpush.msra.mxu0 %v1037
        %1057 = vmatpush.msra.mxu0 %v1036
        %1058 = vmatpush.msra.mxu0 %v1035
        %1059 = vmatpush.msra.mxu0 %v1034
        %1060 = vmatpush.msra.mxu0 %v1033
        %1061 = vmatpush.msra.mxu0 %v1032
        %1062 = vmatpush.msra.mxu0 %v1031
        %1063 = vmatmul.f32.gmra.mxu0 %v447
        %v1064 = vpop.f32.mrf.mxu0
        %v1065 = vadd.f32 0.0, %v1064
        %1066 = vmatmul.f32.gmra.mxu0 %v448
        %v1067 = vpop.f32.mrf.mxu0
        %v1068 = vadd.f32 0.0, %v1067
        %1069 = vmatmul.f32.gmra.mxu0 %v451
        %v1070 = vpop.f32.mrf.mxu0
        %v1071 = vadd.f32 0.0, %v1070
        %1072 = vmatmul.f32.gmra.mxu0 %v452
        %v1073 = vpop.f32.mrf.mxu0
        %v1074 = vadd.f32 0.0, %v1073
        %1075 = vmatmul.f32.gmra.mxu0 %v455
        %v1076 = vpop.f32.mrf.mxu0
        %v1077 = vadd.f32 0.0, %v1076
        %1078 = vmatmul.f32.gmra.mxu0 %v456
        %v1079 = vpop.f32.mrf.mxu0
        %v1080 = vadd.f32 0.0, %v1079
        %1081 = vmatmul.f32.gmra.mxu0 %v459
        %v1082 = vpop.f32.mrf.mxu0
        %v1083 = vadd.f32 0.0, %v1082
        %1084 = vmatmul.f32.gmra.mxu0 %v460
        %v1085 = vpop.f32.mrf.mxu0
        %v1086 = vadd.f32 0.0, %v1085
        %1087 = vmatmul.f32.gmra.mxu0 %v463
        %v1088 = vpop.f32.mrf.mxu0
        %v1089 = vadd.f32 0.0, %v1088
        %1090 = vmatmul.f32.gmra.mxu0 %v464
        %v1091 = vpop.f32.mrf.mxu0
        %v1092 = vadd.f32 0.0, %v1091
        %1093 = vmatmul.f32.gmra.mxu0 %v467
        %v1094 = vpop.f32.mrf.mxu0
        %v1095 = vadd.f32 0.0, %v1094
        %1096 = vmatmul.f32.gmra.mxu0 %v468
        %v1097 = vpop.f32.mrf.mxu0
        %v1098 = vadd.f32 0.0, %v1097
        %1099 = vmatmul.f32.gmra.mxu0 %v471
        %v1100 = vpop.f32.mrf.mxu0
        %v1101 = vadd.f32 0.0, %v1100
        %1102 = vmatmul.f32.gmra.mxu0 %v472
        %v1103 = vpop.f32.mrf.mxu0
        %v1104 = vadd.f32 0.0, %v1103
        %1105 = vmatmul.f32.gmra.mxu0 %v475
        %v1106 = vpop.f32.mrf.mxu0
        %v1107 = vadd.f32 0.0, %v1106
        %1108 = vmatmul.f32.gmra.mxu0 %v476
        %v1109 = vpop.f32.mrf.mxu0
        %v1110 = vadd.f32 0.0, %v1109
        %1111 = vdwg.mxu0
        %v1112 = vadd.f32 %v1014, %v1065
        %v1113 = vadd.f32 %v1015, %v1068
        %v1114 = vadd.f32 %v1016, %v1071
        %v1115 = vadd.f32 %v1017, %v1074
        %v1116 = vadd.f32 %v1018, %v1077
        %v1117 = vadd.f32 %v1019, %v1080
        %v1118 = vadd.f32 %v1020, %v1083
        %v1119 = vadd.f32 %v1021, %v1086
        %v1120 = vadd.f32 %v1022, %v1089
        %v1121 = vadd.f32 %v1023, %v1092
        %v1122 = vadd.f32 %v1024, %v1095
        %v1123 = vadd.f32 %v1025, %v1098
        %v1124 = vadd.f32 %v1026, %v1101
        %v1125 = vadd.f32 %v1027, %v1104
        %v1126 = vadd.f32 %v1028, %v1107
        %v1127 = vadd.f32 %v1029, %v1110
        %v1129 = vrot.slane %v475, 1
        %v1130 = vrot.slane %v476, 1
        %v1131 = vsel %vm767, %v1129, %v1130
        %v1132 = vrot.slane %v477, 1
        %v1133 = vsel %vm767, %v1130, %v1132
        %s1136 = scalar_lea.vmem [#allocation4], 640
        %v1137 = vld [vmem:[%s1136] sm:$0xff]
        %v1138 = vld [vmem:[%s1136 + $0x8] sm:$0xff]
        %v1139 = vld [vmem:[%s1136 + $0x10] sm:$0xff]
        %v1140 = vld [vmem:[%s1136 + $0x18] sm:$0xff]
        %v1141 = vld [vmem:[%s1136 + $0x20] sm:$0xff]
        %v1142 = vld [vmem:[%s1136 + $0x28] sm:$0xff]
        %v1143 = vld [vmem:[%s1136 + $0x30] sm:$0xff]
        %v1144 = vld [vmem:[%s1136 + $0x38] sm:$0xff]
        %v1145 = vld [vmem:[%s1136 + $0x40] sm:$0xff]
        %v1146 = vld [vmem:[%s1136 + $0x48] sm:$0xff]
        %v1147 = vld [vmem:[%s1136 + $0x50] sm:$0xff]
        %v1148 = vld [vmem:[%s1136 + $0x58] sm:$0xff]
        %v1149 = vld [vmem:[%s1136 + $0x60] sm:$0xff]
        %v1150 = vld [vmem:[%s1136 + $0x68] sm:$0xff]
        %v1151 = vld [vmem:[%s1136 + $0x70] sm:$0xff]
        %v1152 = vld [vmem:[%s1136 + $0x78] sm:$0xff]
        %1153 = vmatpush.msra.mxu0 %v1152
        %1154 = vmatpush.msra.mxu0 %v1151
        %1155 = vmatpush.msra.mxu0 %v1150
        %1156 = vmatpush.msra.mxu0 %v1149
        %1157 = vmatpush.msra.mxu0 %v1148
        %1158 = vmatpush.msra.mxu0 %v1147
        %1159 = vmatpush.msra.mxu0 %v1146
        %1160 = vmatpush.msra.mxu0 %v1145
        %1161 = vmatpush.msra.mxu0 %v1144
        %1162 = vmatpush.msra.mxu0 %v1143
        %1163 = vmatpush.msra.mxu0 %v1142
        %1164 = vmatpush.msra.mxu0 %v1141
        %1165 = vmatpush.msra.mxu0 %v1140
        %1166 = vmatpush.msra.mxu0 %v1139
        %1167 = vmatpush.msra.mxu0 %v1138
        %1168 = vmatpush.msra.mxu0 %v1137
        %1169 = vmatmul.f32.gmra.mxu0 %v775
        %v1170 = vpop.f32.mrf.mxu0
        %v1171 = vadd.f32 0.0, %v1170
        %1172 = vmatmul.f32.gmra.mxu0 %v777
        %v1173 = vpop.f32.mrf.mxu0
        %v1174 = vadd.f32 0.0, %v1173
        %1175 = vmatmul.f32.gmra.mxu0 %v780
        %v1176 = vpop.f32.mrf.mxu0
        %v1177 = vadd.f32 0.0, %v1176
        %1178 = vmatmul.f32.gmra.mxu0 %v782
        %v1179 = vpop.f32.mrf.mxu0
        %v1180 = vadd.f32 0.0, %v1179
        %1181 = vmatmul.f32.gmra.mxu0 %v785
        %v1182 = vpop.f32.mrf.mxu0
        %v1183 = vadd.f32 0.0, %v1182
        %1184 = vmatmul.f32.gmra.mxu0 %v787
        %v1185 = vpop.f32.mrf.mxu0
        %v1186 = vadd.f32 0.0, %v1185
        %1187 = vmatmul.f32.gmra.mxu0 %v790
        %v1188 = vpop.f32.mrf.mxu0
        %v1189 = vadd.f32 0.0, %v1188
        %1190 = vmatmul.f32.gmra.mxu0 %v792
        %v1191 = vpop.f32.mrf.mxu0
        %v1192 = vadd.f32 0.0, %v1191
        %1193 = vmatmul.f32.gmra.mxu0 %v795
        %v1194 = vpop.f32.mrf.mxu0
        %v1195 = vadd.f32 0.0, %v1194
        %1196 = vmatmul.f32.gmra.mxu0 %v797
        %v1197 = vpop.f32.mrf.mxu0
        %v1198 = vadd.f32 0.0, %v1197
        %1199 = vmatmul.f32.gmra.mxu0 %v800
        %v1200 = vpop.f32.mrf.mxu0
        %v1201 = vadd.f32 0.0, %v1200
        %1202 = vmatmul.f32.gmra.mxu0 %v802
        %v1203 = vpop.f32.mrf.mxu0
        %v1204 = vadd.f32 0.0, %v1203
        %1205 = vmatmul.f32.gmra.mxu0 %v805
        %v1206 = vpop.f32.mrf.mxu0
        %v1207 = vadd.f32 0.0, %v1206
        %1208 = vmatmul.f32.gmra.mxu0 %v807
        %v1209 = vpop.f32.mrf.mxu0
        %v1210 = vadd.f32 0.0, %v1209
        %1211 = vmatmul.f32.gmra.mxu0 %v1131
        %v1212 = vpop.f32.mrf.mxu0
        %v1213 = vadd.f32 0.0, %v1212
        %1214 = vmatmul.f32.gmra.mxu0 %v1133
        %v1215 = vpop.f32.mrf.mxu0
        %v1216 = vadd.f32 0.0, %v1215
        %1217 = vdwg.mxu0
        %v1218 = vadd.f32 %v1112, %v1171
        %v1219 = vadd.f32 %v1113, %v1174
        %v1220 = vadd.f32 %v1114, %v1177
        %v1221 = vadd.f32 %v1115, %v1180
        %v1222 = vadd.f32 %v1116, %v1183
        %v1223 = vadd.f32 %v1117, %v1186
        %v1224 = vadd.f32 %v1118, %v1189
        %v1225 = vadd.f32 %v1119, %v1192
        %v1226 = vadd.f32 %v1120, %v1195
        %v1227 = vadd.f32 %v1121, %v1198
        %v1228 = vadd.f32 %v1122, %v1201
        %v1229 = vadd.f32 %v1123, %v1204
        %v1230 = vadd.f32 %v1124, %v1207
        %v1231 = vadd.f32 %v1125, %v1210
        %v1232 = vadd.f32 %v1126, %v1213
        %v1233 = vadd.f32 %v1127, %v1216
        %v1237 = vrot.slane %v478, 7
        %v1238 = vrot.slane %v479, 7
        %v1239 = vsel %vm539, %v1237, %v1238
        %v1240 = vrot.slane %v480, 7
        %v1241 = vsel %vm539, %v1238, %v1240
        %s1244 = scalar_lea.vmem [#allocation4], 768
        %v1245 = vld [vmem:[%s1244] sm:$0xff]
        %v1246 = vld [vmem:[%s1244 + $0x8] sm:$0xff]
        %v1247 = vld [vmem:[%s1244 + $0x10] sm:$0xff]
        %v1248 = vld [vmem:[%s1244 + $0x18] sm:$0xff]
        %v1249 = vld [vmem:[%s1244 + $0x20] sm:$0xff]
        %v1250 = vld [vmem:[%s1244 + $0x28] sm:$0xff]
        %v1251 = vld [vmem:[%s1244 + $0x30] sm:$0xff]
        %v1252 = vld [vmem:[%s1244 + $0x38] sm:$0xff]
        %v1253 = vld [vmem:[%s1244 + $0x40] sm:$0xff]
        %v1254 = vld [vmem:[%s1244 + $0x48] sm:$0xff]
        %v1255 = vld [vmem:[%s1244 + $0x50] sm:$0xff]
        %v1256 = vld [vmem:[%s1244 + $0x58] sm:$0xff]
        %v1257 = vld [vmem:[%s1244 + $0x60] sm:$0xff]
        %v1258 = vld [vmem:[%s1244 + $0x68] sm:$0xff]
        %v1259 = vld [vmem:[%s1244 + $0x70] sm:$0xff]
        %v1260 = vld [vmem:[%s1244 + $0x78] sm:$0xff]
        %1261 = vmatpush.msra.mxu0 %v1260
        %1262 = vmatpush.msra.mxu0 %v1259
        %1263 = vmatpush.msra.mxu0 %v1258
        %1264 = vmatpush.msra.mxu0 %v1257
        %1265 = vmatpush.msra.mxu0 %v1256
        %1266 = vmatpush.msra.mxu0 %v1255
        %1267 = vmatpush.msra.mxu0 %v1254
        %1268 = vmatpush.msra.mxu0 %v1253
        %1269 = vmatpush.msra.mxu0 %v1252
        %1270 = vmatpush.msra.mxu0 %v1251
        %1271 = vmatpush.msra.mxu0 %v1250
        %1272 = vmatpush.msra.mxu0 %v1249
        %1273 = vmatpush.msra.mxu0 %v1248
        %1274 = vmatpush.msra.mxu0 %v1247
        %1275 = vmatpush.msra.mxu0 %v1246
        %1276 = vmatpush.msra.mxu0 %v1245
        %1277 = vmatmul.f32.gmra.mxu0 %v552
        %v1278 = vpop.f32.mrf.mxu0
        %v1279 = vadd.f32 0.0, %v1278
        %1280 = vmatmul.f32.gmra.mxu0 %v554
        %v1281 = vpop.f32.mrf.mxu0
        %v1282 = vadd.f32 0.0, %v1281
        %1283 = vmatmul.f32.gmra.mxu0 %v557
        %v1284 = vpop.f32.mrf.mxu0
        %v1285 = vadd.f32 0.0, %v1284
        %1286 = vmatmul.f32.gmra.mxu0 %v559
        %v1287 = vpop.f32.mrf.mxu0
        %v1288 = vadd.f32 0.0, %v1287
        %1289 = vmatmul.f32.gmra.mxu0 %v562
        %v1290 = vpop.f32.mrf.mxu0
        %v1291 = vadd.f32 0.0, %v1290
        %1292 = vmatmul.f32.gmra.mxu0 %v564
        %v1293 = vpop.f32.mrf.mxu0
        %v1294 = vadd.f32 0.0, %v1293
        %1295 = vmatmul.f32.gmra.mxu0 %v567
        %v1296 = vpop.f32.mrf.mxu0
        %v1297 = vadd.f32 0.0, %v1296
        %1298 = vmatmul.f32.gmra.mxu0 %v569
        %v1299 = vpop.f32.mrf.mxu0
        %v1300 = vadd.f32 0.0, %v1299
        %1301 = vmatmul.f32.gmra.mxu0 %v572
        %v1302 = vpop.f32.mrf.mxu0
        %v1303 = vadd.f32 0.0, %v1302
        %1304 = vmatmul.f32.gmra.mxu0 %v574
        %v1305 = vpop.f32.mrf.mxu0
        %v1306 = vadd.f32 0.0, %v1305
        %1307 = vmatmul.f32.gmra.mxu0 %v577
        %v1308 = vpop.f32.mrf.mxu0
        %v1309 = vadd.f32 0.0, %v1308
        %1310 = vmatmul.f32.gmra.mxu0 %v579
        %v1311 = vpop.f32.mrf.mxu0
        %v1312 = vadd.f32 0.0, %v1311
        %1313 = vmatmul.f32.gmra.mxu0 %v927
        %v1314 = vpop.f32.mrf.mxu0
        %v1315 = vadd.f32 0.0, %v1314
        %1316 = vmatmul.f32.gmra.mxu0 %v929
        %v1317 = vpop.f32.mrf.mxu0
        %v1318 = vadd.f32 0.0, %v1317
        %1319 = vmatmul.f32.gmra.mxu0 %v1239
        %v1320 = vpop.f32.mrf.mxu0
        %v1321 = vadd.f32 0.0, %v1320
        %1322 = vmatmul.f32.gmra.mxu0 %v1241
        %v1323 = vpop.f32.mrf.mxu0
        %v1324 = vadd.f32 0.0, %v1323
        %1325 = vdwg.mxu0
        %v1326 = vadd.f32 %v1218, %v1279
        %v1327 = vadd.f32 %v1219, %v1282
        %v1328 = vadd.f32 %v1220, %v1285
        %v1329 = vadd.f32 %v1221, %v1288
        %v1330 = vadd.f32 %v1222, %v1291
        %v1331 = vadd.f32 %v1223, %v1294
        %v1332 = vadd.f32 %v1224, %v1297
        %v1333 = vadd.f32 %v1225, %v1300
        %v1334 = vadd.f32 %v1226, %v1303
        %v1335 = vadd.f32 %v1227, %v1306
        %v1336 = vadd.f32 %v1228, %v1309
        %v1337 = vadd.f32 %v1229, %v1312
        %v1338 = vadd.f32 %v1230, %v1315
        %v1339 = vadd.f32 %v1231, %v1318
        %v1340 = vadd.f32 %v1232, %v1321
        %v1341 = vadd.f32 %v1233, %v1324
        %s1342 = scalar_lea.vmem [#allocation4], 896
        %v1343 = vld [vmem:[%s1342] sm:$0xff]
        %v1344 = vld [vmem:[%s1342 + $0x8] sm:$0xff]
        %v1345 = vld [vmem:[%s1342 + $0x10] sm:$0xff]
        %v1346 = vld [vmem:[%s1342 + $0x18] sm:$0xff]
        %v1347 = vld [vmem:[%s1342 + $0x20] sm:$0xff]
        %v1348 = vld [vmem:[%s1342 + $0x28] sm:$0xff]
        %v1349 = vld [vmem:[%s1342 + $0x30] sm:$0xff]
        %v1350 = vld [vmem:[%s1342 + $0x38] sm:$0xff]
        %v1351 = vld [vmem:[%s1342 + $0x40] sm:$0xff]
        %v1352 = vld [vmem:[%s1342 + $0x48] sm:$0xff]
        %v1353 = vld [vmem:[%s1342 + $0x50] sm:$0xff]
        %v1354 = vld [vmem:[%s1342 + $0x58] sm:$0xff]
        %v1355 = vld [vmem:[%s1342 + $0x60] sm:$0xff]
        %v1356 = vld [vmem:[%s1342 + $0x68] sm:$0xff]
        %v1357 = vld [vmem:[%s1342 + $0x70] sm:$0xff]
        %v1358 = vld [vmem:[%s1342 + $0x78] sm:$0xff]
        %1359 = vmatpush.msra.mxu0 %v1358
        %1360 = vmatpush.msra.mxu0 %v1357
        %1361 = vmatpush.msra.mxu0 %v1356
        %1362 = vmatpush.msra.mxu0 %v1355
        %1363 = vmatpush.msra.mxu0 %v1354
        %1364 = vmatpush.msra.mxu0 %v1353
        %1365 = vmatpush.msra.mxu0 %v1352
        %1366 = vmatpush.msra.mxu0 %v1351
        %1367 = vmatpush.msra.mxu0 %v1350
        %1368 = vmatpush.msra.mxu0 %v1349
        %1369 = vmatpush.msra.mxu0 %v1348
        %1370 = vmatpush.msra.mxu0 %v1347
        %1371 = vmatpush.msra.mxu0 %v1346
        %1372 = vmatpush.msra.mxu0 %v1345
        %1373 = vmatpush.msra.mxu0 %v1344
        %1374 = vmatpush.msra.mxu0 %v1343
        %1375 = vmatmul.f32.gmra.mxu0 %v451
        %v1376 = vpop.f32.mrf.mxu0
        %v1377 = vadd.f32 0.0, %v1376
        %1378 = vmatmul.f32.gmra.mxu0 %v452
        %v1379 = vpop.f32.mrf.mxu0
        %v1380 = vadd.f32 0.0, %v1379
        %1381 = vmatmul.f32.gmra.mxu0 %v455
        %v1382 = vpop.f32.mrf.mxu0
        %v1383 = vadd.f32 0.0, %v1382
        %1384 = vmatmul.f32.gmra.mxu0 %v456
        %v1385 = vpop.f32.mrf.mxu0
        %v1386 = vadd.f32 0.0, %v1385
        %1387 = vmatmul.f32.gmra.mxu0 %v459
        %v1388 = vpop.f32.mrf.mxu0
        %v1389 = vadd.f32 0.0, %v1388
        %1390 = vmatmul.f32.gmra.mxu0 %v460
        %v1391 = vpop.f32.mrf.mxu0
        %v1392 = vadd.f32 0.0, %v1391
        %1393 = vmatmul.f32.gmra.mxu0 %v463
        %v1394 = vpop.f32.mrf.mxu0
        %v1395 = vadd.f32 0.0, %v1394
        %1396 = vmatmul.f32.gmra.mxu0 %v464
        %v1397 = vpop.f32.mrf.mxu0
        %v1398 = vadd.f32 0.0, %v1397
        %1399 = vmatmul.f32.gmra.mxu0 %v467
        %v1400 = vpop.f32.mrf.mxu0
        %v1401 = vadd.f32 0.0, %v1400
        %1402 = vmatmul.f32.gmra.mxu0 %v468
        %v1403 = vpop.f32.mrf.mxu0
        %v1404 = vadd.f32 0.0, %v1403
        %1405 = vmatmul.f32.gmra.mxu0 %v471
        %v1406 = vpop.f32.mrf.mxu0
        %v1407 = vadd.f32 0.0, %v1406
        %1408 = vmatmul.f32.gmra.mxu0 %v472
        %v1409 = vpop.f32.mrf.mxu0
        %v1410 = vadd.f32 0.0, %v1409
        %1411 = vmatmul.f32.gmra.mxu0 %v475
        %v1412 = vpop.f32.mrf.mxu0
        %v1413 = vadd.f32 0.0, %v1412
        %1414 = vmatmul.f32.gmra.mxu0 %v476
        %v1415 = vpop.f32.mrf.mxu0
        %v1416 = vadd.f32 0.0, %v1415
        %1417 = vmatmul.f32.gmra.mxu0 %v479
        %v1418 = vpop.f32.mrf.mxu0
        %v1419 = vadd.f32 0.0, %v1418
        %1420 = vmatmul.f32.gmra.mxu0 %v480
        %v1421 = vpop.f32.mrf.mxu0
        %v1422 = vadd.f32 0.0, %v1421
        %1423 = vdwg.mxu0
        %v1424 = vadd.f32 %v1326, %v1377
        %v1425 = vadd.f32 %v1327, %v1380
        %v1426 = vadd.f32 %v1328, %v1383
        %v1427 = vadd.f32 %v1329, %v1386
        %v1428 = vadd.f32 %v1330, %v1389
        %v1429 = vadd.f32 %v1331, %v1392
        %v1430 = vadd.f32 %v1332, %v1395
        %v1431 = vadd.f32 %v1333, %v1398
        %v1432 = vadd.f32 %v1334, %v1401
        %v1433 = vadd.f32 %v1335, %v1404
        %v1434 = vadd.f32 %v1336, %v1407
        %v1435 = vadd.f32 %v1337, %v1410
        %v1436 = vadd.f32 %v1338, %v1413
        %v1437 = vadd.f32 %v1339, %v1416
        %v1438 = vadd.f32 %v1340, %v1419
        %v1439 = vadd.f32 %v1341, %v1422
        %v1441 = vrot.slane %v479, 1
        %v1442 = vrot.slane %v480, 1
        %v1443 = vsel %vm767, %v1441, %v1442
        %v1444 = vrot.slane %v481, 1
        %v1445 = vsel %vm767, %v1442, %v1444
        %s1448 = scalar_lea.vmem [#allocation4], 1024
        %v1449 = vld [vmem:[%s1448] sm:$0xff]
        %v1450 = vld [vmem:[%s1448 + $0x8] sm:$0xff]
        %v1451 = vld [vmem:[%s1448 + $0x10] sm:$0xff]
        %v1452 = vld [vmem:[%s1448 + $0x18] sm:$0xff]
        %v1453 = vld [vmem:[%s1448 + $0x20] sm:$0xff]
        %v1454 = vld [vmem:[%s1448 + $0x28] sm:$0xff]
        %v1455 = vld [vmem:[%s1448 + $0x30] sm:$0xff]
        %v1456 = vld [vmem:[%s1448 + $0x38] sm:$0xff]
        %v1457 = vld [vmem:[%s1448 + $0x40] sm:$0xff]
        %v1458 = vld [vmem:[%s1448 + $0x48] sm:$0xff]
        %v1459 = vld [vmem:[%s1448 + $0x50] sm:$0xff]
        %v1460 = vld [vmem:[%s1448 + $0x58] sm:$0xff]
        %v1461 = vld [vmem:[%s1448 + $0x60] sm:$0xff]
        %v1462 = vld [vmem:[%s1448 + $0x68] sm:$0xff]
        %v1463 = vld [vmem:[%s1448 + $0x70] sm:$0xff]
        %v1464 = vld [vmem:[%s1448 + $0x78] sm:$0xff]
        %1465 = vmatpush.msra.mxu0 %v1464
        %1466 = vmatpush.msra.mxu0 %v1463
        %1467 = vmatpush.msra.mxu0 %v1462
        %1468 = vmatpush.msra.mxu0 %v1461
        %1469 = vmatpush.msra.mxu0 %v1460
        %1470 = vmatpush.msra.mxu0 %v1459
        %1471 = vmatpush.msra.mxu0 %v1458
        %1472 = vmatpush.msra.mxu0 %v1457
        %1473 = vmatpush.msra.mxu0 %v1456
        %1474 = vmatpush.msra.mxu0 %v1455
        %1475 = vmatpush.msra.mxu0 %v1454
        %1476 = vmatpush.msra.mxu0 %v1453
        %1477 = vmatpush.msra.mxu0 %v1452
        %1478 = vmatpush.msra.mxu0 %v1451
        %1479 = vmatpush.msra.mxu0 %v1450
        %1480 = vmatpush.msra.mxu0 %v1449
        %1481 = vmatmul.f32.gmra.mxu0 %v780
        %v1482 = vpop.f32.mrf.mxu0
        %v1483 = vadd.f32 0.0, %v1482
        %1484 = vmatmul.f32.gmra.mxu0 %v782
        %v1485 = vpop.f32.mrf.mxu0
        %v1486 = vadd.f32 0.0, %v1485
        %1487 = vmatmul.f32.gmra.mxu0 %v785
        %v1488 = vpop.f32.mrf.mxu0
        %v1489 = vadd.f32 0.0, %v1488
        %1490 = vmatmul.f32.gmra.mxu0 %v787
        %v1491 = vpop.f32.mrf.mxu0
        %v1492 = vadd.f32 0.0, %v1491
        %1493 = vmatmul.f32.gmra.mxu0 %v790
        %v1494 = vpop.f32.mrf.mxu0
        %v1495 = vadd.f32 0.0, %v1494
        %1496 = vmatmul.f32.gmra.mxu0 %v792
        %v1497 = vpop.f32.mrf.mxu0
        %v1498 = vadd.f32 0.0, %v1497
        %1499 = vmatmul.f32.gmra.mxu0 %v795
        %v1500 = vpop.f32.mrf.mxu0
        %v1501 = vadd.f32 0.0, %v1500
        %1502 = vmatmul.f32.gmra.mxu0 %v797
        %v1503 = vpop.f32.mrf.mxu0
        %v1504 = vadd.f32 0.0, %v1503
        %1505 = vmatmul.f32.gmra.mxu0 %v800
        %v1506 = vpop.f32.mrf.mxu0
        %v1507 = vadd.f32 0.0, %v1506
        %1508 = vmatmul.f32.gmra.mxu0 %v802
        %v1509 = vpop.f32.mrf.mxu0
        %v1510 = vadd.f32 0.0, %v1509
        %1511 = vmatmul.f32.gmra.mxu0 %v805
        %v1512 = vpop.f32.mrf.mxu0
        %v1513 = vadd.f32 0.0, %v1512
        %1514 = vmatmul.f32.gmra.mxu0 %v807
        %v1515 = vpop.f32.mrf.mxu0
        %v1516 = vadd.f32 0.0, %v1515
        %1517 = vmatmul.f32.gmra.mxu0 %v1131
        %v1518 = vpop.f32.mrf.mxu0
        %v1519 = vadd.f32 0.0, %v1518
        %1520 = vmatmul.f32.gmra.mxu0 %v1133
        %v1521 = vpop.f32.mrf.mxu0
        %v1522 = vadd.f32 0.0, %v1521
        %1523 = vmatmul.f32.gmra.mxu0 %v1443
        %v1524 = vpop.f32.mrf.mxu0
        %v1525 = vadd.f32 0.0, %v1524
        %1526 = vmatmul.f32.gmra.mxu0 %v1445
        %v1527 = vpop.f32.mrf.mxu0
        %v1528 = vadd.f32 0.0, %v1527
        %1529 = vdwg.mxu0
        %v1530 = vadd.f32 %v1424, %v1483
        %v1531 = vadd.f32 %v1425, %v1486
        %v1532 = vadd.f32 %v1426, %v1489
        %v1533 = vadd.f32 %v1427, %v1492
        %v1534 = vadd.f32 %v1428, %v1495
        %v1535 = vadd.f32 %v1429, %v1498
        %v1536 = vadd.f32 %v1430, %v1501
        %v1537 = vadd.f32 %v1431, %v1504
        %v1538 = vadd.f32 %v1432, %v1507
        %v1539 = vadd.f32 %v1433, %v1510
        %v1540 = vadd.f32 %v1434, %v1513
        %v1541 = vadd.f32 %v1435, %v1516
        %v1542 = vadd.f32 %v1436, %v1519
        %v1543 = vadd.f32 %v1437, %v1522
        %v1544 = vadd.f32 %v1438, %v1525
        %v1545 = vadd.f32 %v1439, %v1528
        %v1547 = vperm.slane %v514, 0
        %v1549 = vadd.f32 %v1530, %v1547
        %v1550 = vadd.f32 %v1531, %v1547
        %v1551 = vadd.f32 %v1532, %v1547
        %v1552 = vadd.f32 %v1533, %v1547
        %v1553 = vadd.f32 %v1534, %v1547
        %v1554 = vadd.f32 %v1535, %v1547
        %v1555 = vadd.f32 %v1536, %v1547
        %v1556 = vadd.f32 %v1537, %v1547
        %v1557 = vadd.f32 %v1538, %v1547
        %v1558 = vadd.f32 %v1539, %v1547
        %v1559 = vadd.f32 %v1540, %v1547
        %v1560 = vadd.f32 %v1541, %v1547
        %v1561 = vadd.f32 %v1542, %v1547
        %v1562 = vadd.f32 %v1543, %v1547
        %v1563 = vadd.f32 %v1544, %v1547
        %v1564 = vadd.f32 %v1545, %v1547
        %v1565 = vmax.f32 %v1549, 0.0
        %v1566 = vmax.f32 %v1550, 0.0
        %v1567 = vmax.f32 %v1551, 0.0
        %v1568 = vmax.f32 %v1552, 0.0
        %v1569 = vmax.f32 %v1553, 0.0
        %v1570 = vmax.f32 %v1554, 0.0
        %v1571 = vmax.f32 %v1555, 0.0
        %v1572 = vmax.f32 %v1556, 0.0
        %v1573 = vmax.f32 %v1557, 0.0
        %v1574 = vmax.f32 %v1558, 0.0
        %v1575 = vmax.f32 %v1559, 0.0
        %v1576 = vmax.f32 %v1560, 0.0
        %v1577 = vmax.f32 %v1561, 0.0
        %v1578 = vmax.f32 %v1562, 0.0
        %v1579 = vmax.f32 %v1563, 0.0
        %v1580 = vmax.f32 %v1564, 0.0
        %s1581 = scalar_lea.vmem [#allocation3], 32
        %1582 = vst [vmem:[%s1581 + $0x8] sm:$0xff] %v1565
        %1583 = vst [vmem:[%s1581 + $0x10] sm:$0xff] %v1566
        %1584 = vst [vmem:[%s1581 + $0x28] sm:$0xff] %v1567
        %1585 = vst [vmem:[%s1581 + $0x30] sm:$0xff] %v1568
        %1586 = vst [vmem:[%s1581 + $0x48] sm:$0xff] %v1569
        %1587 = vst [vmem:[%s1581 + $0x50] sm:$0xff] %v1570
        %1588 = vst [vmem:[%s1581 + $0x68] sm:$0xff] %v1571
        %1589 = vst [vmem:[%s1581 + $0x70] sm:$0xff] %v1572
        %1590 = vst [vmem:[%s1581 + $0x88] sm:$0xff] %v1573
        %1591 = vst [vmem:[%s1581 + $0x90] sm:$0xff] %v1574
        %1592 = vst [vmem:[%s1581 + $0xa8] sm:$0xff] %v1575
        %1593 = vst [vmem:[%s1581 + $0xb0] sm:$0xff] %v1576
        %1594 = vst [vmem:[%s1581 + $0xc8] sm:$0xff] %v1577
        %1595 = vst [vmem:[%s1581 + $0xd0] sm:$0xff] %v1578
        %1596 = vst [vmem:[%s1581 + $0xe8] sm:$0xff] %v1579
        %1597 = vst [vmem:[%s1581 + $0xf0] sm:$0xff] %v1580
        %v1616 = vrot.slane %v482, 7
        %v1617 = vrot.slane %v483, 7
        %v1618 = vsel %vm539, %v1616, %v1617
        %v1619 = vrot.slane %v484, 7
        %v1620 = vsel %vm539, %v1617, %v1619
        %v1621 = vrot.slane %v486, 7
        %v1622 = vrot.slane %v487, 7
        %v1623 = vsel %vm539, %v1621, %v1622
        %v1624 = vrot.slane %v488, 7
        %v1625 = vsel %vm539, %v1622, %v1624
        %v1626 = vrot.slane %v490, 7
        %v1627 = vrot.slane %v491, 7
        %v1628 = vsel %vm539, %v1626, %v1627
        %v1629 = vrot.slane %v492, 7
        %v1630 = vsel %vm539, %v1627, %v1629
        %v1631 = vrot.slane %v494, 7
        %v1632 = vrot.slane %v495, 7
        %v1633 = vsel %vm539, %v1631, %v1632
        %v1634 = vrot.slane %v496, 7
        %v1635 = vsel %vm539, %v1632, %v1634
        %v1636 = vrot.slane %v498, 7
        %v1637 = vrot.slane %v499, 7
        %v1638 = vsel %vm539, %v1636, %v1637
        %v1639 = vrot.slane %v500, 7
        %v1640 = vsel %vm539, %v1637, %v1639
        %v1641 = vrot.slane %v502, 7
        %v1642 = vrot.slane %v503, 7
        %v1643 = vsel %vm539, %v1641, %v1642
        %v1644 = vrot.slane %v504, 7
        %v1645 = vsel %vm539, %v1642, %v1644
        %v1658 = vld [vmem:[#allocation4] sm:$0xff]
        %v1659 = vld [vmem:[#allocation4 + $0x8] sm:$0xff]
        %v1660 = vld [vmem:[#allocation4 + $0x10] sm:$0xff]
        %v1661 = vld [vmem:[#allocation4 + $0x18] sm:$0xff]
        %v1662 = vld [vmem:[#allocation4 + $0x20] sm:$0xff]
        %v1663 = vld [vmem:[#allocation4 + $0x28] sm:$0xff]
        %v1664 = vld [vmem:[#allocation4 + $0x30] sm:$0xff]
        %v1665 = vld [vmem:[#allocation4 + $0x38] sm:$0xff]
        %v1666 = vld [vmem:[#allocation4 + $0x40] sm:$0xff]
        %v1667 = vld [vmem:[#allocation4 + $0x48] sm:$0xff]
        %v1668 = vld [vmem:[#allocation4 + $0x50] sm:$0xff]
        %v1669 = vld [vmem:[#allocation4 + $0x58] sm:$0xff]
        %v1670 = vld [vmem:[#allocation4 + $0x60] sm:$0xff]
        %v1671 = vld [vmem:[#allocation4 + $0x68] sm:$0xff]
        %v1672 = vld [vmem:[#allocation4 + $0x70] sm:$0xff]
        %v1673 = vld [vmem:[#allocation4 + $0x78] sm:$0xff]
        %v1674 = vld [vmem:[%s612] sm:$0xff]
        %v1675 = vld [vmem:[%s612 + $0x8] sm:$0xff]
        %v1676 = vld [vmem:[%s612 + $0x10] sm:$0xff]
        %v1677 = vld [vmem:[%s612 + $0x18] sm:$0xff]
        %v1678 = vld [vmem:[%s612 + $0x20] sm:$0xff]
        %v1679 = vld [vmem:[%s612 + $0x28] sm:$0xff]
        %v1680 = vld [vmem:[%s612 + $0x30] sm:$0xff]
        %v1681 = vld [vmem:[%s612 + $0x38] sm:$0xff]
        %v1682 = vld [vmem:[%s612 + $0x40] sm:$0xff]
        %v1683 = vld [vmem:[%s612 + $0x48] sm:$0xff]
        %v1684 = vld [vmem:[%s612 + $0x50] sm:$0xff]
        %v1685 = vld [vmem:[%s612 + $0x58] sm:$0xff]
        %v1686 = vld [vmem:[%s612 + $0x60] sm:$0xff]
        %v1687 = vld [vmem:[%s612 + $0x68] sm:$0xff]
        %v1688 = vld [vmem:[%s612 + $0x70] sm:$0xff]
        %v1689 = vld [vmem:[%s612 + $0x78] sm:$0xff]
        %1690 = vmatpush.msra.mxu0 %v1689
        %1691 = vmatpush.msra.mxu0 %v1688
        %1692 = vmatpush.msra.mxu0 %v1687
        %1693 = vmatpush.msra.mxu0 %v1686
        %1694 = vmatpush.msra.mxu0 %v1685
        %1695 = vmatpush.msra.mxu0 %v1684
        %1696 = vmatpush.msra.mxu0 %v1683
        %1697 = vmatpush.msra.mxu0 %v1682
        %1698 = vmatpush.msra.mxu0 %v1681
        %1699 = vmatpush.msra.mxu0 %v1680
        %1700 = vmatpush.msra.mxu0 %v1679
        %1701 = vmatpush.msra.mxu0 %v1678
        %1702 = vmatpush.msra.mxu0 %v1677
        %1703 = vmatpush.msra.mxu0 %v1676
        %1704 = vmatpush.msra.mxu0 %v1675
        %1705 = vmatpush.msra.mxu0 %v1674
        %1706 = vmatmul.f32.gmra.mxu0 %v475
        %v1707 = vpop.f32.mrf.mxu0
        %v1708 = vadd.f32 0.0, %v1707
        %1709 = vmatmul.f32.gmra.mxu0 %v476
        %v1710 = vpop.f32.mrf.mxu0
        %v1711 = vadd.f32 0.0, %v1710
        %1712 = vmatmul.f32.gmra.mxu0 %v479
        %v1713 = vpop.f32.mrf.mxu0
        %v1714 = vadd.f32 0.0, %v1713
        %1715 = vmatmul.f32.gmra.mxu0 %v480
        %v1716 = vpop.f32.mrf.mxu0
        %v1717 = vadd.f32 0.0, %v1716
        %1718 = vmatmul.f32.gmra.mxu0 %v483
        %v1719 = vpop.f32.mrf.mxu0
        %v1720 = vadd.f32 0.0, %v1719
        %1721 = vmatmul.f32.gmra.mxu0 %v484
        %v1722 = vpop.f32.mrf.mxu0
        %v1723 = vadd.f32 0.0, %v1722
        %1724 = vmatmul.f32.gmra.mxu0 %v487
        %v1725 = vpop.f32.mrf.mxu0
        %v1726 = vadd.f32 0.0, %v1725
        %1727 = vmatmul.f32.gmra.mxu0 %v488
        %v1728 = vpop.f32.mrf.mxu0
        %v1729 = vadd.f32 0.0, %v1728
        %1730 = vmatmul.f32.gmra.mxu0 %v491
        %v1731 = vpop.f32.mrf.mxu0
        %v1732 = vadd.f32 0.0, %v1731
        %1733 = vmatmul.f32.gmra.mxu0 %v492
        %v1734 = vpop.f32.mrf.mxu0
        %v1735 = vadd.f32 0.0, %v1734
        %1736 = vmatmul.f32.gmra.mxu0 %v495
        %v1737 = vpop.f32.mrf.mxu0
        %v1738 = vadd.f32 0.0, %v1737
        %1739 = vmatmul.f32.gmra.mxu0 %v496
        %v1740 = vpop.f32.mrf.mxu0
        %v1741 = vadd.f32 0.0, %v1740
        %1742 = vmatmul.f32.gmra.mxu0 %v499
        %v1743 = vpop.f32.mrf.mxu0
        %v1744 = vadd.f32 0.0, %v1743
        %1745 = vmatmul.f32.gmra.mxu0 %v500
        %v1746 = vpop.f32.mrf.mxu0
        %v1747 = vadd.f32 0.0, %v1746
        %1748 = vmatmul.f32.gmra.mxu0 %v503
        %v1749 = vpop.f32.mrf.mxu0
        %v1750 = vadd.f32 0.0, %v1749
        %1751 = vmatmul.f32.gmra.mxu0 %v504
        %v1752 = vpop.f32.mrf.mxu0
        %v1753 = vadd.f32 0.0, %v1752
        %1754 = vdwg.mxu0
        %1755 = vmatpush.msra.mxu0 %v1673
        %1756 = vmatpush.msra.mxu0 %v1672
        %1757 = vmatpush.msra.mxu0 %v1671
        %1758 = vmatpush.msra.mxu0 %v1670
        %1759 = vmatpush.msra.mxu0 %v1669
        %1760 = vmatpush.msra.mxu0 %v1668
        %1761 = vmatpush.msra.mxu0 %v1667
        %1762 = vmatpush.msra.mxu0 %v1666
        %1763 = vmatpush.msra.mxu0 %v1665
        %1764 = vmatpush.msra.mxu0 %v1664
        %1765 = vmatpush.msra.mxu0 %v1663
        %1766 = vmatpush.msra.mxu0 %v1662
        %1767 = vmatpush.msra.mxu0 %v1661
        %1768 = vmatpush.msra.mxu0 %v1660
        %1769 = vmatpush.msra.mxu0 %v1659
        %1770 = vmatpush.msra.mxu0 %v1658
        %1771 = vmatmul.f32.gmra.mxu0 %v927
        %v1772 = vpop.f32.mrf.mxu0
        %v1773 = vadd.f32 %v1708, %v1772
        %1774 = vmatmul.f32.gmra.mxu0 %v929
        %v1775 = vpop.f32.mrf.mxu0
        %v1776 = vadd.f32 %v1711, %v1775
        %1777 = vmatmul.f32.gmra.mxu0 %v1239
        %v1778 = vpop.f32.mrf.mxu0
        %v1779 = vadd.f32 %v1714, %v1778
        %1780 = vmatmul.f32.gmra.mxu0 %v1241
        %v1781 = vpop.f32.mrf.mxu0
        %v1782 = vadd.f32 %v1717, %v1781
        %1783 = vmatmul.f32.gmra.mxu0 %v1618
        %v1784 = vpop.f32.mrf.mxu0
        %v1785 = vadd.f32 %v1720, %v1784
        %1786 = vmatmul.f32.gmra.mxu0 %v1620
        %v1787 = vpop.f32.mrf.mxu0
        %v1788 = vadd.f32 %v1723, %v1787
        %1789 = vmatmul.f32.gmra.mxu0 %v1623
        %v1790 = vpop.f32.mrf.mxu0
        %v1791 = vadd.f32 %v1726, %v1790
        %1792 = vmatmul.f32.gmra.mxu0 %v1625
        %v1793 = vpop.f32.mrf.mxu0
        %v1794 = vadd.f32 %v1729, %v1793
        %1795 = vmatmul.f32.gmra.mxu0 %v1628
        %v1796 = vpop.f32.mrf.mxu0
        %v1797 = vadd.f32 %v1732, %v1796
        %1798 = vmatmul.f32.gmra.mxu0 %v1630
        %v1799 = vpop.f32.mrf.mxu0
        %v1800 = vadd.f32 %v1735, %v1799
        %1801 = vmatmul.f32.gmra.mxu0 %v1633
        %v1802 = vpop.f32.mrf.mxu0
        %v1803 = vadd.f32 %v1738, %v1802
        %1804 = vmatmul.f32.gmra.mxu0 %v1635
        %v1805 = vpop.f32.mrf.mxu0
        %v1806 = vadd.f32 %v1741, %v1805
        %1807 = vmatmul.f32.gmra.mxu0 %v1638
        %v1808 = vpop.f32.mrf.mxu0
        %v1809 = vadd.f32 %v1744, %v1808
        %1810 = vmatmul.f32.gmra.mxu0 %v1640
        %v1811 = vpop.f32.mrf.mxu0
        %v1812 = vadd.f32 %v1747, %v1811
        %1813 = vmatmul.f32.gmra.mxu0 %v1643
        %v1814 = vpop.f32.mrf.mxu0
        %v1815 = vadd.f32 %v1750, %v1814
        %1816 = vmatmul.f32.gmra.mxu0 %v1645
        %v1817 = vpop.f32.mrf.mxu0
        %v1818 = vadd.f32 %v1753, %v1817
        %1819 = vdwg.mxu0
        %v1826 = vrot.slane %v483, 1
        %v1827 = vrot.slane %v484, 1
        %v1828 = vsel %vm767, %v1826, %v1827
        %v1829 = vrot.slane %v485, 1
        %v1830 = vsel %vm767, %v1827, %v1829
        %v1831 = vrot.slane %v487, 1
        %v1832 = vrot.slane %v488, 1
        %v1833 = vsel %vm767, %v1831, %v1832
        %v1834 = vrot.slane %v489, 1
        %v1835 = vsel %vm767, %v1832, %v1834
        %v1836 = vrot.slane %v491, 1
        %v1837 = vrot.slane %v492, 1
        %v1838 = vsel %vm767, %v1836, %v1837
        %v1839 = vrot.slane %v493, 1
        %v1840 = vsel %vm767, %v1837, %v1839
        %v1841 = vrot.slane %v495, 1
        %v1842 = vrot.slane %v496, 1
        %v1843 = vsel %vm767, %v1841, %v1842
        %v1844 = vrot.slane %v497, 1
        %v1845 = vsel %vm767, %v1842, %v1844
        %v1846 = vrot.slane %v499, 1
        %v1847 = vrot.slane %v500, 1
        %v1848 = vsel %vm767, %v1846, %v1847
        %v1849 = vrot.slane %v501, 1
        %v1850 = vsel %vm767, %v1847, %v1849
        %v1851 = vrot.slane %v503, 1
        %v1852 = vrot.slane %v504, 1
        %v1853 = vsel %vm767, %v1851, %v1852
        %v1854 = vrot.slane %v505, 1
        %v1855 = vsel %vm767, %v1852, %v1854
        %v1868 = vld [vmem:[%s824] sm:$0xff]
        %v1869 = vld [vmem:[%s824 + $0x8] sm:$0xff]
        %v1870 = vld [vmem:[%s824 + $0x10] sm:$0xff]
        %v1871 = vld [vmem:[%s824 + $0x18] sm:$0xff]
        %v1872 = vld [vmem:[%s824 + $0x20] sm:$0xff]
        %v1873 = vld [vmem:[%s824 + $0x28] sm:$0xff]
        %v1874 = vld [vmem:[%s824 + $0x30] sm:$0xff]
        %v1875 = vld [vmem:[%s824 + $0x38] sm:$0xff]
        %v1876 = vld [vmem:[%s824 + $0x40] sm:$0xff]
        %v1877 = vld [vmem:[%s824 + $0x48] sm:$0xff]
        %v1878 = vld [vmem:[%s824 + $0x50] sm:$0xff]
        %v1879 = vld [vmem:[%s824 + $0x58] sm:$0xff]
        %v1880 = vld [vmem:[%s824 + $0x60] sm:$0xff]
        %v1881 = vld [vmem:[%s824 + $0x68] sm:$0xff]
        %v1882 = vld [vmem:[%s824 + $0x70] sm:$0xff]
        %v1883 = vld [vmem:[%s824 + $0x78] sm:$0xff]
        %1884 = vmatpush.msra.mxu0 %v1883
        %1885 = vmatpush.msra.mxu0 %v1882
        %1886 = vmatpush.msra.mxu0 %v1881
        %1887 = vmatpush.msra.mxu0 %v1880
        %1888 = vmatpush.msra.mxu0 %v1879
        %1889 = vmatpush.msra.mxu0 %v1878
        %1890 = vmatpush.msra.mxu0 %v1877
        %1891 = vmatpush.msra.mxu0 %v1876
        %1892 = vmatpush.msra.mxu0 %v1875
        %1893 = vmatpush.msra.mxu0 %v1874
        %1894 = vmatpush.msra.mxu0 %v1873
        %1895 = vmatpush.msra.mxu0 %v1872
        %1896 = vmatpush.msra.mxu0 %v1871
        %1897 = vmatpush.msra.mxu0 %v1870
        %1898 = vmatpush.msra.mxu0 %v1869
        %1899 = vmatpush.msra.mxu0 %v1868
        %1900 = vmatmul.f32.gmra.mxu0 %v1131
        %v1901 = vpop.f32.mrf.mxu0
        %v1902 = vadd.f32 0.0, %v1901
        %1903 = vmatmul.f32.gmra.mxu0 %v1133
        %v1904 = vpop.f32.mrf.mxu0
        %v1905 = vadd.f32 0.0, %v1904
        %1906 = vmatmul.f32.gmra.mxu0 %v1443
        %v1907 = vpop.f32.mrf.mxu0
        %v1908 = vadd.f32 0.0, %v1907
        %1909 = vmatmul.f32.gmra.mxu0 %v1445
        %v1910 = vpop.f32.mrf.mxu0
        %v1911 = vadd.f32 0.0, %v1910
        %1912 = vmatmul.f32.gmra.mxu0 %v1828
        %v1913 = vpop.f32.mrf.mxu0
        %v1914 = vadd.f32 0.0, %v1913
        %1915 = vmatmul.f32.gmra.mxu0 %v1830
        %v1916 = vpop.f32.mrf.mxu0
        %v1917 = vadd.f32 0.0, %v1916
        %1918 = vmatmul.f32.gmra.mxu0 %v1833
        %v1919 = vpop.f32.mrf.mxu0
        %v1920 = vadd.f32 0.0, %v1919
        %1921 = vmatmul.f32.gmra.mxu0 %v1835
        %v1922 = vpop.f32.mrf.mxu0
        %v1923 = vadd.f32 0.0, %v1922
        %1924 = vmatmul.f32.gmra.mxu0 %v1838
        %v1925 = vpop.f32.mrf.mxu0
        %v1926 = vadd.f32 0.0, %v1925
        %1927 = vmatmul.f32.gmra.mxu0 %v1840
        %v1928 = vpop.f32.mrf.mxu0
        %v1929 = vadd.f32 0.0, %v1928
        %1930 = vmatmul.f32.gmra.mxu0 %v1843
        %v1931 = vpop.f32.mrf.mxu0
        %v1932 = vadd.f32 0.0, %v1931
        %1933 = vmatmul.f32.gmra.mxu0 %v1845
        %v1934 = vpop.f32.mrf.mxu0
        %v1935 = vadd.f32 0.0, %v1934
        %1936 = vmatmul.f32.gmra.mxu0 %v1848
        %v1937 = vpop.f32.mrf.mxu0
        %v1938 = vadd.f32 0.0, %v1937
        %1939 = vmatmul.f32.gmra.mxu0 %v1850
        %v1940 = vpop.f32.mrf.mxu0
        %v1941 = vadd.f32 0.0, %v1940
        %1942 = vmatmul.f32.gmra.mxu0 %v1853
        %v1943 = vpop.f32.mrf.mxu0
        %v1944 = vadd.f32 0.0, %v1943
        %1945 = vmatmul.f32.gmra.mxu0 %v1855
        %v1946 = vpop.f32.mrf.mxu0
        %v1947 = vadd.f32 0.0, %v1946
        %1948 = vdwg.mxu0
        %v1949 = vadd.f32 %v1773, %v1902
        %v1950 = vadd.f32 %v1776, %v1905
        %v1951 = vadd.f32 %v1779, %v1908
        %v1952 = vadd.f32 %v1782, %v1911
        %v1953 = vadd.f32 %v1785, %v1914
        %v1954 = vadd.f32 %v1788, %v1917
        %v1955 = vadd.f32 %v1791, %v1920
        %v1956 = vadd.f32 %v1794, %v1923
        %v1957 = vadd.f32 %v1797, %v1926
        %v1958 = vadd.f32 %v1800, %v1929
        %v1959 = vadd.f32 %v1803, %v1932
        %v1960 = vadd.f32 %v1806, %v1935
        %v1961 = vadd.f32 %v1809, %v1938
        %v1962 = vadd.f32 %v1812, %v1941
        %v1963 = vadd.f32 %v1815, %v1944
        %v1964 = vadd.f32 %v1818, %v1947
        %v1968 = vrot.slane %v506, 7
        %v1969 = vrot.slane %v507, 7
        %v1970 = vsel %vm539, %v1968, %v1969
        %v1971 = vrot.slane %v508, 7
        %v1972 = vsel %vm539, %v1969, %v1971
        %v1975 = vld [vmem:[%s932] sm:$0xff]
        %v1976 = vld [vmem:[%s932 + $0x8] sm:$0xff]
        %v1977 = vld [vmem:[%s932 + $0x10] sm:$0xff]
        %v1978 = vld [vmem:[%s932 + $0x18] sm:$0xff]
        %v1979 = vld [vmem:[%s932 + $0x20] sm:$0xff]
        %v1980 = vld [vmem:[%s932 + $0x28] sm:$0xff]
        %v1981 = vld [vmem:[%s932 + $0x30] sm:$0xff]
        %v1982 = vld [vmem:[%s932 + $0x38] sm:$0xff]
        %v1983 = vld [vmem:[%s932 + $0x40] sm:$0xff]
        %v1984 = vld [vmem:[%s932 + $0x48] sm:$0xff]
        %v1985 = vld [vmem:[%s932 + $0x50] sm:$0xff]
        %v1986 = vld [vmem:[%s932 + $0x58] sm:$0xff]
        %v1987 = vld [vmem:[%s932 + $0x60] sm:$0xff]
        %v1988 = vld [vmem:[%s932 + $0x68] sm:$0xff]
        %v1989 = vld [vmem:[%s932 + $0x70] sm:$0xff]
        %v1990 = vld [vmem:[%s932 + $0x78] sm:$0xff]
        %1991 = vmatpush.msra.mxu0 %v1990
        %1992 = vmatpush.msra.mxu0 %v1989
        %1993 = vmatpush.msra.mxu0 %v1988
        %1994 = vmatpush.msra.mxu0 %v1987
        %1995 = vmatpush.msra.mxu0 %v1986
        %1996 = vmatpush.msra.mxu0 %v1985
        %1997 = vmatpush.msra.mxu0 %v1984
        %1998 = vmatpush.msra.mxu0 %v1983
        %1999 = vmatpush.msra.mxu0 %v1982
        %2000 = vmatpush.msra.mxu0 %v1981
        %2001 = vmatpush.msra.mxu0 %v1980
        %2002 = vmatpush.msra.mxu0 %v1979
        %2003 = vmatpush.msra.mxu0 %v1978
        %2004 = vmatpush.msra.mxu0 %v1977
        %2005 = vmatpush.msra.mxu0 %v1976
        %2006 = vmatpush.msra.mxu0 %v1975
        %2007 = vmatmul.f32.gmra.mxu0 %v1239
        %v2008 = vpop.f32.mrf.mxu0
        %v2009 = vadd.f32 0.0, %v2008
        %2010 = vmatmul.f32.gmra.mxu0 %v1241
        %v2011 = vpop.f32.mrf.mxu0
        %v2012 = vadd.f32 0.0, %v2011
        %2013 = vmatmul.f32.gmra.mxu0 %v1618
        %v2014 = vpop.f32.mrf.mxu0
        %v2015 = vadd.f32 0.0, %v2014
        %2016 = vmatmul.f32.gmra.mxu0 %v1620
        %v2017 = vpop.f32.mrf.mxu0
        %v2018 = vadd.f32 0.0, %v2017
        %2019 = vmatmul.f32.gmra.mxu0 %v1623
        %v2020 = vpop.f32.mrf.mxu0
        %v2021 = vadd.f32 0.0, %v2020
        %2022 = vmatmul.f32.gmra.mxu0 %v1625
        %v2023 = vpop.f32.mrf.mxu0
        %v2024 = vadd.f32 0.0, %v2023
        %2025 = vmatmul.f32.gmra.mxu0 %v1628
        %v2026 = vpop.f32.mrf.mxu0
        %v2027 = vadd.f32 0.0, %v2026
        %2028 = vmatmul.f32.gmra.mxu0 %v1630
        %v2029 = vpop.f32.mrf.mxu0
        %v2030 = vadd.f32 0.0, %v2029
        %2031 = vmatmul.f32.gmra.mxu0 %v1633
        %v2032 = vpop.f32.mrf.mxu0
        %v2033 = vadd.f32 0.0, %v2032
        %2034 = vmatmul.f32.gmra.mxu0 %v1635
        %v2035 = vpop.f32.mrf.mxu0
        %v2036 = vadd.f32 0.0, %v2035
        %2037 = vmatmul.f32.gmra.mxu0 %v1638
        %v2038 = vpop.f32.mrf.mxu0
        %v2039 = vadd.f32 0.0, %v2038
        %2040 = vmatmul.f32.gmra.mxu0 %v1640
        %v2041 = vpop.f32.mrf.mxu0
        %v2042 = vadd.f32 0.0, %v2041
        %2043 = vmatmul.f32.gmra.mxu0 %v1643
        %v2044 = vpop.f32.mrf.mxu0
        %v2045 = vadd.f32 0.0, %v2044
        %2046 = vmatmul.f32.gmra.mxu0 %v1645
        %v2047 = vpop.f32.mrf.mxu0
        %v2048 = vadd.f32 0.0, %v2047
        %2049 = vmatmul.f32.gmra.mxu0 %v1970
        %v2050 = vpop.f32.mrf.mxu0
        %v2051 = vadd.f32 0.0, %v2050
        %2052 = vmatmul.f32.gmra.mxu0 %v1972
        %v2053 = vpop.f32.mrf.mxu0
        %v2054 = vadd.f32 0.0, %v2053
        %2055 = vdwg.mxu0
        %v2056 = vadd.f32 %v1949, %v2009
        %v2057 = vadd.f32 %v1950, %v2012
        %v2058 = vadd.f32 %v1951, %v2015
        %v2059 = vadd.f32 %v1952, %v2018
        %v2060 = vadd.f32 %v1953, %v2021
        %v2061 = vadd.f32 %v1954, %v2024
        %v2062 = vadd.f32 %v1955, %v2027
        %v2063 = vadd.f32 %v1956, %v2030
        %v2064 = vadd.f32 %v1957, %v2033
        %v2065 = vadd.f32 %v1958, %v2036
        %v2066 = vadd.f32 %v1959, %v2039
        %v2067 = vadd.f32 %v1960, %v2042
        %v2068 = vadd.f32 %v1961, %v2045
        %v2069 = vadd.f32 %v1962, %v2048
        %v2070 = vadd.f32 %v1963, %v2051
        %v2071 = vadd.f32 %v1964, %v2054
        %v2072 = vld [vmem:[%s1030] sm:$0xff]
        %v2073 = vld [vmem:[%s1030 + $0x8] sm:$0xff]
        %v2074 = vld [vmem:[%s1030 + $0x10] sm:$0xff]
        %v2075 = vld [vmem:[%s1030 + $0x18] sm:$0xff]
        %v2076 = vld [vmem:[%s1030 + $0x20] sm:$0xff]
        %v2077 = vld [vmem:[%s1030 + $0x28] sm:$0xff]
        %v2078 = vld [vmem:[%s1030 + $0x30] sm:$0xff]
        %v2079 = vld [vmem:[%s1030 + $0x38] sm:$0xff]
        %v2080 = vld [vmem:[%s1030 + $0x40] sm:$0xff]
        %v2081 = vld [vmem:[%s1030 + $0x48] sm:$0xff]
        %v2082 = vld [vmem:[%s1030 + $0x50] sm:$0xff]
        %v2083 = vld [vmem:[%s1030 + $0x58] sm:$0xff]
        %v2084 = vld [vmem:[%s1030 + $0x60] sm:$0xff]
        %v2085 = vld [vmem:[%s1030 + $0x68] sm:$0xff]
        %v2086 = vld [vmem:[%s1030 + $0x70] sm:$0xff]
        %v2087 = vld [vmem:[%s1030 + $0x78] sm:$0xff]
        %2088 = vmatpush.msra.mxu0 %v2087
        %2089 = vmatpush.msra.mxu0 %v2086
        %2090 = vmatpush.msra.mxu0 %v2085
        %2091 = vmatpush.msra.mxu0 %v2084
        %2092 = vmatpush.msra.mxu0 %v2083
        %2093 = vmatpush.msra.mxu0 %v2082
        %2094 = vmatpush.msra.mxu0 %v2081
        %2095 = vmatpush.msra.mxu0 %v2080
        %2096 = vmatpush.msra.mxu0 %v2079
        %2097 = vmatpush.msra.mxu0 %v2078
        %2098 = vmatpush.msra.mxu0 %v2077
        %2099 = vmatpush.msra.mxu0 %v2076
        %2100 = vmatpush.msra.mxu0 %v2075
        %2101 = vmatpush.msra.mxu0 %v2074
        %2102 = vmatpush.msra.mxu0 %v2073
        %2103 = vmatpush.msra.mxu0 %v2072
        %2104 = vmatmul.f32.gmra.mxu0 %v479
        %v2105 = vpop.f32.mrf.mxu0
        %v2106 = vadd.f32 0.0, %v2105
        %2107 = vmatmul.f32.gmra.mxu0 %v480
        %v2108 = vpop.f32.mrf.mxu0
        %v2109 = vadd.f32 0.0, %v2108
        %2110 = vmatmul.f32.gmra.mxu0 %v483
        %v2111 = vpop.f32.mrf.mxu0
        %v2112 = vadd.f32 0.0, %v2111
        %2113 = vmatmul.f32.gmra.mxu0 %v484
        %v2114 = vpop.f32.mrf.mxu0
        %v2115 = vadd.f32 0.0, %v2114
        %2116 = vmatmul.f32.gmra.mxu0 %v487
        %v2117 = vpop.f32.mrf.mxu0
        %v2118 = vadd.f32 0.0, %v2117
        %2119 = vmatmul.f32.gmra.mxu0 %v488
        %v2120 = vpop.f32.mrf.mxu0
        %v2121 = vadd.f32 0.0, %v2120
        %2122 = vmatmul.f32.gmra.mxu0 %v491
        %v2123 = vpop.f32.mrf.mxu0
        %v2124 = vadd.f32 0.0, %v2123
        %2125 = vmatmul.f32.gmra.mxu0 %v492
        %v2126 = vpop.f32.mrf.mxu0
        %v2127 = vadd.f32 0.0, %v2126
        %2128 = vmatmul.f32.gmra.mxu0 %v495
        %v2129 = vpop.f32.mrf.mxu0
        %v2130 = vadd.f32 0.0, %v2129
        %2131 = vmatmul.f32.gmra.mxu0 %v496
        %v2132 = vpop.f32.mrf.mxu0
        %v2133 = vadd.f32 0.0, %v2132
        %2134 = vmatmul.f32.gmra.mxu0 %v499
        %v2135 = vpop.f32.mrf.mxu0
        %v2136 = vadd.f32 0.0, %v2135
        %2137 = vmatmul.f32.gmra.mxu0 %v500
        %v2138 = vpop.f32.mrf.mxu0
        %v2139 = vadd.f32 0.0, %v2138
        %2140 = vmatmul.f32.gmra.mxu0 %v503
        %v2141 = vpop.f32.mrf.mxu0
        %v2142 = vadd.f32 0.0, %v2141
        %2143 = vmatmul.f32.gmra.mxu0 %v504
        %v2144 = vpop.f32.mrf.mxu0
        %v2145 = vadd.f32 0.0, %v2144
        %2146 = vmatmul.f32.gmra.mxu0 %v507
        %v2147 = vpop.f32.mrf.mxu0
        %v2148 = vadd.f32 0.0, %v2147
        %2149 = vmatmul.f32.gmra.mxu0 %v508
        %v2150 = vpop.f32.mrf.mxu0
        %v2151 = vadd.f32 0.0, %v2150
        %2152 = vdwg.mxu0
        %v2153 = vadd.f32 %v2056, %v2106
        %v2154 = vadd.f32 %v2057, %v2109
        %v2155 = vadd.f32 %v2058, %v2112
        %v2156 = vadd.f32 %v2059, %v2115
        %v2157 = vadd.f32 %v2060, %v2118
        %v2158 = vadd.f32 %v2061, %v2121
        %v2159 = vadd.f32 %v2062, %v2124
        %v2160 = vadd.f32 %v2063, %v2127
        %v2161 = vadd.f32 %v2064, %v2130
        %v2162 = vadd.f32 %v2065, %v2133
        %v2163 = vadd.f32 %v2066, %v2136
        %v2164 = vadd.f32 %v2067, %v2139
        %v2165 = vadd.f32 %v2068, %v2142
        %v2166 = vadd.f32 %v2069, %v2145
        %v2167 = vadd.f32 %v2070, %v2148
        %v2168 = vadd.f32 %v2071, %v2151
        %v2170 = vrot.slane %v507, 1
        %v2171 = vrot.slane %v508, 1
        %v2172 = vsel %vm767, %v2170, %v2171
        %v2173 = vrot.slane %v509, 1
        %v2174 = vsel %vm767, %v2171, %v2173
        %v2177 = vld [vmem:[%s1136] sm:$0xff]
        %v2178 = vld [vmem:[%s1136 + $0x8] sm:$0xff]
        %v2179 = vld [vmem:[%s1136 + $0x10] sm:$0xff]
        %v2180 = vld [vmem:[%s1136 + $0x18] sm:$0xff]
        %v2181 = vld [vmem:[%s1136 + $0x20] sm:$0xff]
        %v2182 = vld [vmem:[%s1136 + $0x28] sm:$0xff]
        %v2183 = vld [vmem:[%s1136 + $0x30] sm:$0xff]
        %v2184 = vld [vmem:[%s1136 + $0x38] sm:$0xff]
        %v2185 = vld [vmem:[%s1136 + $0x40] sm:$0xff]
        %v2186 = vld [vmem:[%s1136 + $0x48] sm:$0xff]
        %v2187 = vld [vmem:[%s1136 + $0x50] sm:$0xff]
        %v2188 = vld [vmem:[%s1136 + $0x58] sm:$0xff]
        %v2189 = vld [vmem:[%s1136 + $0x60] sm:$0xff]
        %v2190 = vld [vmem:[%s1136 + $0x68] sm:$0xff]
        %v2191 = vld [vmem:[%s1136 + $0x70] sm:$0xff]
        %v2192 = vld [vmem:[%s1136 + $0x78] sm:$0xff]
        %2193 = vmatpush.msra.mxu0 %v2192
        %2194 = vmatpush.msra.mxu0 %v2191
        %2195 = vmatpush.msra.mxu0 %v2190
        %2196 = vmatpush.msra.mxu0 %v2189
        %2197 = vmatpush.msra.mxu0 %v2188
        %2198 = vmatpush.msra.mxu0 %v2187
        %2199 = vmatpush.msra.mxu0 %v2186
        %2200 = vmatpush.msra.mxu0 %v2185
        %2201 = vmatpush.msra.mxu0 %v2184
        %2202 = vmatpush.msra.mxu0 %v2183
        %2203 = vmatpush.msra.mxu0 %v2182
        %2204 = vmatpush.msra.mxu0 %v2181
        %2205 = vmatpush.msra.mxu0 %v2180
        %2206 = vmatpush.msra.mxu0 %v2179
        %2207 = vmatpush.msra.mxu0 %v2178
        %2208 = vmatpush.msra.mxu0 %v2177
        %2209 = vmatmul.f32.gmra.mxu0 %v1443
        %v2210 = vpop.f32.mrf.mxu0
        %v2211 = vadd.f32 0.0, %v2210
        %2212 = vmatmul.f32.gmra.mxu0 %v1445
        %v2213 = vpop.f32.mrf.mxu0
        %v2214 = vadd.f32 0.0, %v2213
        %2215 = vmatmul.f32.gmra.mxu0 %v1828
        %v2216 = vpop.f32.mrf.mxu0
        %v2217 = vadd.f32 0.0, %v2216
        %2218 = vmatmul.f32.gmra.mxu0 %v1830
        %v2219 = vpop.f32.mrf.mxu0
        %v2220 = vadd.f32 0.0, %v2219
        %2221 = vmatmul.f32.gmra.mxu0 %v1833
        %v2222 = vpop.f32.mrf.mxu0
        %v2223 = vadd.f32 0.0, %v2222
        %2224 = vmatmul.f32.gmra.mxu0 %v1835
        %v2225 = vpop.f32.mrf.mxu0
        %v2226 = vadd.f32 0.0, %v2225
        %2227 = vmatmul.f32.gmra.mxu0 %v1838
        %v2228 = vpop.f32.mrf.mxu0
        %v2229 = vadd.f32 0.0, %v2228
        %2230 = vmatmul.f32.gmra.mxu0 %v1840
        %v2231 = vpop.f32.mrf.mxu0
        %v2232 = vadd.f32 0.0, %v2231
        %2233 = vmatmul.f32.gmra.mxu0 %v1843
        %v2234 = vpop.f32.mrf.mxu0
        %v2235 = vadd.f32 0.0, %v2234
        %2236 = vmatmul.f32.gmra.mxu0 %v1845
        %v2237 = vpop.f32.mrf.mxu0
        %v2238 = vadd.f32 0.0, %v2237
        %2239 = vmatmul.f32.gmra.mxu0 %v1848
        %v2240 = vpop.f32.mrf.mxu0
        %v2241 = vadd.f32 0.0, %v2240
        %2242 = vmatmul.f32.gmra.mxu0 %v1850
        %v2243 = vpop.f32.mrf.mxu0
        %v2244 = vadd.f32 0.0, %v2243
        %2245 = vmatmul.f32.gmra.mxu0 %v1853
        %v2246 = vpop.f32.mrf.mxu0
        %v2247 = vadd.f32 0.0, %v2246
        %2248 = vmatmul.f32.gmra.mxu0 %v1855
        %v2249 = vpop.f32.mrf.mxu0
        %v2250 = vadd.f32 0.0, %v2249
        %2251 = vmatmul.f32.gmra.mxu0 %v2172
        %v2252 = vpop.f32.mrf.mxu0
        %v2253 = vadd.f32 0.0, %v2252
        %2254 = vmatmul.f32.gmra.mxu0 %v2174
        %v2255 = vpop.f32.mrf.mxu0
        %v2256 = vadd.f32 0.0, %v2255
        %2257 = vdwg.mxu0
        %v2258 = vadd.f32 %v2153, %v2211
        %v2259 = vadd.f32 %v2154, %v2214
        %v2260 = vadd.f32 %v2155, %v2217
        %v2261 = vadd.f32 %v2156, %v2220
        %v2262 = vadd.f32 %v2157, %v2223
        %v2263 = vadd.f32 %v2158, %v2226
        %v2264 = vadd.f32 %v2159, %v2229
        %v2265 = vadd.f32 %v2160, %v2232
        %v2266 = vadd.f32 %v2161, %v2235
        %v2267 = vadd.f32 %v2162, %v2238
        %v2268 = vadd.f32 %v2163, %v2241
        %v2269 = vadd.f32 %v2164, %v2244
        %v2270 = vadd.f32 %v2165, %v2247
        %v2271 = vadd.f32 %v2166, %v2250
        %v2272 = vadd.f32 %v2167, %v2253
        %v2273 = vadd.f32 %v2168, %v2256
        %v2277 = vrot.slane %v510, 7
        %v2278 = vrot.slane %v511, 7
        %v2279 = vsel %vm539, %v2277, %v2278
        %v2280 = vrot.slane %v512, 7
        %v2281 = vsel %vm539, %v2278, %v2280
        %v2284 = vld [vmem:[%s1244] sm:$0xff]
        %v2285 = vld [vmem:[%s1244 + $0x8] sm:$0xff]
        %v2286 = vld [vmem:[%s1244 + $0x10] sm:$0xff]
        %v2287 = vld [vmem:[%s1244 + $0x18] sm:$0xff]
        %v2288 = vld [vmem:[%s1244 + $0x20] sm:$0xff]
        %v2289 = vld [vmem:[%s1244 + $0x28] sm:$0xff]
        %v2290 = vld [vmem:[%s1244 + $0x30] sm:$0xff]
        %v2291 = vld [vmem:[%s1244 + $0x38] sm:$0xff]
        %v2292 = vld [vmem:[%s1244 + $0x40] sm:$0xff]
        %v2293 = vld [vmem:[%s1244 + $0x48] sm:$0xff]
        %v2294 = vld [vmem:[%s1244 + $0x50] sm:$0xff]
        %v2295 = vld [vmem:[%s1244 + $0x58] sm:$0xff]
        %v2296 = vld [vmem:[%s1244 + $0x60] sm:$0xff]
        %v2297 = vld [vmem:[%s1244 + $0x68] sm:$0xff]
        %v2298 = vld [vmem:[%s1244 + $0x70] sm:$0xff]
        %v2299 = vld [vmem:[%s1244 + $0x78] sm:$0xff]
        %2300 = vmatpush.msra.mxu0 %v2299
        %2301 = vmatpush.msra.mxu0 %v2298
        %2302 = vmatpush.msra.mxu0 %v2297
        %2303 = vmatpush.msra.mxu0 %v2296
        %2304 = vmatpush.msra.mxu0 %v2295
        %2305 = vmatpush.msra.mxu0 %v2294
        %2306 = vmatpush.msra.mxu0 %v2293
        %2307 = vmatpush.msra.mxu0 %v2292
        %2308 = vmatpush.msra.mxu0 %v2291
        %2309 = vmatpush.msra.mxu0 %v2290
        %2310 = vmatpush.msra.mxu0 %v2289
        %2311 = vmatpush.msra.mxu0 %v2288
        %2312 = vmatpush.msra.mxu0 %v2287
        %2313 = vmatpush.msra.mxu0 %v2286
        %2314 = vmatpush.msra.mxu0 %v2285
        %2315 = vmatpush.msra.mxu0 %v2284
        %2316 = vmatmul.f32.gmra.mxu0 %v1618
        %v2317 = vpop.f32.mrf.mxu0
        %v2318 = vadd.f32 0.0, %v2317
        %2319 = vmatmul.f32.gmra.mxu0 %v1620
        %v2320 = vpop.f32.mrf.mxu0
        %v2321 = vadd.f32 0.0, %v2320
        %2322 = vmatmul.f32.gmra.mxu0 %v1623
        %v2323 = vpop.f32.mrf.mxu0
        %v2324 = vadd.f32 0.0, %v2323
        %2325 = vmatmul.f32.gmra.mxu0 %v1625
        %v2326 = vpop.f32.mrf.mxu0
        %v2327 = vadd.f32 0.0, %v2326
        %2328 = vmatmul.f32.gmra.mxu0 %v1628
        %v2329 = vpop.f32.mrf.mxu0
        %v2330 = vadd.f32 0.0, %v2329
        %2331 = vmatmul.f32.gmra.mxu0 %v1630
        %v2332 = vpop.f32.mrf.mxu0
        %v2333 = vadd.f32 0.0, %v2332
        %2334 = vmatmul.f32.gmra.mxu0 %v1633
        %v2335 = vpop.f32.mrf.mxu0
        %v2336 = vadd.f32 0.0, %v2335
        %2337 = vmatmul.f32.gmra.mxu0 %v1635
        %v2338 = vpop.f32.mrf.mxu0
        %v2339 = vadd.f32 0.0, %v2338
        %2340 = vmatmul.f32.gmra.mxu0 %v1638
        %v2341 = vpop.f32.mrf.mxu0
        %v2342 = vadd.f32 0.0, %v2341
        %2343 = vmatmul.f32.gmra.mxu0 %v1640
        %v2344 = vpop.f32.mrf.mxu0
        %v2345 = vadd.f32 0.0, %v2344
        %2346 = vmatmul.f32.gmra.mxu0 %v1643
        %v2347 = vpop.f32.mrf.mxu0
        %v2348 = vadd.f32 0.0, %v2347
        %2349 = vmatmul.f32.gmra.mxu0 %v1645
        %v2350 = vpop.f32.mrf.mxu0
        %v2351 = vadd.f32 0.0, %v2350
        %2352 = vmatmul.f32.gmra.mxu0 %v1970
        %v2353 = vpop.f32.mrf.mxu0
        %v2354 = vadd.f32 0.0, %v2353
        %2355 = vmatmul.f32.gmra.mxu0 %v1972
        %v2356 = vpop.f32.mrf.mxu0
        %v2357 = vadd.f32 0.0, %v2356
        %2358 = vmatmul.f32.gmra.mxu0 %v2279
        %v2359 = vpop.f32.mrf.mxu0
        %v2360 = vadd.f32 0.0, %v2359
        %2361 = vmatmul.f32.gmra.mxu0 %v2281
        %v2362 = vpop.f32.mrf.mxu0
        %v2363 = vadd.f32 0.0, %v2362
        %2364 = vdwg.mxu0
        %v2365 = vadd.f32 %v2258, %v2318
        %v2366 = vadd.f32 %v2259, %v2321
        %v2367 = vadd.f32 %v2260, %v2324
        %v2368 = vadd.f32 %v2261, %v2327
        %v2369 = vadd.f32 %v2262, %v2330
        %v2370 = vadd.f32 %v2263, %v2333
        %v2371 = vadd.f32 %v2264, %v2336
        %v2372 = vadd.f32 %v2265, %v2339
        %v2373 = vadd.f32 %v2266, %v2342
        %v2374 = vadd.f32 %v2267, %v2345
        %v2375 = vadd.f32 %v2268, %v2348
        %v2376 = vadd.f32 %v2269, %v2351
        %v2377 = vadd.f32 %v2270, %v2354
        %v2378 = vadd.f32 %v2271, %v2357
        %v2379 = vadd.f32 %v2272, %v2360
        %v2380 = vadd.f32 %v2273, %v2363
        %v2381 = vld [vmem:[%s1342] sm:$0xff]
        %v2382 = vld [vmem:[%s1342 + $0x8] sm:$0xff]
        %v2383 = vld [vmem:[%s1342 + $0x10] sm:$0xff]
        %v2384 = vld [vmem:[%s1342 + $0x18] sm:$0xff]
        %v2385 = vld [vmem:[%s1342 + $0x20] sm:$0xff]
        %v2386 = vld [vmem:[%s1342 + $0x28] sm:$0xff]
        %v2387 = vld [vmem:[%s1342 + $0x30] sm:$0xff]
        %v2388 = vld [vmem:[%s1342 + $0x38] sm:$0xff]
        %v2389 = vld [vmem:[%s1342 + $0x40] sm:$0xff]
        %v2390 = vld [vmem:[%s1342 + $0x48] sm:$0xff]
        %v2391 = vld [vmem:[%s1342 + $0x50] sm:$0xff]
        %v2392 = vld [vmem:[%s1342 + $0x58] sm:$0xff]
        %v2393 = vld [vmem:[%s1342 + $0x60] sm:$0xff]
        %v2394 = vld [vmem:[%s1342 + $0x68] sm:$0xff]
        %v2395 = vld [vmem:[%s1342 + $0x70] sm:$0xff]
        %v2396 = vld [vmem:[%s1342 + $0x78] sm:$0xff]
        %2397 = vmatpush.msra.mxu0 %v2396
        %2398 = vmatpush.msra.mxu0 %v2395
        %2399 = vmatpush.msra.mxu0 %v2394
        %2400 = vmatpush.msra.mxu0 %v2393
        %2401 = vmatpush.msra.mxu0 %v2392
        %2402 = vmatpush.msra.mxu0 %v2391
        %2403 = vmatpush.msra.mxu0 %v2390
        %2404 = vmatpush.msra.mxu0 %v2389
        %2405 = vmatpush.msra.mxu0 %v2388
        %2406 = vmatpush.msra.mxu0 %v2387
        %2407 = vmatpush.msra.mxu0 %v2386
        %2408 = vmatpush.msra.mxu0 %v2385
        %2409 = vmatpush.msra.mxu0 %v2384
        %2410 = vmatpush.msra.mxu0 %v2383
        %2411 = vmatpush.msra.mxu0 %v2382
        %2412 = vmatpush.msra.mxu0 %v2381
        %2413 = vmatmul.f32.gmra.mxu0 %v483
        %v2414 = vpop.f32.mrf.mxu0
        %v2415 = vadd.f32 0.0, %v2414
        %2416 = vmatmul.f32.gmra.mxu0 %v484
        %v2417 = vpop.f32.mrf.mxu0
        %v2418 = vadd.f32 0.0, %v2417
        %2419 = vmatmul.f32.gmra.mxu0 %v487
        %v2420 = vpop.f32.mrf.mxu0
        %v2421 = vadd.f32 0.0, %v2420
        %2422 = vmatmul.f32.gmra.mxu0 %v488
        %v2423 = vpop.f32.mrf.mxu0
        %v2424 = vadd.f32 0.0, %v2423
        %2425 = vmatmul.f32.gmra.mxu0 %v491
        %v2426 = vpop.f32.mrf.mxu0
        %v2427 = vadd.f32 0.0, %v2426
        %2428 = vmatmul.f32.gmra.mxu0 %v492
        %v2429 = vpop.f32.mrf.mxu0
        %v2430 = vadd.f32 0.0, %v2429
        %2431 = vmatmul.f32.gmra.mxu0 %v495
        %v2432 = vpop.f32.mrf.mxu0
        %v2433 = vadd.f32 0.0, %v2432
        %2434 = vmatmul.f32.gmra.mxu0 %v496
        %v2435 = vpop.f32.mrf.mxu0
        %v2436 = vadd.f32 0.0, %v2435
        %2437 = vmatmul.f32.gmra.mxu0 %v499
        %v2438 = vpop.f32.mrf.mxu0
        %v2439 = vadd.f32 0.0, %v2438
        %2440 = vmatmul.f32.gmra.mxu0 %v500
        %v2441 = vpop.f32.mrf.mxu0
        %v2442 = vadd.f32 0.0, %v2441
        %2443 = vmatmul.f32.gmra.mxu0 %v503
        %v2444 = vpop.f32.mrf.mxu0
        %v2445 = vadd.f32 0.0, %v2444
        %2446 = vmatmul.f32.gmra.mxu0 %v504
        %v2447 = vpop.f32.mrf.mxu0
        %v2448 = vadd.f32 0.0, %v2447
        %2449 = vmatmul.f32.gmra.mxu0 %v507
        %v2450 = vpop.f32.mrf.mxu0
        %v2451 = vadd.f32 0.0, %v2450
        %2452 = vmatmul.f32.gmra.mxu0 %v508
        %v2453 = vpop.f32.mrf.mxu0
        %v2454 = vadd.f32 0.0, %v2453
        %2455 = vmatmul.f32.gmra.mxu0 %v511
        %v2456 = vpop.f32.mrf.mxu0
        %v2457 = vadd.f32 0.0, %v2456
        %2458 = vmatmul.f32.gmra.mxu0 %v512
        %v2459 = vpop.f32.mrf.mxu0
        %v2460 = vadd.f32 0.0, %v2459
        %2461 = vdwg.mxu0
        %v2462 = vadd.f32 %v2365, %v2415
        %v2463 = vadd.f32 %v2366, %v2418
        %v2464 = vadd.f32 %v2367, %v2421
        %v2465 = vadd.f32 %v2368, %v2424
        %v2466 = vadd.f32 %v2369, %v2427
        %v2467 = vadd.f32 %v2370, %v2430
        %v2468 = vadd.f32 %v2371, %v2433
        %v2469 = vadd.f32 %v2372, %v2436
        %v2470 = vadd.f32 %v2373, %v2439
        %v2471 = vadd.f32 %v2374, %v2442
        %v2472 = vadd.f32 %v2375, %v2445
        %v2473 = vadd.f32 %v2376, %v2448
        %v2474 = vadd.f32 %v2377, %v2451
        %v2475 = vadd.f32 %v2378, %v2454
        %v2476 = vadd.f32 %v2379, %v2457
        %v2477 = vadd.f32 %v2380, %v2460
        %v2479 = vrot.slane %v511, 1
        %v2480 = vrot.slane %v512, 1
        %v2481 = vsel %vm767, %v2479, %v2480
        %v2482 = vrot.slane %v513, 1
        %v2483 = vsel %vm767, %v2480, %v2482
        %v2486 = vld [vmem:[%s1448] sm:$0xff]
        %v2487 = vld [vmem:[%s1448 + $0x8] sm:$0xff]
        %v2488 = vld [vmem:[%s1448 + $0x10] sm:$0xff]
        %v2489 = vld [vmem:[%s1448 + $0x18] sm:$0xff]
        %v2490 = vld [vmem:[%s1448 + $0x20] sm:$0xff]
        %v2491 = vld [vmem:[%s1448 + $0x28] sm:$0xff]
        %v2492 = vld [vmem:[%s1448 + $0x30] sm:$0xff]
        %v2493 = vld [vmem:[%s1448 + $0x38] sm:$0xff]
        %v2494 = vld [vmem:[%s1448 + $0x40] sm:$0xff]
        %v2495 = vld [vmem:[%s1448 + $0x48] sm:$0xff]
        %v2496 = vld [vmem:[%s1448 + $0x50] sm:$0xff]
        %v2497 = vld [vmem:[%s1448 + $0x58] sm:$0xff]
        %v2498 = vld [vmem:[%s1448 + $0x60] sm:$0xff]
        %v2499 = vld [vmem:[%s1448 + $0x68] sm:$0xff]
        %v2500 = vld [vmem:[%s1448 + $0x70] sm:$0xff]
        %v2501 = vld [vmem:[%s1448 + $0x78] sm:$0xff]
        %2502 = vmatpush.msra.mxu0 %v2501
        %2503 = vmatpush.msra.mxu0 %v2500
        %2504 = vmatpush.msra.mxu0 %v2499
        %2505 = vmatpush.msra.mxu0 %v2498
        %2506 = vmatpush.msra.mxu0 %v2497
        %2507 = vmatpush.msra.mxu0 %v2496
        %2508 = vmatpush.msra.mxu0 %v2495
        %2509 = vmatpush.msra.mxu0 %v2494
        %2510 = vmatpush.msra.mxu0 %v2493
        %2511 = vmatpush.msra.mxu0 %v2492
        %2512 = vmatpush.msra.mxu0 %v2491
        %2513 = vmatpush.msra.mxu0 %v2490
        %2514 = vmatpush.msra.mxu0 %v2489
        %2515 = vmatpush.msra.mxu0 %v2488
        %2516 = vmatpush.msra.mxu0 %v2487
        %2517 = vmatpush.msra.mxu0 %v2486
        %2518 = vmatmul.f32.gmra.mxu0 %v1828
        %v2519 = vpop.f32.mrf.mxu0
        %v2520 = vadd.f32 0.0, %v2519
        %2521 = vmatmul.f32.gmra.mxu0 %v1830
        %v2522 = vpop.f32.mrf.mxu0
        %v2523 = vadd.f32 0.0, %v2522
        %2524 = vmatmul.f32.gmra.mxu0 %v1833
        %v2525 = vpop.f32.mrf.mxu0
        %v2526 = vadd.f32 0.0, %v2525
        %2527 = vmatmul.f32.gmra.mxu0 %v1835
        %v2528 = vpop.f32.mrf.mxu0
        %v2529 = vadd.f32 0.0, %v2528
        %2530 = vmatmul.f32.gmra.mxu0 %v1838
        %v2531 = vpop.f32.mrf.mxu0
        %v2532 = vadd.f32 0.0, %v2531
        %2533 = vmatmul.f32.gmra.mxu0 %v1840
        %v2534 = vpop.f32.mrf.mxu0
        %v2535 = vadd.f32 0.0, %v2534
        %2536 = vmatmul.f32.gmra.mxu0 %v1843
        %v2537 = vpop.f32.mrf.mxu0
        %v2538 = vadd.f32 0.0, %v2537
        %2539 = vmatmul.f32.gmra.mxu0 %v1845
        %v2540 = vpop.f32.mrf.mxu0
        %v2541 = vadd.f32 0.0, %v2540
        %2542 = vmatmul.f32.gmra.mxu0 %v1848
        %v2543 = vpop.f32.mrf.mxu0
        %v2544 = vadd.f32 0.0, %v2543
        %2545 = vmatmul.f32.gmra.mxu0 %v1850
        %v2546 = vpop.f32.mrf.mxu0
        %v2547 = vadd.f32 0.0, %v2546
        %2548 = vmatmul.f32.gmra.mxu0 %v1853
        %v2549 = vpop.f32.mrf.mxu0
        %v2550 = vadd.f32 0.0, %v2549
        %2551 = vmatmul.f32.gmra.mxu0 %v1855
        %v2552 = vpop.f32.mrf.mxu0
        %v2553 = vadd.f32 0.0, %v2552
        %2554 = vmatmul.f32.gmra.mxu0 %v2172
        %v2555 = vpop.f32.mrf.mxu0
        %v2556 = vadd.f32 0.0, %v2555
        %2557 = vmatmul.f32.gmra.mxu0 %v2174
        %v2558 = vpop.f32.mrf.mxu0
        %v2559 = vadd.f32 0.0, %v2558
        %2560 = vmatmul.f32.gmra.mxu0 %v2481
        %v2561 = vpop.f32.mrf.mxu0
        %v2562 = vadd.f32 0.0, %v2561
        %2563 = vmatmul.f32.gmra.mxu0 %v2483
        %v2564 = vpop.f32.mrf.mxu0
        %v2565 = vadd.f32 0.0, %v2564
        %2566 = vdwg.mxu0
        %v2567 = vadd.f32 %v2462, %v2520
        %v2568 = vadd.f32 %v2463, %v2523
        %v2569 = vadd.f32 %v2464, %v2526
        %v2570 = vadd.f32 %v2465, %v2529
        %v2571 = vadd.f32 %v2466, %v2532
        %v2572 = vadd.f32 %v2467, %v2535
        %v2573 = vadd.f32 %v2468, %v2538
        %v2574 = vadd.f32 %v2469, %v2541
        %v2575 = vadd.f32 %v2470, %v2544
        %v2576 = vadd.f32 %v2471, %v2547
        %v2577 = vadd.f32 %v2472, %v2550
        %v2578 = vadd.f32 %v2473, %v2553
        %v2579 = vadd.f32 %v2474, %v2556
        %v2580 = vadd.f32 %v2475, %v2559
        %v2581 = vadd.f32 %v2476, %v2562
        %v2582 = vadd.f32 %v2477, %v2565
        %v2583 = vadd.f32 %v2567, %v1547
        %v2584 = vadd.f32 %v2568, %v1547
        %v2585 = vadd.f32 %v2569, %v1547
        %v2586 = vadd.f32 %v2570, %v1547
        %v2587 = vadd.f32 %v2571, %v1547
        %v2588 = vadd.f32 %v2572, %v1547
        %v2589 = vadd.f32 %v2573, %v1547
        %v2590 = vadd.f32 %v2574, %v1547
        %v2591 = vadd.f32 %v2575, %v1547
        %v2592 = vadd.f32 %v2576, %v1547
        %v2593 = vadd.f32 %v2577, %v1547
        %v2594 = vadd.f32 %v2578, %v1547
        %v2595 = vadd.f32 %v2579, %v1547
        %v2596 = vadd.f32 %v2580, %v1547
        %v2597 = vadd.f32 %v2581, %v1547
        %v2598 = vadd.f32 %v2582, %v1547
        %v2599 = vmax.f32 %v2583, 0.0
        %v2600 = vmax.f32 %v2584, 0.0
        %v2601 = vmax.f32 %v2585, 0.0
        %v2602 = vmax.f32 %v2586, 0.0
        %v2603 = vmax.f32 %v2587, 0.0
        %v2604 = vmax.f32 %v2588, 0.0
        %v2605 = vmax.f32 %v2589, 0.0
        %v2606 = vmax.f32 %v2590, 0.0
        %v2607 = vmax.f32 %v2591, 0.0
        %v2608 = vmax.f32 %v2592, 0.0
        %v2609 = vmax.f32 %v2593, 0.0
        %v2610 = vmax.f32 %v2594, 0.0
        %v2611 = vmax.f32 %v2595, 0.0
        %v2612 = vmax.f32 %v2596, 0.0
        %v2613 = vmax.f32 %v2597, 0.0
        %v2614 = vmax.f32 %v2598, 0.0
        %s2615 = scalar_lea.vmem [#allocation3], 288
        %2616 = vst [vmem:[%s2615 + $0x8] sm:$0xff] %v2599
        %2617 = vst [vmem:[%s2615 + $0x10] sm:$0xff] %v2600
        %2618 = vst [vmem:[%s2615 + $0x28] sm:$0xff] %v2601
        %2619 = vst [vmem:[%s2615 + $0x30] sm:$0xff] %v2602
        %2620 = vst [vmem:[%s2615 + $0x48] sm:$0xff] %v2603
        %2621 = vst [vmem:[%s2615 + $0x50] sm:$0xff] %v2604
        %2622 = vst [vmem:[%s2615 + $0x68] sm:$0xff] %v2605
        %2623 = vst [vmem:[%s2615 + $0x70] sm:$0xff] %v2606
        %2624 = vst [vmem:[%s2615 + $0x88] sm:$0xff] %v2607
        %2625 = vst [vmem:[%s2615 + $0x90] sm:$0xff] %v2608
        %2626 = vst [vmem:[%s2615 + $0xa8] sm:$0xff] %v2609
        %2627 = vst [vmem:[%s2615 + $0xb0] sm:$0xff] %v2610
        %2628 = vst [vmem:[%s2615 + $0xc8] sm:$0xff] %v2611
        %2629 = vst [vmem:[%s2615 + $0xd0] sm:$0xff] %v2612
        %2630 = vst [vmem:[%s2615 + $0xe8] sm:$0xff] %v2613
        %2631 = vst [vmem:[%s2615 + $0xf0] sm:$0xff] %v2614
        %v2632 = vld [vmem:[#allocation3] sm:$0xff]
        %v2633 = vld [vmem:[#allocation3 + $0x8] sm:$0xff]
        %v2634 = vld [vmem:[#allocation3 + $0x10] sm:$0xff]
        %v2635 = vld [vmem:[#allocation3 + $0x18] sm:$0xff]
        %v2636 = vld [vmem:[#allocation3 + $0x20] sm:$0xff]
        %v2637 = vld [vmem:[#allocation3 + $0x28] sm:$0xff]
        %v2638 = vld [vmem:[#allocation3 + $0x30] sm:$0xff]
        %v2639 = vld [vmem:[#allocation3 + $0x38] sm:$0xff]
        %v2640 = vld [vmem:[#allocation3 + $0x40] sm:$0xff]
        %v2641 = vld [vmem:[#allocation3 + $0x48] sm:$0xff]
        %v2642 = vld [vmem:[#allocation3 + $0x50] sm:$0xff]
        %v2643 = vld [vmem:[#allocation3 + $0x58] sm:$0xff]
        %v2644 = vld [vmem:[#allocation3 + $0x60] sm:$0xff]
        %v2645 = vld [vmem:[#allocation3 + $0x68] sm:$0xff]
        %v2646 = vld [vmem:[#allocation3 + $0x70] sm:$0xff]
        %v2647 = vld [vmem:[#allocation3 + $0x78] sm:$0xff]
        %v2648 = vld [vmem:[#allocation3 + $0x80] sm:$0xff]
        %v2649 = vld [vmem:[#allocation3 + $0x88] sm:$0xff]
        %v2650 = vld [vmem:[#allocation3 + $0x90] sm:$0xff]
        %v2651 = vld [vmem:[#allocation3 + $0x98] sm:$0xff]
        %v2652 = vld [vmem:[#allocation3 + $0xa0] sm:$0xff]
        %v2653 = vld [vmem:[#allocation3 + $0xa8] sm:$0xff]
        %v2654 = vld [vmem:[#allocation3 + $0xb0] sm:$0xff]
        %v2655 = vld [vmem:[#allocation3 + $0xb8] sm:$0xff]
        %v2656 = vld [vmem:[#allocation3 + $0xc0] sm:$0xff]
        %v2657 = vld [vmem:[#allocation3 + $0xc8] sm:$0xff]
        %v2658 = vld [vmem:[#allocation3 + $0xd0] sm:$0xff]
        %v2659 = vld [vmem:[#allocation3 + $0xd8] sm:$0xff]
        %v2660 = vld [vmem:[#allocation3 + $0xe0] sm:$0xff]
        %v2661 = vld [vmem:[#allocation3 + $0xe8] sm:$0xff]
        %v2662 = vld [vmem:[#allocation3 + $0xf0] sm:$0xff]
        %v2663 = vld [vmem:[#allocation3 + $0xf8] sm:$0xff]
        %v2664 = vld [vmem:[#allocation3 + $0x100] sm:$0xff]
        %v2665 = vld [vmem:[#allocation3 + $0x108] sm:$0xff]
        %v2666 = vld [vmem:[#allocation3 + $0x110] sm:$0xff]
        %v2667 = vld [vmem:[#allocation3 + $0x118] sm:$0xff]
        %v2668 = vld [vmem:[#allocation3 + $0x120] sm:$0xff]
        %v2669 = vld [vmem:[#allocation3 + $0x128] sm:$0xff]
        %v2670 = vld [vmem:[#allocation3 + $0x130] sm:$0xff]
        %v2671 = vld [vmem:[#allocation3 + $0x138] sm:$0xff]
        %v2672 = vld [vmem:[#allocation3 + $0x140] sm:$0xff]
        %v2673 = vld [vmem:[#allocation3 + $0x148] sm:$0xff]
        %v2674 = vld [vmem:[#allocation3 + $0x150] sm:$0xff]
        %v2675 = vld [vmem:[#allocation3 + $0x158] sm:$0xff]
        %v2676 = vld [vmem:[#allocation3 + $0x160] sm:$0xff]
        %v2677 = vld [vmem:[#allocation3 + $0x168] sm:$0xff]
        %v2678 = vld [vmem:[#allocation3 + $0x170] sm:$0xff]
        %v2679 = vld [vmem:[#allocation3 + $0x178] sm:$0xff]
        %v2680 = vld [vmem:[#allocation3 + $0x180] sm:$0xff]
        %v2681 = vld [vmem:[#allocation3 + $0x188] sm:$0xff]
        %v2682 = vld [vmem:[#allocation3 + $0x190] sm:$0xff]
        %v2683 = vld [vmem:[#allocation3 + $0x198] sm:$0xff]
        %v2684 = vld [vmem:[#allocation3 + $0x1a0] sm:$0xff]
        %v2685 = vld [vmem:[#allocation3 + $0x1a8] sm:$0xff]
        %v2686 = vld [vmem:[#allocation3 + $0x1b0] sm:$0xff]
        %v2687 = vld [vmem:[#allocation3 + $0x1b8] sm:$0xff]
        %v2688 = vld [vmem:[#allocation3 + $0x1c0] sm:$0xff]
        %v2689 = vld [vmem:[#allocation3 + $0x1c8] sm:$0xff]
        %v2690 = vld [vmem:[#allocation3 + $0x1d0] sm:$0xff]
        %v2691 = vld [vmem:[#allocation3 + $0x1d8] sm:$0xff]
        %v2692 = vld [vmem:[#allocation3 + $0x1e0] sm:$0xff]
        %v2693 = vld [vmem:[#allocation3 + $0x1e8] sm:$0xff]
        %v2694 = vld [vmem:[#allocation3 + $0x1f0] sm:$0xff]
        %v2695 = vld [vmem:[#allocation3 + $0x1f8] sm:$0xff]
        %v2696 = vld [vmem:[#allocation3 + $0x200] sm:$0xff]
        %v2697 = vld [vmem:[#allocation3 + $0x208] sm:$0xff]
        %v2698 = vld [vmem:[#allocation3 + $0x210] sm:$0xff]
        %v2699 = vld [vmem:[#allocation3 + $0x218] sm:$0xff]
        %v2700 = vld [vmem:[#allocation3 + $0x220] sm:$0xff]
        %v2701 = vld [vmem:[#allocation3 + $0x228] sm:$0xff]
        %v2702 = vld [vmem:[#allocation3 + $0x230] sm:$0xff]
        %v2703 = vld [vmem:[#allocation3 + $0x238] sm:$0xff]
        %v2704 = vld [vmem:[%s4] sm:$0x1]
        %v2729 = vrot.slane %v2632, 7
        %v2730 = vrot.slane %v2633, 7
        %v2731 = vsel %vm539, %v2729, %v2730
        %v2732 = vrot.slane %v2634, 7
        %v2733 = vsel %vm539, %v2730, %v2732
        %v2734 = vrot.slane %v2636, 7
        %v2735 = vrot.slane %v2637, 7
        %v2736 = vsel %vm539, %v2734, %v2735
        %v2737 = vrot.slane %v2638, 7
        %v2738 = vsel %vm539, %v2735, %v2737
        %v2739 = vrot.slane %v2640, 7
        %v2740 = vrot.slane %v2641, 7
        %v2741 = vsel %vm539, %v2739, %v2740
        %v2742 = vrot.slane %v2642, 7
        %v2743 = vsel %vm539, %v2740, %v2742
        %v2744 = vrot.slane %v2644, 7
        %v2745 = vrot.slane %v2645, 7
        %v2746 = vsel %vm539, %v2744, %v2745
        %v2747 = vrot.slane %v2646, 7
        %v2748 = vsel %vm539, %v2745, %v2747
        %v2749 = vrot.slane %v2648, 7
        %v2750 = vrot.slane %v2649, 7
        %v2751 = vsel %vm539, %v2749, %v2750
        %v2752 = vrot.slane %v2650, 7
        %v2753 = vsel %vm539, %v2750, %v2752
        %v2754 = vrot.slane %v2652, 7
        %v2755 = vrot.slane %v2653, 7
        %v2756 = vsel %vm539, %v2754, %v2755
        %v2757 = vrot.slane %v2654, 7
        %v2758 = vsel %vm539, %v2755, %v2757
        %v2759 = vrot.slane %v2656, 7
        %v2760 = vrot.slane %v2657, 7
        %v2761 = vsel %vm539, %v2759, %v2760
        %v2762 = vrot.slane %v2658, 7
        %v2763 = vsel %vm539, %v2760, %v2762
        %v2764 = vrot.slane %v2660, 7
        %v2765 = vrot.slane %v2661, 7
        %v2766 = vsel %vm539, %v2764, %v2765
        %v2767 = vrot.slane %v2662, 7
        %v2768 = vsel %vm539, %v2765, %v2767
        %v2785 = vld [vmem:[#allocation7] sm:$0xff]
        %v2786 = vld [vmem:[#allocation7 + $0x8] sm:$0xff]
        %v2787 = vld [vmem:[#allocation7 + $0x10] sm:$0xff]
        %v2788 = vld [vmem:[#allocation7 + $0x18] sm:$0xff]
        %v2789 = vld [vmem:[#allocation7 + $0x20] sm:$0xff]
        %v2790 = vld [vmem:[#allocation7 + $0x28] sm:$0xff]
        %v2791 = vld [vmem:[#allocation7 + $0x30] sm:$0xff]
        %v2792 = vld [vmem:[#allocation7 + $0x38] sm:$0xff]
        %v2793 = vld [vmem:[#allocation7 + $0x40] sm:$0xff]
        %v2794 = vld [vmem:[#allocation7 + $0x48] sm:$0xff]
        %v2795 = vld [vmem:[#allocation7 + $0x50] sm:$0xff]
        %v2796 = vld [vmem:[#allocation7 + $0x58] sm:$0xff]
        %v2797 = vld [vmem:[#allocation7 + $0x60] sm:$0xff]
        %v2798 = vld [vmem:[#allocation7 + $0x68] sm:$0xff]
        %v2799 = vld [vmem:[#allocation7 + $0x70] sm:$0xff]
        %v2800 = vld [vmem:[#allocation7 + $0x78] sm:$0xff]
        %s2801 = scalar_lea.vmem [#allocation7], 128
        %v2802 = vld [vmem:[%s2801] sm:$0xff]
        %v2803 = vld [vmem:[%s2801 + $0x8] sm:$0xff]
        %v2804 = vld [vmem:[%s2801 + $0x10] sm:$0xff]
        %v2805 = vld [vmem:[%s2801 + $0x18] sm:$0xff]
        %v2806 = vld [vmem:[%s2801 + $0x20] sm:$0xff]
        %v2807 = vld [vmem:[%s2801 + $0x28] sm:$0xff]
        %v2808 = vld [vmem:[%s2801 + $0x30] sm:$0xff]
        %v2809 = vld [vmem:[%s2801 + $0x38] sm:$0xff]
        %v2810 = vld [vmem:[%s2801 + $0x40] sm:$0xff]
        %v2811 = vld [vmem:[%s2801 + $0x48] sm:$0xff]
        %v2812 = vld [vmem:[%s2801 + $0x50] sm:$0xff]
        %v2813 = vld [vmem:[%s2801 + $0x58] sm:$0xff]
        %v2814 = vld [vmem:[%s2801 + $0x60] sm:$0xff]
        %v2815 = vld [vmem:[%s2801 + $0x68] sm:$0xff]
        %v2816 = vld [vmem:[%s2801 + $0x70] sm:$0xff]
        %v2817 = vld [vmem:[%s2801 + $0x78] sm:$0xff]
        %2818 = vmatpush.msra.mxu0 %v2817
        %2819 = vmatpush.msra.mxu0 %v2816
        %2820 = vmatpush.msra.mxu0 %v2815
        %2821 = vmatpush.msra.mxu0 %v2814
        %2822 = vmatpush.msra.mxu0 %v2813
        %2823 = vmatpush.msra.mxu0 %v2812
        %2824 = vmatpush.msra.mxu0 %v2811
        %2825 = vmatpush.msra.mxu0 %v2810
        %2826 = vmatpush.msra.mxu0 %v2809
        %2827 = vmatpush.msra.mxu0 %v2808
        %2828 = vmatpush.msra.mxu0 %v2807
        %2829 = vmatpush.msra.mxu0 %v2806
        %2830 = vmatpush.msra.mxu0 %v2805
        %2831 = vmatpush.msra.mxu0 %v2804
        %2832 = vmatpush.msra.mxu0 %v2803
        %2833 = vmatpush.msra.mxu0 %v2802
        %2834 = vmatmul.f32.gmra.mxu0 %v2633
        %v2835 = vpop.f32.mrf.mxu0
        %v2836 = vadd.f32 0.0, %v2835
        %2837 = vmatmul.f32.gmra.mxu0 %v2634
        %v2838 = vpop.f32.mrf.mxu0
        %v2839 = vadd.f32 0.0, %v2838
        %2840 = vmatmul.f32.gmra.mxu0 %v2637
        %v2841 = vpop.f32.mrf.mxu0
        %v2842 = vadd.f32 0.0, %v2841
        %2843 = vmatmul.f32.gmra.mxu0 %v2638
        %v2844 = vpop.f32.mrf.mxu0
        %v2845 = vadd.f32 0.0, %v2844
        %2846 = vmatmul.f32.gmra.mxu0 %v2641
        %v2847 = vpop.f32.mrf.mxu0
        %v2848 = vadd.f32 0.0, %v2847
        %2849 = vmatmul.f32.gmra.mxu0 %v2642
        %v2850 = vpop.f32.mrf.mxu0
        %v2851 = vadd.f32 0.0, %v2850
        %2852 = vmatmul.f32.gmra.mxu0 %v2645
        %v2853 = vpop.f32.mrf.mxu0
        %v2854 = vadd.f32 0.0, %v2853
        %2855 = vmatmul.f32.gmra.mxu0 %v2646
        %v2856 = vpop.f32.mrf.mxu0
        %v2857 = vadd.f32 0.0, %v2856
        %2858 = vmatmul.f32.gmra.mxu0 %v2649
        %v2859 = vpop.f32.mrf.mxu0
        %v2860 = vadd.f32 0.0, %v2859
        %2861 = vmatmul.f32.gmra.mxu0 %v2650
        %v2862 = vpop.f32.mrf.mxu0
        %v2863 = vadd.f32 0.0, %v2862
        %2864 = vmatmul.f32.gmra.mxu0 %v2653
        %v2865 = vpop.f32.mrf.mxu0
        %v2866 = vadd.f32 0.0, %v2865
        %2867 = vmatmul.f32.gmra.mxu0 %v2654
        %v2868 = vpop.f32.mrf.mxu0
        %v2869 = vadd.f32 0.0, %v2868
        %2870 = vmatmul.f32.gmra.mxu0 %v2657
        %v2871 = vpop.f32.mrf.mxu0
        %v2872 = vadd.f32 0.0, %v2871
        %2873 = vmatmul.f32.gmra.mxu0 %v2658
        %v2874 = vpop.f32.mrf.mxu0
        %v2875 = vadd.f32 0.0, %v2874
        %2876 = vmatmul.f32.gmra.mxu0 %v2661
        %v2877 = vpop.f32.mrf.mxu0
        %v2878 = vadd.f32 0.0, %v2877
        %2879 = vmatmul.f32.gmra.mxu0 %v2662
        %v2880 = vpop.f32.mrf.mxu0
        %v2881 = vadd.f32 0.0, %v2880
        %2882 = vdwg.mxu0
        %2883 = vmatpush.msra.mxu0 %v2800
        %2884 = vmatpush.msra.mxu0 %v2799
        %2885 = vmatpush.msra.mxu0 %v2798
        %2886 = vmatpush.msra.mxu0 %v2797
        %2887 = vmatpush.msra.mxu0 %v2796
        %2888 = vmatpush.msra.mxu0 %v2795
        %2889 = vmatpush.msra.mxu0 %v2794
        %2890 = vmatpush.msra.mxu0 %v2793
        %2891 = vmatpush.msra.mxu0 %v2792
        %2892 = vmatpush.msra.mxu0 %v2791
        %2893 = vmatpush.msra.mxu0 %v2790
        %2894 = vmatpush.msra.mxu0 %v2789
        %2895 = vmatpush.msra.mxu0 %v2788
        %2896 = vmatpush.msra.mxu0 %v2787
        %2897 = vmatpush.msra.mxu0 %v2786
        %2898 = vmatpush.msra.mxu0 %v2785
        %2899 = vmatmul.f32.gmra.mxu0 %v2731
        %v2900 = vpop.f32.mrf.mxu0
        %v2901 = vadd.f32 %v2836, %v2900
        %2902 = vmatmul.f32.gmra.mxu0 %v2733
        %v2903 = vpop.f32.mrf.mxu0
        %v2904 = vadd.f32 %v2839, %v2903
        %2905 = vmatmul.f32.gmra.mxu0 %v2736
        %v2906 = vpop.f32.mrf.mxu0
        %v2907 = vadd.f32 %v2842, %v2906
        %2908 = vmatmul.f32.gmra.mxu0 %v2738
        %v2909 = vpop.f32.mrf.mxu0
        %v2910 = vadd.f32 %v2845, %v2909
        %2911 = vmatmul.f32.gmra.mxu0 %v2741
        %v2912 = vpop.f32.mrf.mxu0
        %v2913 = vadd.f32 %v2848, %v2912
        %2914 = vmatmul.f32.gmra.mxu0 %v2743
        %v2915 = vpop.f32.mrf.mxu0
        %v2916 = vadd.f32 %v2851, %v2915
        %2917 = vmatmul.f32.gmra.mxu0 %v2746
        %v2918 = vpop.f32.mrf.mxu0
        %v2919 = vadd.f32 %v2854, %v2918
        %2920 = vmatmul.f32.gmra.mxu0 %v2748
        %v2921 = vpop.f32.mrf.mxu0
        %v2922 = vadd.f32 %v2857, %v2921
        %2923 = vmatmul.f32.gmra.mxu0 %v2751
        %v2924 = vpop.f32.mrf.mxu0
        %v2925 = vadd.f32 %v2860, %v2924
        %2926 = vmatmul.f32.gmra.mxu0 %v2753
        %v2927 = vpop.f32.mrf.mxu0
        %v2928 = vadd.f32 %v2863, %v2927
        %2929 = vmatmul.f32.gmra.mxu0 %v2756
        %v2930 = vpop.f32.mrf.mxu0
        %v2931 = vadd.f32 %v2866, %v2930
        %2932 = vmatmul.f32.gmra.mxu0 %v2758
        %v2933 = vpop.f32.mrf.mxu0
        %v2934 = vadd.f32 %v2869, %v2933
        %2935 = vmatmul.f32.gmra.mxu0 %v2761
        %v2936 = vpop.f32.mrf.mxu0
        %v2937 = vadd.f32 %v2872, %v2936
        %2938 = vmatmul.f32.gmra.mxu0 %v2763
        %v2939 = vpop.f32.mrf.mxu0
        %v2940 = vadd.f32 %v2875, %v2939
        %2941 = vmatmul.f32.gmra.mxu0 %v2766
        %v2942 = vpop.f32.mrf.mxu0
        %v2943 = vadd.f32 %v2878, %v2942
        %2944 = vmatmul.f32.gmra.mxu0 %v2768
        %v2945 = vpop.f32.mrf.mxu0
        %v2946 = vadd.f32 %v2881, %v2945
        %2947 = vdwg.mxu0
        %v2956 = vrot.slane %v2633, 1
        %v2957 = vrot.slane %v2634, 1
        %v2958 = vsel %vm767, %v2956, %v2957
        %v2959 = vrot.slane %v2635, 1
        %v2960 = vsel %vm767, %v2957, %v2959
        %v2961 = vrot.slane %v2637, 1
        %v2962 = vrot.slane %v2638, 1
        %v2963 = vsel %vm767, %v2961, %v2962
        %v2964 = vrot.slane %v2639, 1
        %v2965 = vsel %vm767, %v2962, %v2964
        %v2966 = vrot.slane %v2641, 1
        %v2967 = vrot.slane %v2642, 1
        %v2968 = vsel %vm767, %v2966, %v2967
        %v2969 = vrot.slane %v2643, 1
        %v2970 = vsel %vm767, %v2967, %v2969
        %v2971 = vrot.slane %v2645, 1
        %v2972 = vrot.slane %v2646, 1
        %v2973 = vsel %vm767, %v2971, %v2972
        %v2974 = vrot.slane %v2647, 1
        %v2975 = vsel %vm767, %v2972, %v2974
        %v2976 = vrot.slane %v2649, 1
        %v2977 = vrot.slane %v2650, 1
        %v2978 = vsel %vm767, %v2976, %v2977
        %v2979 = vrot.slane %v2651, 1
        %v2980 = vsel %vm767, %v2977, %v2979
        %v2981 = vrot.slane %v2653, 1
        %v2982 = vrot.slane %v2654, 1
        %v2983 = vsel %vm767, %v2981, %v2982
        %v2984 = vrot.slane %v2655, 1
        %v2985 = vsel %vm767, %v2982, %v2984
        %v2986 = vrot.slane %v2657, 1
        %v2987 = vrot.slane %v2658, 1
        %v2988 = vsel %vm767, %v2986, %v2987
        %v2989 = vrot.slane %v2659, 1
        %v2990 = vsel %vm767, %v2987, %v2989
        %v2991 = vrot.slane %v2661, 1
        %v2992 = vrot.slane %v2662, 1
        %v2993 = vsel %vm767, %v2991, %v2992
        %v2994 = vrot.slane %v2663, 1
        %v2995 = vsel %vm767, %v2992, %v2994
        %s3012 = scalar_lea.vmem [#allocation7], 256
        %v3013 = vld [vmem:[%s3012] sm:$0xff]
        %v3014 = vld [vmem:[%s3012 + $0x8] sm:$0xff]
        %v3015 = vld [vmem:[%s3012 + $0x10] sm:$0xff]
        %v3016 = vld [vmem:[%s3012 + $0x18] sm:$0xff]
        %v3017 = vld [vmem:[%s3012 + $0x20] sm:$0xff]
        %v3018 = vld [vmem:[%s3012 + $0x28] sm:$0xff]
        %v3019 = vld [vmem:[%s3012 + $0x30] sm:$0xff]
        %v3020 = vld [vmem:[%s3012 + $0x38] sm:$0xff]
        %v3021 = vld [vmem:[%s3012 + $0x40] sm:$0xff]
        %v3022 = vld [vmem:[%s3012 + $0x48] sm:$0xff]
        %v3023 = vld [vmem:[%s3012 + $0x50] sm:$0xff]
        %v3024 = vld [vmem:[%s3012 + $0x58] sm:$0xff]
        %v3025 = vld [vmem:[%s3012 + $0x60] sm:$0xff]
        %v3026 = vld [vmem:[%s3012 + $0x68] sm:$0xff]
        %v3027 = vld [vmem:[%s3012 + $0x70] sm:$0xff]
        %v3028 = vld [vmem:[%s3012 + $0x78] sm:$0xff]
        %3029 = vmatpush.msra.mxu0 %v3028
        %3030 = vmatpush.msra.mxu0 %v3027
        %3031 = vmatpush.msra.mxu0 %v3026
        %3032 = vmatpush.msra.mxu0 %v3025
        %3033 = vmatpush.msra.mxu0 %v3024
        %3034 = vmatpush.msra.mxu0 %v3023
        %3035 = vmatpush.msra.mxu0 %v3022
        %3036 = vmatpush.msra.mxu0 %v3021
        %3037 = vmatpush.msra.mxu0 %v3020
        %3038 = vmatpush.msra.mxu0 %v3019
        %3039 = vmatpush.msra.mxu0 %v3018
        %3040 = vmatpush.msra.mxu0 %v3017
        %3041 = vmatpush.msra.mxu0 %v3016
        %3042 = vmatpush.msra.mxu0 %v3015
        %3043 = vmatpush.msra.mxu0 %v3014
        %3044 = vmatpush.msra.mxu0 %v3013
        %3045 = vmatmul.f32.gmra.mxu0 %v2958
        %v3046 = vpop.f32.mrf.mxu0
        %v3047 = vadd.f32 0.0, %v3046
        %3048 = vmatmul.f32.gmra.mxu0 %v2960
        %v3049 = vpop.f32.mrf.mxu0
        %v3050 = vadd.f32 0.0, %v3049
        %3051 = vmatmul.f32.gmra.mxu0 %v2963
        %v3052 = vpop.f32.mrf.mxu0
        %v3053 = vadd.f32 0.0, %v3052
        %3054 = vmatmul.f32.gmra.mxu0 %v2965
        %v3055 = vpop.f32.mrf.mxu0
        %v3056 = vadd.f32 0.0, %v3055
        %3057 = vmatmul.f32.gmra.mxu0 %v2968
        %v3058 = vpop.f32.mrf.mxu0
        %v3059 = vadd.f32 0.0, %v3058
        %3060 = vmatmul.f32.gmra.mxu0 %v2970
        %v3061 = vpop.f32.mrf.mxu0
        %v3062 = vadd.f32 0.0, %v3061
        %3063 = vmatmul.f32.gmra.mxu0 %v2973
        %v3064 = vpop.f32.mrf.mxu0
        %v3065 = vadd.f32 0.0, %v3064
        %3066 = vmatmul.f32.gmra.mxu0 %v2975
        %v3067 = vpop.f32.mrf.mxu0
        %v3068 = vadd.f32 0.0, %v3067
        %3069 = vmatmul.f32.gmra.mxu0 %v2978
        %v3070 = vpop.f32.mrf.mxu0
        %v3071 = vadd.f32 0.0, %v3070
        %3072 = vmatmul.f32.gmra.mxu0 %v2980
        %v3073 = vpop.f32.mrf.mxu0
        %v3074 = vadd.f32 0.0, %v3073
        %3075 = vmatmul.f32.gmra.mxu0 %v2983
        %v3076 = vpop.f32.mrf.mxu0
        %v3077 = vadd.f32 0.0, %v3076
        %3078 = vmatmul.f32.gmra.mxu0 %v2985
        %v3079 = vpop.f32.mrf.mxu0
        %v3080 = vadd.f32 0.0, %v3079
        %3081 = vmatmul.f32.gmra.mxu0 %v2988
        %v3082 = vpop.f32.mrf.mxu0
        %v3083 = vadd.f32 0.0, %v3082
        %3084 = vmatmul.f32.gmra.mxu0 %v2990
        %v3085 = vpop.f32.mrf.mxu0
        %v3086 = vadd.f32 0.0, %v3085
        %3087 = vmatmul.f32.gmra.mxu0 %v2993
        %v3088 = vpop.f32.mrf.mxu0
        %v3089 = vadd.f32 0.0, %v3088
        %3090 = vmatmul.f32.gmra.mxu0 %v2995
        %v3091 = vpop.f32.mrf.mxu0
        %v3092 = vadd.f32 0.0, %v3091
        %3093 = vdwg.mxu0
        %v3094 = vadd.f32 %v2901, %v3047
        %v3095 = vadd.f32 %v2904, %v3050
        %v3096 = vadd.f32 %v2907, %v3053
        %v3097 = vadd.f32 %v2910, %v3056
        %v3098 = vadd.f32 %v2913, %v3059
        %v3099 = vadd.f32 %v2916, %v3062
        %v3100 = vadd.f32 %v2919, %v3065
        %v3101 = vadd.f32 %v2922, %v3068
        %v3102 = vadd.f32 %v2925, %v3071
        %v3103 = vadd.f32 %v2928, %v3074
        %v3104 = vadd.f32 %v2931, %v3077
        %v3105 = vadd.f32 %v2934, %v3080
        %v3106 = vadd.f32 %v2937, %v3083
        %v3107 = vadd.f32 %v2940, %v3086
        %v3108 = vadd.f32 %v2943, %v3089
        %v3109 = vadd.f32 %v2946, %v3092
        %v3113 = vrot.slane %v2664, 7
        %v3114 = vrot.slane %v2665, 7
        %v3115 = vsel %vm539, %v3113, %v3114
        %v3116 = vrot.slane %v2666, 7
        %v3117 = vsel %vm539, %v3114, %v3116
        %s3120 = scalar_lea.vmem [#allocation7], 384
        %v3121 = vld [vmem:[%s3120] sm:$0xff]
        %v3122 = vld [vmem:[%s3120 + $0x8] sm:$0xff]
        %v3123 = vld [vmem:[%s3120 + $0x10] sm:$0xff]
        %v3124 = vld [vmem:[%s3120 + $0x18] sm:$0xff]
        %v3125 = vld [vmem:[%s3120 + $0x20] sm:$0xff]
        %v3126 = vld [vmem:[%s3120 + $0x28] sm:$0xff]
        %v3127 = vld [vmem:[%s3120 + $0x30] sm:$0xff]
        %v3128 = vld [vmem:[%s3120 + $0x38] sm:$0xff]
        %v3129 = vld [vmem:[%s3120 + $0x40] sm:$0xff]
        %v3130 = vld [vmem:[%s3120 + $0x48] sm:$0xff]
        %v3131 = vld [vmem:[%s3120 + $0x50] sm:$0xff]
        %v3132 = vld [vmem:[%s3120 + $0x58] sm:$0xff]
        %v3133 = vld [vmem:[%s3120 + $0x60] sm:$0xff]
        %v3134 = vld [vmem:[%s3120 + $0x68] sm:$0xff]
        %v3135 = vld [vmem:[%s3120 + $0x70] sm:$0xff]
        %v3136 = vld [vmem:[%s3120 + $0x78] sm:$0xff]
        %3137 = vmatpush.msra.mxu0 %v3136
        %3138 = vmatpush.msra.mxu0 %v3135
        %3139 = vmatpush.msra.mxu0 %v3134
        %3140 = vmatpush.msra.mxu0 %v3133
        %3141 = vmatpush.msra.mxu0 %v3132
        %3142 = vmatpush.msra.mxu0 %v3131
        %3143 = vmatpush.msra.mxu0 %v3130
        %3144 = vmatpush.msra.mxu0 %v3129
        %3145 = vmatpush.msra.mxu0 %v3128
        %3146 = vmatpush.msra.mxu0 %v3127
        %3147 = vmatpush.msra.mxu0 %v3126
        %3148 = vmatpush.msra.mxu0 %v3125
        %3149 = vmatpush.msra.mxu0 %v3124
        %3150 = vmatpush.msra.mxu0 %v3123
        %3151 = vmatpush.msra.mxu0 %v3122
        %3152 = vmatpush.msra.mxu0 %v3121
        %3153 = vmatmul.f32.gmra.mxu0 %v2736
        %v3154 = vpop.f32.mrf.mxu0
        %v3155 = vadd.f32 0.0, %v3154
        %3156 = vmatmul.f32.gmra.mxu0 %v2738
        %v3157 = vpop.f32.mrf.mxu0
        %v3158 = vadd.f32 0.0, %v3157
        %3159 = vmatmul.f32.gmra.mxu0 %v2741
        %v3160 = vpop.f32.mrf.mxu0
        %v3161 = vadd.f32 0.0, %v3160
        %3162 = vmatmul.f32.gmra.mxu0 %v2743
        %v3163 = vpop.f32.mrf.mxu0
        %v3164 = vadd.f32 0.0, %v3163
        %3165 = vmatmul.f32.gmra.mxu0 %v2746
        %v3166 = vpop.f32.mrf.mxu0
        %v3167 = vadd.f32 0.0, %v3166
        %3168 = vmatmul.f32.gmra.mxu0 %v2748
        %v3169 = vpop.f32.mrf.mxu0
        %v3170 = vadd.f32 0.0, %v3169
        %3171 = vmatmul.f32.gmra.mxu0 %v2751
        %v3172 = vpop.f32.mrf.mxu0
        %v3173 = vadd.f32 0.0, %v3172
        %3174 = vmatmul.f32.gmra.mxu0 %v2753
        %v3175 = vpop.f32.mrf.mxu0
        %v3176 = vadd.f32 0.0, %v3175
        %3177 = vmatmul.f32.gmra.mxu0 %v2756
        %v3178 = vpop.f32.mrf.mxu0
        %v3179 = vadd.f32 0.0, %v3178
        %3180 = vmatmul.f32.gmra.mxu0 %v2758
        %v3181 = vpop.f32.mrf.mxu0
        %v3182 = vadd.f32 0.0, %v3181
        %3183 = vmatmul.f32.gmra.mxu0 %v2761
        %v3184 = vpop.f32.mrf.mxu0
        %v3185 = vadd.f32 0.0, %v3184
        %3186 = vmatmul.f32.gmra.mxu0 %v2763
        %v3187 = vpop.f32.mrf.mxu0
        %v3188 = vadd.f32 0.0, %v3187
        %3189 = vmatmul.f32.gmra.mxu0 %v2766
        %v3190 = vpop.f32.mrf.mxu0
        %v3191 = vadd.f32 0.0, %v3190
        %3192 = vmatmul.f32.gmra.mxu0 %v2768
        %v3193 = vpop.f32.mrf.mxu0
        %v3194 = vadd.f32 0.0, %v3193
        %3195 = vmatmul.f32.gmra.mxu0 %v3115
        %v3196 = vpop.f32.mrf.mxu0
        %v3197 = vadd.f32 0.0, %v3196
        %3198 = vmatmul.f32.gmra.mxu0 %v3117
        %v3199 = vpop.f32.mrf.mxu0
        %v3200 = vadd.f32 0.0, %v3199
        %3201 = vdwg.mxu0
        %v3202 = vadd.f32 %v3094, %v3155
        %v3203 = vadd.f32 %v3095, %v3158
        %v3204 = vadd.f32 %v3096, %v3161
        %v3205 = vadd.f32 %v3097, %v3164
        %v3206 = vadd.f32 %v3098, %v3167
        %v3207 = vadd.f32 %v3099, %v3170
        %v3208 = vadd.f32 %v3100, %v3173
        %v3209 = vadd.f32 %v3101, %v3176
        %v3210 = vadd.f32 %v3102, %v3179
        %v3211 = vadd.f32 %v3103, %v3182
        %v3212 = vadd.f32 %v3104, %v3185
        %v3213 = vadd.f32 %v3105, %v3188
        %v3214 = vadd.f32 %v3106, %v3191
        %v3215 = vadd.f32 %v3107, %v3194
        %v3216 = vadd.f32 %v3108, %v3197
        %v3217 = vadd.f32 %v3109, %v3200
        %s3218 = scalar_lea.vmem [#allocation7], 512
        %v3219 = vld [vmem:[%s3218] sm:$0xff]
        %v3220 = vld [vmem:[%s3218 + $0x8] sm:$0xff]
        %v3221 = vld [vmem:[%s3218 + $0x10] sm:$0xff]
        %v3222 = vld [vmem:[%s3218 + $0x18] sm:$0xff]
        %v3223 = vld [vmem:[%s3218 + $0x20] sm:$0xff]
        %v3224 = vld [vmem:[%s3218 + $0x28] sm:$0xff]
        %v3225 = vld [vmem:[%s3218 + $0x30] sm:$0xff]
        %v3226 = vld [vmem:[%s3218 + $0x38] sm:$0xff]
        %v3227 = vld [vmem:[%s3218 + $0x40] sm:$0xff]
        %v3228 = vld [vmem:[%s3218 + $0x48] sm:$0xff]
        %v3229 = vld [vmem:[%s3218 + $0x50] sm:$0xff]
        %v3230 = vld [vmem:[%s3218 + $0x58] sm:$0xff]
        %v3231 = vld [vmem:[%s3218 + $0x60] sm:$0xff]
        %v3232 = vld [vmem:[%s3218 + $0x68] sm:$0xff]
        %v3233 = vld [vmem:[%s3218 + $0x70] sm:$0xff]
        %v3234 = vld [vmem:[%s3218 + $0x78] sm:$0xff]
        %3235 = vmatpush.msra.mxu0 %v3234
        %3236 = vmatpush.msra.mxu0 %v3233
        %3237 = vmatpush.msra.mxu0 %v3232
        %3238 = vmatpush.msra.mxu0 %v3231
        %3239 = vmatpush.msra.mxu0 %v3230
        %3240 = vmatpush.msra.mxu0 %v3229
        %3241 = vmatpush.msra.mxu0 %v3228
        %3242 = vmatpush.msra.mxu0 %v3227
        %3243 = vmatpush.msra.mxu0 %v3226
        %3244 = vmatpush.msra.mxu0 %v3225
        %3245 = vmatpush.msra.mxu0 %v3224
        %3246 = vmatpush.msra.mxu0 %v3223
        %3247 = vmatpush.msra.mxu0 %v3222
        %3248 = vmatpush.msra.mxu0 %v3221
        %3249 = vmatpush.msra.mxu0 %v3220
        %3250 = vmatpush.msra.mxu0 %v3219
        %3251 = vmatmul.f32.gmra.mxu0 %v2637
        %v3252 = vpop.f32.mrf.mxu0
        %v3253 = vadd.f32 0.0, %v3252
        %3254 = vmatmul.f32.gmra.mxu0 %v2638
        %v3255 = vpop.f32.mrf.mxu0
        %v3256 = vadd.f32 0.0, %v3255
        %3257 = vmatmul.f32.gmra.mxu0 %v2641
        %v3258 = vpop.f32.mrf.mxu0
        %v3259 = vadd.f32 0.0, %v3258
        %3260 = vmatmul.f32.gmra.mxu0 %v2642
        %v3261 = vpop.f32.mrf.mxu0
        %v3262 = vadd.f32 0.0, %v3261
        %3263 = vmatmul.f32.gmra.mxu0 %v2645
        %v3264 = vpop.f32.mrf.mxu0
        %v3265 = vadd.f32 0.0, %v3264
        %3266 = vmatmul.f32.gmra.mxu0 %v2646
        %v3267 = vpop.f32.mrf.mxu0
        %v3268 = vadd.f32 0.0, %v3267
        %3269 = vmatmul.f32.gmra.mxu0 %v2649
        %v3270 = vpop.f32.mrf.mxu0
        %v3271 = vadd.f32 0.0, %v3270
        %3272 = vmatmul.f32.gmra.mxu0 %v2650
        %v3273 = vpop.f32.mrf.mxu0
        %v3274 = vadd.f32 0.0, %v3273
        %3275 = vmatmul.f32.gmra.mxu0 %v2653
        %v3276 = vpop.f32.mrf.mxu0
        %v3277 = vadd.f32 0.0, %v3276
        %3278 = vmatmul.f32.gmra.mxu0 %v2654
        %v3279 = vpop.f32.mrf.mxu0
        %v3280 = vadd.f32 0.0, %v3279
        %3281 = vmatmul.f32.gmra.mxu0 %v2657
        %v3282 = vpop.f32.mrf.mxu0
        %v3283 = vadd.f32 0.0, %v3282
        %3284 = vmatmul.f32.gmra.mxu0 %v2658
        %v3285 = vpop.f32.mrf.mxu0
        %v3286 = vadd.f32 0.0, %v3285
        %3287 = vmatmul.f32.gmra.mxu0 %v2661
        %v3288 = vpop.f32.mrf.mxu0
        %v3289 = vadd.f32 0.0, %v3288
        %3290 = vmatmul.f32.gmra.mxu0 %v2662
        %v3291 = vpop.f32.mrf.mxu0
        %v3292 = vadd.f32 0.0, %v3291
        %3293 = vmatmul.f32.gmra.mxu0 %v2665
        %v3294 = vpop.f32.mrf.mxu0
        %v3295 = vadd.f32 0.0, %v3294
        %3296 = vmatmul.f32.gmra.mxu0 %v2666
        %v3297 = vpop.f32.mrf.mxu0
        %v3298 = vadd.f32 0.0, %v3297
        %3299 = vdwg.mxu0
        %v3300 = vadd.f32 %v3202, %v3253
        %v3301 = vadd.f32 %v3203, %v3256
        %v3302 = vadd.f32 %v3204, %v3259
        %v3303 = vadd.f32 %v3205, %v3262
        %v3304 = vadd.f32 %v3206, %v3265
        %v3305 = vadd.f32 %v3207, %v3268
        %v3306 = vadd.f32 %v3208, %v3271
        %v3307 = vadd.f32 %v3209, %v3274
        %v3308 = vadd.f32 %v3210, %v3277
        %v3309 = vadd.f32 %v3211, %v3280
        %v3310 = vadd.f32 %v3212, %v3283
        %v3311 = vadd.f32 %v3213, %v3286
        %v3312 = vadd.f32 %v3214, %v3289
        %v3313 = vadd.f32 %v3215, %v3292
        %v3314 = vadd.f32 %v3216, %v3295
        %v3315 = vadd.f32 %v3217, %v3298
        %v3317 = vrot.slane %v2665, 1
        %v3318 = vrot.slane %v2666, 1
        %v3319 = vsel %vm767, %v3317, %v3318
        %v3320 = vrot.slane %v2667, 1
        %v3321 = vsel %vm767, %v3318, %v3320
        %s3324 = scalar_lea.vmem [#allocation7], 640
        %v3325 = vld [vmem:[%s3324] sm:$0xff]
        %v3326 = vld [vmem:[%s3324 + $0x8] sm:$0xff]
        %v3327 = vld [vmem:[%s3324 + $0x10] sm:$0xff]
        %v3328 = vld [vmem:[%s3324 + $0x18] sm:$0xff]
        %v3329 = vld [vmem:[%s3324 + $0x20] sm:$0xff]
        %v3330 = vld [vmem:[%s3324 + $0x28] sm:$0xff]
        %v3331 = vld [vmem:[%s3324 + $0x30] sm:$0xff]
        %v3332 = vld [vmem:[%s3324 + $0x38] sm:$0xff]
        %v3333 = vld [vmem:[%s3324 + $0x40] sm:$0xff]
        %v3334 = vld [vmem:[%s3324 + $0x48] sm:$0xff]
        %v3335 = vld [vmem:[%s3324 + $0x50] sm:$0xff]
        %v3336 = vld [vmem:[%s3324 + $0x58] sm:$0xff]
        %v3337 = vld [vmem:[%s3324 + $0x60] sm:$0xff]
        %v3338 = vld [vmem:[%s3324 + $0x68] sm:$0xff]
        %v3339 = vld [vmem:[%s3324 + $0x70] sm:$0xff]
        %v3340 = vld [vmem:[%s3324 + $0x78] sm:$0xff]
        %3341 = vmatpush.msra.mxu0 %v3340
        %3342 = vmatpush.msra.mxu0 %v3339
        %3343 = vmatpush.msra.mxu0 %v3338
        %3344 = vmatpush.msra.mxu0 %v3337
        %3345 = vmatpush.msra.mxu0 %v3336
        %3346 = vmatpush.msra.mxu0 %v3335
        %3347 = vmatpush.msra.mxu0 %v3334
        %3348 = vmatpush.msra.mxu0 %v3333
        %3349 = vmatpush.msra.mxu0 %v3332
        %3350 = vmatpush.msra.mxu0 %v3331
        %3351 = vmatpush.msra.mxu0 %v3330
        %3352 = vmatpush.msra.mxu0 %v3329
        %3353 = vmatpush.msra.mxu0 %v3328
        %3354 = vmatpush.msra.mxu0 %v3327
        %3355 = vmatpush.msra.mxu0 %v3326
        %3356 = vmatpush.msra.mxu0 %v3325
        %3357 = vmatmul.f32.gmra.mxu0 %v2963
        %v3358 = vpop.f32.mrf.mxu0
        %v3359 = vadd.f32 0.0, %v3358
        %3360 = vmatmul.f32.gmra.mxu0 %v2965
        %v3361 = vpop.f32.mrf.mxu0
        %v3362 = vadd.f32 0.0, %v3361
        %3363 = vmatmul.f32.gmra.mxu0 %v2968
        %v3364 = vpop.f32.mrf.mxu0
        %v3365 = vadd.f32 0.0, %v3364
        %3366 = vmatmul.f32.gmra.mxu0 %v2970
        %v3367 = vpop.f32.mrf.mxu0
        %v3368 = vadd.f32 0.0, %v3367
        %3369 = vmatmul.f32.gmra.mxu0 %v2973
        %v3370 = vpop.f32.mrf.mxu0
        %v3371 = vadd.f32 0.0, %v3370
        %3372 = vmatmul.f32.gmra.mxu0 %v2975
        %v3373 = vpop.f32.mrf.mxu0
        %v3374 = vadd.f32 0.0, %v3373
        %3375 = vmatmul.f32.gmra.mxu0 %v2978
        %v3376 = vpop.f32.mrf.mxu0
        %v3377 = vadd.f32 0.0, %v3376
        %3378 = vmatmul.f32.gmra.mxu0 %v2980
        %v3379 = vpop.f32.mrf.mxu0
        %v3380 = vadd.f32 0.0, %v3379
        %3381 = vmatmul.f32.gmra.mxu0 %v2983
        %v3382 = vpop.f32.mrf.mxu0
        %v3383 = vadd.f32 0.0, %v3382
        %3384 = vmatmul.f32.gmra.mxu0 %v2985
        %v3385 = vpop.f32.mrf.mxu0
        %v3386 = vadd.f32 0.0, %v3385
        %3387 = vmatmul.f32.gmra.mxu0 %v2988
        %v3388 = vpop.f32.mrf.mxu0
        %v3389 = vadd.f32 0.0, %v3388
        %3390 = vmatmul.f32.gmra.mxu0 %v2990
        %v3391 = vpop.f32.mrf.mxu0
        %v3392 = vadd.f32 0.0, %v3391
        %3393 = vmatmul.f32.gmra.mxu0 %v2993
        %v3394 = vpop.f32.mrf.mxu0
        %v3395 = vadd.f32 0.0, %v3394
        %3396 = vmatmul.f32.gmra.mxu0 %v2995
        %v3397 = vpop.f32.mrf.mxu0
        %v3398 = vadd.f32 0.0, %v3397
        %3399 = vmatmul.f32.gmra.mxu0 %v3319
        %v3400 = vpop.f32.mrf.mxu0
        %v3401 = vadd.f32 0.0, %v3400
        %3402 = vmatmul.f32.gmra.mxu0 %v3321
        %v3403 = vpop.f32.mrf.mxu0
        %v3404 = vadd.f32 0.0, %v3403
        %3405 = vdwg.mxu0
        %v3406 = vadd.f32 %v3300, %v3359
        %v3407 = vadd.f32 %v3301, %v3362
        %v3408 = vadd.f32 %v3302, %v3365
        %v3409 = vadd.f32 %v3303, %v3368
        %v3410 = vadd.f32 %v3304, %v3371
        %v3411 = vadd.f32 %v3305, %v3374
        %v3412 = vadd.f32 %v3306, %v3377
        %v3413 = vadd.f32 %v3307, %v3380
        %v3414 = vadd.f32 %v3308, %v3383
        %v3415 = vadd.f32 %v3309, %v3386
        %v3416 = vadd.f32 %v3310, %v3389
        %v3417 = vadd.f32 %v3311, %v3392
        %v3418 = vadd.f32 %v3312, %v3395
        %v3419 = vadd.f32 %v3313, %v3398
        %v3420 = vadd.f32 %v3314, %v3401
        %v3421 = vadd.f32 %v3315, %v3404
        %v3425 = vrot.slane %v2668, 7
        %v3426 = vrot.slane %v2669, 7
        %v3427 = vsel %vm539, %v3425, %v3426
        %v3428 = vrot.slane %v2670, 7
        %v3429 = vsel %vm539, %v3426, %v3428
        %s3432 = scalar_lea.vmem [#allocation7], 768
        %v3433 = vld [vmem:[%s3432] sm:$0xff]
        %v3434 = vld [vmem:[%s3432 + $0x8] sm:$0xff]
        %v3435 = vld [vmem:[%s3432 + $0x10] sm:$0xff]
        %v3436 = vld [vmem:[%s3432 + $0x18] sm:$0xff]
        %v3437 = vld [vmem:[%s3432 + $0x20] sm:$0xff]
        %v3438 = vld [vmem:[%s3432 + $0x28] sm:$0xff]
        %v3439 = vld [vmem:[%s3432 + $0x30] sm:$0xff]
        %v3440 = vld [vmem:[%s3432 + $0x38] sm:$0xff]
        %v3441 = vld [vmem:[%s3432 + $0x40] sm:$0xff]
        %v3442 = vld [vmem:[%s3432 + $0x48] sm:$0xff]
        %v3443 = vld [vmem:[%s3432 + $0x50] sm:$0xff]
        %v3444 = vld [vmem:[%s3432 + $0x58] sm:$0xff]
        %v3445 = vld [vmem:[%s3432 + $0x60] sm:$0xff]
        %v3446 = vld [vmem:[%s3432 + $0x68] sm:$0xff]
        %v3447 = vld [vmem:[%s3432 + $0x70] sm:$0xff]
        %v3448 = vld [vmem:[%s3432 + $0x78] sm:$0xff]
        %3449 = vmatpush.msra.mxu0 %v3448
        %3450 = vmatpush.msra.mxu0 %v3447
        %3451 = vmatpush.msra.mxu0 %v3446
        %3452 = vmatpush.msra.mxu0 %v3445
        %3453 = vmatpush.msra.mxu0 %v3444
        %3454 = vmatpush.msra.mxu0 %v3443
        %3455 = vmatpush.msra.mxu0 %v3442
        %3456 = vmatpush.msra.mxu0 %v3441
        %3457 = vmatpush.msra.mxu0 %v3440
        %3458 = vmatpush.msra.mxu0 %v3439
        %3459 = vmatpush.msra.mxu0 %v3438
        %3460 = vmatpush.msra.mxu0 %v3437
        %3461 = vmatpush.msra.mxu0 %v3436
        %3462 = vmatpush.msra.mxu0 %v3435
        %3463 = vmatpush.msra.mxu0 %v3434
        %3464 = vmatpush.msra.mxu0 %v3433
        %3465 = vmatmul.f32.gmra.mxu0 %v2741
        %v3466 = vpop.f32.mrf.mxu0
        %v3467 = vadd.f32 0.0, %v3466
        %3468 = vmatmul.f32.gmra.mxu0 %v2743
        %v3469 = vpop.f32.mrf.mxu0
        %v3470 = vadd.f32 0.0, %v3469
        %3471 = vmatmul.f32.gmra.mxu0 %v2746
        %v3472 = vpop.f32.mrf.mxu0
        %v3473 = vadd.f32 0.0, %v3472
        %3474 = vmatmul.f32.gmra.mxu0 %v2748
        %v3475 = vpop.f32.mrf.mxu0
        %v3476 = vadd.f32 0.0, %v3475
        %3477 = vmatmul.f32.gmra.mxu0 %v2751
        %v3478 = vpop.f32.mrf.mxu0
        %v3479 = vadd.f32 0.0, %v3478
        %3480 = vmatmul.f32.gmra.mxu0 %v2753
        %v3481 = vpop.f32.mrf.mxu0
        %v3482 = vadd.f32 0.0, %v3481
        %3483 = vmatmul.f32.gmra.mxu0 %v2756
        %v3484 = vpop.f32.mrf.mxu0
        %v3485 = vadd.f32 0.0, %v3484
        %3486 = vmatmul.f32.gmra.mxu0 %v2758
        %v3487 = vpop.f32.mrf.mxu0
        %v3488 = vadd.f32 0.0, %v3487
        %3489 = vmatmul.f32.gmra.mxu0 %v2761
        %v3490 = vpop.f32.mrf.mxu0
        %v3491 = vadd.f32 0.0, %v3490
        %3492 = vmatmul.f32.gmra.mxu0 %v2763
        %v3493 = vpop.f32.mrf.mxu0
        %v3494 = vadd.f32 0.0, %v3493
        %3495 = vmatmul.f32.gmra.mxu0 %v2766
        %v3496 = vpop.f32.mrf.mxu0
        %v3497 = vadd.f32 0.0, %v3496
        %3498 = vmatmul.f32.gmra.mxu0 %v2768
        %v3499 = vpop.f32.mrf.mxu0
        %v3500 = vadd.f32 0.0, %v3499
        %3501 = vmatmul.f32.gmra.mxu0 %v3115
        %v3502 = vpop.f32.mrf.mxu0
        %v3503 = vadd.f32 0.0, %v3502
        %3504 = vmatmul.f32.gmra.mxu0 %v3117
        %v3505 = vpop.f32.mrf.mxu0
        %v3506 = vadd.f32 0.0, %v3505
        %3507 = vmatmul.f32.gmra.mxu0 %v3427
        %v3508 = vpop.f32.mrf.mxu0
        %v3509 = vadd.f32 0.0, %v3508
        %3510 = vmatmul.f32.gmra.mxu0 %v3429
        %v3511 = vpop.f32.mrf.mxu0
        %v3512 = vadd.f32 0.0, %v3511
        %3513 = vdwg.mxu0
        %v3514 = vadd.f32 %v3406, %v3467
        %v3515 = vadd.f32 %v3407, %v3470
        %v3516 = vadd.f32 %v3408, %v3473
        %v3517 = vadd.f32 %v3409, %v3476
        %v3518 = vadd.f32 %v3410, %v3479
        %v3519 = vadd.f32 %v3411, %v3482
        %v3520 = vadd.f32 %v3412, %v3485
        %v3521 = vadd.f32 %v3413, %v3488
        %v3522 = vadd.f32 %v3414, %v3491
        %v3523 = vadd.f32 %v3415, %v3494
        %v3524 = vadd.f32 %v3416, %v3497
        %v3525 = vadd.f32 %v3417, %v3500
        %v3526 = vadd.f32 %v3418, %v3503
        %v3527 = vadd.f32 %v3419, %v3506
        %v3528 = vadd.f32 %v3420, %v3509
        %v3529 = vadd.f32 %v3421, %v3512
        %s3530 = scalar_lea.vmem [#allocation7], 896
        %v3531 = vld [vmem:[%s3530] sm:$0xff]
        %v3532 = vld [vmem:[%s3530 + $0x8] sm:$0xff]
        %v3533 = vld [vmem:[%s3530 + $0x10] sm:$0xff]
        %v3534 = vld [vmem:[%s3530 + $0x18] sm:$0xff]
        %v3535 = vld [vmem:[%s3530 + $0x20] sm:$0xff]
        %v3536 = vld [vmem:[%s3530 + $0x28] sm:$0xff]
        %v3537 = vld [vmem:[%s3530 + $0x30] sm:$0xff]
        %v3538 = vld [vmem:[%s3530 + $0x38] sm:$0xff]
        %v3539 = vld [vmem:[%s3530 + $0x40] sm:$0xff]
        %v3540 = vld [vmem:[%s3530 + $0x48] sm:$0xff]
        %v3541 = vld [vmem:[%s3530 + $0x50] sm:$0xff]
        %v3542 = vld [vmem:[%s3530 + $0x58] sm:$0xff]
        %v3543 = vld [vmem:[%s3530 + $0x60] sm:$0xff]
        %v3544 = vld [vmem:[%s3530 + $0x68] sm:$0xff]
        %v3545 = vld [vmem:[%s3530 + $0x70] sm:$0xff]
        %v3546 = vld [vmem:[%s3530 + $0x78] sm:$0xff]
        %3547 = vmatpush.msra.mxu0 %v3546
        %3548 = vmatpush.msra.mxu0 %v3545
        %3549 = vmatpush.msra.mxu0 %v3544
        %3550 = vmatpush.msra.mxu0 %v3543
        %3551 = vmatpush.msra.mxu0 %v3542
        %3552 = vmatpush.msra.mxu0 %v3541
        %3553 = vmatpush.msra.mxu0 %v3540
        %3554 = vmatpush.msra.mxu0 %v3539
        %3555 = vmatpush.msra.mxu0 %v3538
        %3556 = vmatpush.msra.mxu0 %v3537
        %3557 = vmatpush.msra.mxu0 %v3536
        %3558 = vmatpush.msra.mxu0 %v3535
        %3559 = vmatpush.msra.mxu0 %v3534
        %3560 = vmatpush.msra.mxu0 %v3533
        %3561 = vmatpush.msra.mxu0 %v3532
        %3562 = vmatpush.msra.mxu0 %v3531
        %3563 = vmatmul.f32.gmra.mxu0 %v2641
        %v3564 = vpop.f32.mrf.mxu0
        %v3565 = vadd.f32 0.0, %v3564
        %3566 = vmatmul.f32.gmra.mxu0 %v2642
        %v3567 = vpop.f32.mrf.mxu0
        %v3568 = vadd.f32 0.0, %v3567
        %3569 = vmatmul.f32.gmra.mxu0 %v2645
        %v3570 = vpop.f32.mrf.mxu0
        %v3571 = vadd.f32 0.0, %v3570
        %3572 = vmatmul.f32.gmra.mxu0 %v2646
        %v3573 = vpop.f32.mrf.mxu0
        %v3574 = vadd.f32 0.0, %v3573
        %3575 = vmatmul.f32.gmra.mxu0 %v2649
        %v3576 = vpop.f32.mrf.mxu0
        %v3577 = vadd.f32 0.0, %v3576
        %3578 = vmatmul.f32.gmra.mxu0 %v2650
        %v3579 = vpop.f32.mrf.mxu0
        %v3580 = vadd.f32 0.0, %v3579
        %3581 = vmatmul.f32.gmra.mxu0 %v2653
        %v3582 = vpop.f32.mrf.mxu0
        %v3583 = vadd.f32 0.0, %v3582
        %3584 = vmatmul.f32.gmra.mxu0 %v2654
        %v3585 = vpop.f32.mrf.mxu0
        %v3586 = vadd.f32 0.0, %v3585
        %3587 = vmatmul.f32.gmra.mxu0 %v2657
        %v3588 = vpop.f32.mrf.mxu0
        %v3589 = vadd.f32 0.0, %v3588
        %3590 = vmatmul.f32.gmra.mxu0 %v2658
        %v3591 = vpop.f32.mrf.mxu0
        %v3592 = vadd.f32 0.0, %v3591
        %3593 = vmatmul.f32.gmra.mxu0 %v2661
        %v3594 = vpop.f32.mrf.mxu0
        %v3595 = vadd.f32 0.0, %v3594
        %3596 = vmatmul.f32.gmra.mxu0 %v2662
        %v3597 = vpop.f32.mrf.mxu0
        %v3598 = vadd.f32 0.0, %v3597
        %3599 = vmatmul.f32.gmra.mxu0 %v2665
        %v3600 = vpop.f32.mrf.mxu0
        %v3601 = vadd.f32 0.0, %v3600
        %3602 = vmatmul.f32.gmra.mxu0 %v2666
        %v3603 = vpop.f32.mrf.mxu0
        %v3604 = vadd.f32 0.0, %v3603
        %3605 = vmatmul.f32.gmra.mxu0 %v2669
        %v3606 = vpop.f32.mrf.mxu0
        %v3607 = vadd.f32 0.0, %v3606
        %3608 = vmatmul.f32.gmra.mxu0 %v2670
        %v3609 = vpop.f32.mrf.mxu0
        %v3610 = vadd.f32 0.0, %v3609
        %3611 = vdwg.mxu0
        %v3612 = vadd.f32 %v3514, %v3565
        %v3613 = vadd.f32 %v3515, %v3568
        %v3614 = vadd.f32 %v3516, %v3571
        %v3615 = vadd.f32 %v3517, %v3574
        %v3616 = vadd.f32 %v3518, %v3577
        %v3617 = vadd.f32 %v3519, %v3580
        %v3618 = vadd.f32 %v3520, %v3583
        %v3619 = vadd.f32 %v3521, %v3586
        %v3620 = vadd.f32 %v3522, %v3589
        %v3621 = vadd.f32 %v3523, %v3592
        %v3622 = vadd.f32 %v3524, %v3595
        %v3623 = vadd.f32 %v3525, %v3598
        %v3624 = vadd.f32 %v3526, %v3601
        %v3625 = vadd.f32 %v3527, %v3604
        %v3626 = vadd.f32 %v3528, %v3607
        %v3627 = vadd.f32 %v3529, %v3610
        %v3629 = vrot.slane %v2669, 1
        %v3630 = vrot.slane %v2670, 1
        %v3631 = vsel %vm767, %v3629, %v3630
        %v3632 = vrot.slane %v2671, 1
        %v3633 = vsel %vm767, %v3630, %v3632
        %s3636 = scalar_lea.vmem [#allocation7], 1024
        %v3637 = vld [vmem:[%s3636] sm:$0xff]
        %v3638 = vld [vmem:[%s3636 + $0x8] sm:$0xff]
        %v3639 = vld [vmem:[%s3636 + $0x10] sm:$0xff]
        %v3640 = vld [vmem:[%s3636 + $0x18] sm:$0xff]
        %v3641 = vld [vmem:[%s3636 + $0x20] sm:$0xff]
        %v3642 = vld [vmem:[%s3636 + $0x28] sm:$0xff]
        %v3643 = vld [vmem:[%s3636 + $0x30] sm:$0xff]
        %v3644 = vld [vmem:[%s3636 + $0x38] sm:$0xff]
        %v3645 = vld [vmem:[%s3636 + $0x40] sm:$0xff]
        %v3646 = vld [vmem:[%s3636 + $0x48] sm:$0xff]
        %v3647 = vld [vmem:[%s3636 + $0x50] sm:$0xff]
        %v3648 = vld [vmem:[%s3636 + $0x58] sm:$0xff]
        %v3649 = vld [vmem:[%s3636 + $0x60] sm:$0xff]
        %v3650 = vld [vmem:[%s3636 + $0x68] sm:$0xff]
        %v3651 = vld [vmem:[%s3636 + $0x70] sm:$0xff]
        %v3652 = vld [vmem:[%s3636 + $0x78] sm:$0xff]
        %3653 = vmatpush.msra.mxu0 %v3652
        %3654 = vmatpush.msra.mxu0 %v3651
        %3655 = vmatpush.msra.mxu0 %v3650
        %3656 = vmatpush.msra.mxu0 %v3649
        %3657 = vmatpush.msra.mxu0 %v3648
        %3658 = vmatpush.msra.mxu0 %v3647
        %3659 = vmatpush.msra.mxu0 %v3646
        %3660 = vmatpush.msra.mxu0 %v3645
        %3661 = vmatpush.msra.mxu0 %v3644
        %3662 = vmatpush.msra.mxu0 %v3643
        %3663 = vmatpush.msra.mxu0 %v3642
        %3664 = vmatpush.msra.mxu0 %v3641
        %3665 = vmatpush.msra.mxu0 %v3640
        %3666 = vmatpush.msra.mxu0 %v3639
        %3667 = vmatpush.msra.mxu0 %v3638
        %3668 = vmatpush.msra.mxu0 %v3637
        %3669 = vmatmul.f32.gmra.mxu0 %v2968
        %v3670 = vpop.f32.mrf.mxu0
        %v3671 = vadd.f32 0.0, %v3670
        %3672 = vmatmul.f32.gmra.mxu0 %v2970
        %v3673 = vpop.f32.mrf.mxu0
        %v3674 = vadd.f32 0.0, %v3673
        %3675 = vmatmul.f32.gmra.mxu0 %v2973
        %v3676 = vpop.f32.mrf.mxu0
        %v3677 = vadd.f32 0.0, %v3676
        %3678 = vmatmul.f32.gmra.mxu0 %v2975
        %v3679 = vpop.f32.mrf.mxu0
        %v3680 = vadd.f32 0.0, %v3679
        %3681 = vmatmul.f32.gmra.mxu0 %v2978
        %v3682 = vpop.f32.mrf.mxu0
        %v3683 = vadd.f32 0.0, %v3682
        %3684 = vmatmul.f32.gmra.mxu0 %v2980
        %v3685 = vpop.f32.mrf.mxu0
        %v3686 = vadd.f32 0.0, %v3685
        %3687 = vmatmul.f32.gmra.mxu0 %v2983
        %v3688 = vpop.f32.mrf.mxu0
        %v3689 = vadd.f32 0.0, %v3688
        %3690 = vmatmul.f32.gmra.mxu0 %v2985
        %v3691 = vpop.f32.mrf.mxu0
        %v3692 = vadd.f32 0.0, %v3691
        %3693 = vmatmul.f32.gmra.mxu0 %v2988
        %v3694 = vpop.f32.mrf.mxu0
        %v3695 = vadd.f32 0.0, %v3694
        %3696 = vmatmul.f32.gmra.mxu0 %v2990
        %v3697 = vpop.f32.mrf.mxu0
        %v3698 = vadd.f32 0.0, %v3697
        %3699 = vmatmul.f32.gmra.mxu0 %v2993
        %v3700 = vpop.f32.mrf.mxu0
        %v3701 = vadd.f32 0.0, %v3700
        %3702 = vmatmul.f32.gmra.mxu0 %v2995
        %v3703 = vpop.f32.mrf.mxu0
        %v3704 = vadd.f32 0.0, %v3703
        %3705 = vmatmul.f32.gmra.mxu0 %v3319
        %v3706 = vpop.f32.mrf.mxu0
        %v3707 = vadd.f32 0.0, %v3706
        %3708 = vmatmul.f32.gmra.mxu0 %v3321
        %v3709 = vpop.f32.mrf.mxu0
        %v3710 = vadd.f32 0.0, %v3709
        %3711 = vmatmul.f32.gmra.mxu0 %v3631
        %v3712 = vpop.f32.mrf.mxu0
        %v3713 = vadd.f32 0.0, %v3712
        %3714 = vmatmul.f32.gmra.mxu0 %v3633
        %v3715 = vpop.f32.mrf.mxu0
        %v3716 = vadd.f32 0.0, %v3715
        %3717 = vdwg.mxu0
        %v3718 = vadd.f32 %v3612, %v3671
        %v3719 = vadd.f32 %v3613, %v3674
        %v3720 = vadd.f32 %v3614, %v3677
        %v3721 = vadd.f32 %v3615, %v3680
        %v3722 = vadd.f32 %v3616, %v3683
        %v3723 = vadd.f32 %v3617, %v3686
        %v3724 = vadd.f32 %v3618, %v3689
        %v3725 = vadd.f32 %v3619, %v3692
        %v3726 = vadd.f32 %v3620, %v3695
        %v3727 = vadd.f32 %v3621, %v3698
        %v3728 = vadd.f32 %v3622, %v3701
        %v3729 = vadd.f32 %v3623, %v3704
        %v3730 = vadd.f32 %v3624, %v3707
        %v3731 = vadd.f32 %v3625, %v3710
        %v3732 = vadd.f32 %v3626, %v3713
        %v3733 = vadd.f32 %v3627, %v3716
        %v3735 = vperm.slane %v2704, 0
        %v3737 = vadd.f32 %v3718, %v3735
        %v3738 = vadd.f32 %v3719, %v3735
        %v3739 = vadd.f32 %v3720, %v3735
        %v3740 = vadd.f32 %v3721, %v3735
        %v3741 = vadd.f32 %v3722, %v3735
        %v3742 = vadd.f32 %v3723, %v3735
        %v3743 = vadd.f32 %v3724, %v3735
        %v3744 = vadd.f32 %v3725, %v3735
        %v3745 = vadd.f32 %v3726, %v3735
        %v3746 = vadd.f32 %v3727, %v3735
        %v3747 = vadd.f32 %v3728, %v3735
        %v3748 = vadd.f32 %v3729, %v3735
        %v3749 = vadd.f32 %v3730, %v3735
        %v3750 = vadd.f32 %v3731, %v3735
        %v3751 = vadd.f32 %v3732, %v3735
        %v3752 = vadd.f32 %v3733, %v3735
        %v3753 = vmax.f32 %v3737, 0.0
        %v3754 = vmax.f32 %v3738, 0.0
        %v3755 = vmax.f32 %v3739, 0.0
        %v3756 = vmax.f32 %v3740, 0.0
        %v3757 = vmax.f32 %v3741, 0.0
        %v3758 = vmax.f32 %v3742, 0.0
        %v3759 = vmax.f32 %v3743, 0.0
        %v3760 = vmax.f32 %v3744, 0.0
        %v3761 = vmax.f32 %v3745, 0.0
        %v3762 = vmax.f32 %v3746, 0.0
        %v3763 = vmax.f32 %v3747, 0.0
        %v3764 = vmax.f32 %v3748, 0.0
        %v3765 = vmax.f32 %v3749, 0.0
        %v3766 = vmax.f32 %v3750, 0.0
        %v3767 = vmax.f32 %v3751, 0.0
        %v3768 = vmax.f32 %v3752, 0.0
        %3769 = vst [vmem:[%s251] sm:$0xff] %v3753
        %3770 = vst [vmem:[%s251 + $0x8] sm:$0xff] %v3754
        %3771 = vst [vmem:[%s251 + $0x10] sm:$0xff] %v3755
        %3772 = vst [vmem:[%s251 + $0x18] sm:$0xff] %v3756
        %3773 = vst [vmem:[%s251 + $0x20] sm:$0xff] %v3757
        %3774 = vst [vmem:[%s251 + $0x28] sm:$0xff] %v3758
        %3775 = vst [vmem:[%s251 + $0x30] sm:$0xff] %v3759
        %3776 = vst [vmem:[%s251 + $0x38] sm:$0xff] %v3760
        %3777 = vst [vmem:[%s251 + $0x40] sm:$0xff] %v3761
        %3778 = vst [vmem:[%s251 + $0x48] sm:$0xff] %v3762
        %3779 = vst [vmem:[%s251 + $0x50] sm:$0xff] %v3763
        %3780 = vst [vmem:[%s251 + $0x58] sm:$0xff] %v3764
        %3781 = vst [vmem:[%s251 + $0x60] sm:$0xff] %v3765
        %3782 = vst [vmem:[%s251 + $0x68] sm:$0xff] %v3766
        %3783 = vst [vmem:[%s251 + $0x70] sm:$0xff] %v3767
        %3784 = vst [vmem:[%s251 + $0x78] sm:$0xff] %v3768
        %v3803 = vrot.slane %v2672, 7
        %v3804 = vrot.slane %v2673, 7
        %v3805 = vsel %vm539, %v3803, %v3804
        %v3806 = vrot.slane %v2674, 7
        %v3807 = vsel %vm539, %v3804, %v3806
        %v3808 = vrot.slane %v2676, 7
        %v3809 = vrot.slane %v2677, 7
        %v3810 = vsel %vm539, %v3808, %v3809
        %v3811 = vrot.slane %v2678, 7
        %v3812 = vsel %vm539, %v3809, %v3811
        %v3813 = vrot.slane %v2680, 7
        %v3814 = vrot.slane %v2681, 7
        %v3815 = vsel %vm539, %v3813, %v3814
        %v3816 = vrot.slane %v2682, 7
        %v3817 = vsel %vm539, %v3814, %v3816
        %v3818 = vrot.slane %v2684, 7
        %v3819 = vrot.slane %v2685, 7
        %v3820 = vsel %vm539, %v3818, %v3819
        %v3821 = vrot.slane %v2686, 7
        %v3822 = vsel %vm539, %v3819, %v3821
        %v3823 = vrot.slane %v2688, 7
        %v3824 = vrot.slane %v2689, 7
        %v3825 = vsel %vm539, %v3823, %v3824
        %v3826 = vrot.slane %v2690, 7
        %v3827 = vsel %vm539, %v3824, %v3826
        %v3828 = vrot.slane %v2692, 7
        %v3829 = vrot.slane %v2693, 7
        %v3830 = vsel %vm539, %v3828, %v3829
        %v3831 = vrot.slane %v2694, 7
        %v3832 = vsel %vm539, %v3829, %v3831
        %v3845 = vld [vmem:[#allocation7] sm:$0xff]
        %v3846 = vld [vmem:[#allocation7 + $0x8] sm:$0xff]
        %v3847 = vld [vmem:[#allocation7 + $0x10] sm:$0xff]
        %v3848 = vld [vmem:[#allocation7 + $0x18] sm:$0xff]
        %v3849 = vld [vmem:[#allocation7 + $0x20] sm:$0xff]
        %v3850 = vld [vmem:[#allocation7 + $0x28] sm:$0xff]
        %v3851 = vld [vmem:[#allocation7 + $0x30] sm:$0xff]
        %v3852 = vld [vmem:[#allocation7 + $0x38] sm:$0xff]
        %v3853 = vld [vmem:[#allocation7 + $0x40] sm:$0xff]
        %v3854 = vld [vmem:[#allocation7 + $0x48] sm:$0xff]
        %v3855 = vld [vmem:[#allocation7 + $0x50] sm:$0xff]
        %v3856 = vld [vmem:[#allocation7 + $0x58] sm:$0xff]
        %v3857 = vld [vmem:[#allocation7 + $0x60] sm:$0xff]
        %v3858 = vld [vmem:[#allocation7 + $0x68] sm:$0xff]
        %v3859 = vld [vmem:[#allocation7 + $0x70] sm:$0xff]
        %v3860 = vld [vmem:[#allocation7 + $0x78] sm:$0xff]
        %v3861 = vld [vmem:[%s2801] sm:$0xff]
        %v3862 = vld [vmem:[%s2801 + $0x8] sm:$0xff]
        %v3863 = vld [vmem:[%s2801 + $0x10] sm:$0xff]
        %v3864 = vld [vmem:[%s2801 + $0x18] sm:$0xff]
        %v3865 = vld [vmem:[%s2801 + $0x20] sm:$0xff]
        %v3866 = vld [vmem:[%s2801 + $0x28] sm:$0xff]
        %v3867 = vld [vmem:[%s2801 + $0x30] sm:$0xff]
        %v3868 = vld [vmem:[%s2801 + $0x38] sm:$0xff]
        %v3869 = vld [vmem:[%s2801 + $0x40] sm:$0xff]
        %v3870 = vld [vmem:[%s2801 + $0x48] sm:$0xff]
        %v3871 = vld [vmem:[%s2801 + $0x50] sm:$0xff]
        %v3872 = vld [vmem:[%s2801 + $0x58] sm:$0xff]
        %v3873 = vld [vmem:[%s2801 + $0x60] sm:$0xff]
        %v3874 = vld [vmem:[%s2801 + $0x68] sm:$0xff]
        %v3875 = vld [vmem:[%s2801 + $0x70] sm:$0xff]
        %v3876 = vld [vmem:[%s2801 + $0x78] sm:$0xff]
        %3877 = vmatpush.msra.mxu0 %v3876
        %3878 = vmatpush.msra.mxu0 %v3875
        %3879 = vmatpush.msra.mxu0 %v3874
        %3880 = vmatpush.msra.mxu0 %v3873
        %3881 = vmatpush.msra.mxu0 %v3872
        %3882 = vmatpush.msra.mxu0 %v3871
        %3883 = vmatpush.msra.mxu0 %v3870
        %3884 = vmatpush.msra.mxu0 %v3869
        %3885 = vmatpush.msra.mxu0 %v3868
        %3886 = vmatpush.msra.mxu0 %v3867
        %3887 = vmatpush.msra.mxu0 %v3866
        %3888 = vmatpush.msra.mxu0 %v3865
        %3889 = vmatpush.msra.mxu0 %v3864
        %3890 = vmatpush.msra.mxu0 %v3863
        %3891 = vmatpush.msra.mxu0 %v3862
        %3892 = vmatpush.msra.mxu0 %v3861
        %3893 = vmatmul.f32.gmra.mxu0 %v2665
        %v3894 = vpop.f32.mrf.mxu0
        %v3895 = vadd.f32 0.0, %v3894
        %3896 = vmatmul.f32.gmra.mxu0 %v2666
        %v3897 = vpop.f32.mrf.mxu0
        %v3898 = vadd.f32 0.0, %v3897
        %3899 = vmatmul.f32.gmra.mxu0 %v2669
        %v3900 = vpop.f32.mrf.mxu0
        %v3901 = vadd.f32 0.0, %v3900
        %3902 = vmatmul.f32.gmra.mxu0 %v2670
        %v3903 = vpop.f32.mrf.mxu0
        %v3904 = vadd.f32 0.0, %v3903
        %3905 = vmatmul.f32.gmra.mxu0 %v2673
        %v3906 = vpop.f32.mrf.mxu0
        %v3907 = vadd.f32 0.0, %v3906
        %3908 = vmatmul.f32.gmra.mxu0 %v2674
        %v3909 = vpop.f32.mrf.mxu0
        %v3910 = vadd.f32 0.0, %v3909
        %3911 = vmatmul.f32.gmra.mxu0 %v2677
        %v3912 = vpop.f32.mrf.mxu0
        %v3913 = vadd.f32 0.0, %v3912
        %3914 = vmatmul.f32.gmra.mxu0 %v2678
        %v3915 = vpop.f32.mrf.mxu0
        %v3916 = vadd.f32 0.0, %v3915
        %3917 = vmatmul.f32.gmra.mxu0 %v2681
        %v3918 = vpop.f32.mrf.mxu0
        %v3919 = vadd.f32 0.0, %v3918
        %3920 = vmatmul.f32.gmra.mxu0 %v2682
        %v3921 = vpop.f32.mrf.mxu0
        %v3922 = vadd.f32 0.0, %v3921
        %3923 = vmatmul.f32.gmra.mxu0 %v2685
        %v3924 = vpop.f32.mrf.mxu0
        %v3925 = vadd.f32 0.0, %v3924
        %3926 = vmatmul.f32.gmra.mxu0 %v2686
        %v3927 = vpop.f32.mrf.mxu0
        %v3928 = vadd.f32 0.0, %v3927
        %3929 = vmatmul.f32.gmra.mxu0 %v2689
        %v3930 = vpop.f32.mrf.mxu0
        %v3931 = vadd.f32 0.0, %v3930
        %3932 = vmatmul.f32.gmra.mxu0 %v2690
        %v3933 = vpop.f32.mrf.mxu0
        %v3934 = vadd.f32 0.0, %v3933
        %3935 = vmatmul.f32.gmra.mxu0 %v2693
        %v3936 = vpop.f32.mrf.mxu0
        %v3937 = vadd.f32 0.0, %v3936
        %3938 = vmatmul.f32.gmra.mxu0 %v2694
        %v3939 = vpop.f32.mrf.mxu0
        %v3940 = vadd.f32 0.0, %v3939
        %3941 = vdwg.mxu0
        %3942 = vmatpush.msra.mxu0 %v3860
        %3943 = vmatpush.msra.mxu0 %v3859
        %3944 = vmatpush.msra.mxu0 %v3858
        %3945 = vmatpush.msra.mxu0 %v3857
        %3946 = vmatpush.msra.mxu0 %v3856
        %3947 = vmatpush.msra.mxu0 %v3855
        %3948 = vmatpush.msra.mxu0 %v3854
        %3949 = vmatpush.msra.mxu0 %v3853
        %3950 = vmatpush.msra.mxu0 %v3852
        %3951 = vmatpush.msra.mxu0 %v3851
        %3952 = vmatpush.msra.mxu0 %v3850
        %3953 = vmatpush.msra.mxu0 %v3849
        %3954 = vmatpush.msra.mxu0 %v3848
        %3955 = vmatpush.msra.mxu0 %v3847
        %3956 = vmatpush.msra.mxu0 %v3846
        %3957 = vmatpush.msra.mxu0 %v3845
        %3958 = vmatmul.f32.gmra.mxu0 %v3115
        %v3959 = vpop.f32.mrf.mxu0
        %v3960 = vadd.f32 %v3895, %v3959
        %3961 = vmatmul.f32.gmra.mxu0 %v3117
        %v3962 = vpop.f32.mrf.mxu0
        %v3963 = vadd.f32 %v3898, %v3962
        %3964 = vmatmul.f32.gmra.mxu0 %v3427
        %v3965 = vpop.f32.mrf.mxu0
        %v3966 = vadd.f32 %v3901, %v3965
        %3967 = vmatmul.f32.gmra.mxu0 %v3429
        %v3968 = vpop.f32.mrf.mxu0
        %v3969 = vadd.f32 %v3904, %v3968
        %3970 = vmatmul.f32.gmra.mxu0 %v3805
        %v3971 = vpop.f32.mrf.mxu0
        %v3972 = vadd.f32 %v3907, %v3971
        %3973 = vmatmul.f32.gmra.mxu0 %v3807
        %v3974 = vpop.f32.mrf.mxu0
        %v3975 = vadd.f32 %v3910, %v3974
        %3976 = vmatmul.f32.gmra.mxu0 %v3810
        %v3977 = vpop.f32.mrf.mxu0
        %v3978 = vadd.f32 %v3913, %v3977
        %3979 = vmatmul.f32.gmra.mxu0 %v3812
        %v3980 = vpop.f32.mrf.mxu0
        %v3981 = vadd.f32 %v3916, %v3980
        %3982 = vmatmul.f32.gmra.mxu0 %v3815
        %v3983 = vpop.f32.mrf.mxu0
        %v3984 = vadd.f32 %v3919, %v3983
        %3985 = vmatmul.f32.gmra.mxu0 %v3817
        %v3986 = vpop.f32.mrf.mxu0
        %v3987 = vadd.f32 %v3922, %v3986
        %3988 = vmatmul.f32.gmra.mxu0 %v3820
        %v3989 = vpop.f32.mrf.mxu0
        %v3990 = vadd.f32 %v3925, %v3989
        %3991 = vmatmul.f32.gmra.mxu0 %v3822
        %v3992 = vpop.f32.mrf.mxu0
        %v3993 = vadd.f32 %v3928, %v3992
        %3994 = vmatmul.f32.gmra.mxu0 %v3825
        %v3995 = vpop.f32.mrf.mxu0
        %v3996 = vadd.f32 %v3931, %v3995
        %3997 = vmatmul.f32.gmra.mxu0 %v3827
        %v3998 = vpop.f32.mrf.mxu0
        %v3999 = vadd.f32 %v3934, %v3998
        %4000 = vmatmul.f32.gmra.mxu0 %v3830
        %v4001 = vpop.f32.mrf.mxu0
        %v4002 = vadd.f32 %v3937, %v4001
        %4003 = vmatmul.f32.gmra.mxu0 %v3832
        %v4004 = vpop.f32.mrf.mxu0
        %v4005 = vadd.f32 %v3940, %v4004
        %4006 = vdwg.mxu0
        %v4013 = vrot.slane %v2673, 1
        %v4014 = vrot.slane %v2674, 1
        %v4015 = vsel %vm767, %v4013, %v4014
        %v4016 = vrot.slane %v2675, 1
        %v4017 = vsel %vm767, %v4014, %v4016
        %v4018 = vrot.slane %v2677, 1
        %v4019 = vrot.slane %v2678, 1
        %v4020 = vsel %vm767, %v4018, %v4019
        %v4021 = vrot.slane %v2679, 1
        %v4022 = vsel %vm767, %v4019, %v4021
        %v4023 = vrot.slane %v2681, 1
        %v4024 = vrot.slane %v2682, 1
        %v4025 = vsel %vm767, %v4023, %v4024
        %v4026 = vrot.slane %v2683, 1
        %v4027 = vsel %vm767, %v4024, %v4026
        %v4028 = vrot.slane %v2685, 1
        %v4029 = vrot.slane %v2686, 1
        %v4030 = vsel %vm767, %v4028, %v4029
        %v4031 = vrot.slane %v2687, 1
        %v4032 = vsel %vm767, %v4029, %v4031
        %v4033 = vrot.slane %v2689, 1
        %v4034 = vrot.slane %v2690, 1
        %v4035 = vsel %vm767, %v4033, %v4034
        %v4036 = vrot.slane %v2691, 1
        %v4037 = vsel %vm767, %v4034, %v4036
        %v4038 = vrot.slane %v2693, 1
        %v4039 = vrot.slane %v2694, 1
        %v4040 = vsel %vm767, %v4038, %v4039
        %v4041 = vrot.slane %v2695, 1
        %v4042 = vsel %vm767, %v4039, %v4041
        %v4055 = vld [vmem:[%s3012] sm:$0xff]
        %v4056 = vld [vmem:[%s3012 + $0x8] sm:$0xff]
        %v4057 = vld [vmem:[%s3012 + $0x10] sm:$0xff]
        %v4058 = vld [vmem:[%s3012 + $0x18] sm:$0xff]
        %v4059 = vld [vmem:[%s3012 + $0x20] sm:$0xff]
        %v4060 = vld [vmem:[%s3012 + $0x28] sm:$0xff]
        %v4061 = vld [vmem:[%s3012 + $0x30] sm:$0xff]
        %v4062 = vld [vmem:[%s3012 + $0x38] sm:$0xff]
        %v4063 = vld [vmem:[%s3012 + $0x40] sm:$0xff]
        %v4064 = vld [vmem:[%s3012 + $0x48] sm:$0xff]
        %v4065 = vld [vmem:[%s3012 + $0x50] sm:$0xff]
        %v4066 = vld [vmem:[%s3012 + $0x58] sm:$0xff]
        %v4067 = vld [vmem:[%s3012 + $0x60] sm:$0xff]
        %v4068 = vld [vmem:[%s3012 + $0x68] sm:$0xff]
        %v4069 = vld [vmem:[%s3012 + $0x70] sm:$0xff]
        %v4070 = vld [vmem:[%s3012 + $0x78] sm:$0xff]
        %4071 = vmatpush.msra.mxu0 %v4070
        %4072 = vmatpush.msra.mxu0 %v4069
        %4073 = vmatpush.msra.mxu0 %v4068
        %4074 = vmatpush.msra.mxu0 %v4067
        %4075 = vmatpush.msra.mxu0 %v4066
        %4076 = vmatpush.msra.mxu0 %v4065
        %4077 = vmatpush.msra.mxu0 %v4064
        %4078 = vmatpush.msra.mxu0 %v4063
        %4079 = vmatpush.msra.mxu0 %v4062
        %4080 = vmatpush.msra.mxu0 %v4061
        %4081 = vmatpush.msra.mxu0 %v4060
        %4082 = vmatpush.msra.mxu0 %v4059
        %4083 = vmatpush.msra.mxu0 %v4058
        %4084 = vmatpush.msra.mxu0 %v4057
        %4085 = vmatpush.msra.mxu0 %v4056
        %4086 = vmatpush.msra.mxu0 %v4055
        %4087 = vmatmul.f32.gmra.mxu0 %v3319
        %v4088 = vpop.f32.mrf.mxu0
        %v4089 = vadd.f32 0.0, %v4088
        %4090 = vmatmul.f32.gmra.mxu0 %v3321
        %v4091 = vpop.f32.mrf.mxu0
        %v4092 = vadd.f32 0.0, %v4091
        %4093 = vmatmul.f32.gmra.mxu0 %v3631
        %v4094 = vpop.f32.mrf.mxu0
        %v4095 = vadd.f32 0.0, %v4094
        %4096 = vmatmul.f32.gmra.mxu0 %v3633
        %v4097 = vpop.f32.mrf.mxu0
        %v4098 = vadd.f32 0.0, %v4097
        %4099 = vmatmul.f32.gmra.mxu0 %v4015
        %v4100 = vpop.f32.mrf.mxu0
        %v4101 = vadd.f32 0.0, %v4100
        %4102 = vmatmul.f32.gmra.mxu0 %v4017
        %v4103 = vpop.f32.mrf.mxu0
        %v4104 = vadd.f32 0.0, %v4103
        %4105 = vmatmul.f32.gmra.mxu0 %v4020
        %v4106 = vpop.f32.mrf.mxu0
        %v4107 = vadd.f32 0.0, %v4106
        %4108 = vmatmul.f32.gmra.mxu0 %v4022
        %v4109 = vpop.f32.mrf.mxu0
        %v4110 = vadd.f32 0.0, %v4109
        %4111 = vmatmul.f32.gmra.mxu0 %v4025
        %v4112 = vpop.f32.mrf.mxu0
        %v4113 = vadd.f32 0.0, %v4112
        %4114 = vmatmul.f32.gmra.mxu0 %v4027
        %v4115 = vpop.f32.mrf.mxu0
        %v4116 = vadd.f32 0.0, %v4115
        %4117 = vmatmul.f32.gmra.mxu0 %v4030
        %v4118 = vpop.f32.mrf.mxu0
        %v4119 = vadd.f32 0.0, %v4118
        %4120 = vmatmul.f32.gmra.mxu0 %v4032
        %v4121 = vpop.f32.mrf.mxu0
        %v4122 = vadd.f32 0.0, %v4121
        %4123 = vmatmul.f32.gmra.mxu0 %v4035
        %v4124 = vpop.f32.mrf.mxu0
        %v4125 = vadd.f32 0.0, %v4124
        %4126 = vmatmul.f32.gmra.mxu0 %v4037
        %v4127 = vpop.f32.mrf.mxu0
        %v4128 = vadd.f32 0.0, %v4127
        %4129 = vmatmul.f32.gmra.mxu0 %v4040
        %v4130 = vpop.f32.mrf.mxu0
        %v4131 = vadd.f32 0.0, %v4130
        %4132 = vmatmul.f32.gmra.mxu0 %v4042
        %v4133 = vpop.f32.mrf.mxu0
        %v4134 = vadd.f32 0.0, %v4133
        %4135 = vdwg.mxu0
        %v4136 = vadd.f32 %v3960, %v4089
        %v4137 = vadd.f32 %v3963, %v4092
        %v4138 = vadd.f32 %v3966, %v4095
        %v4139 = vadd.f32 %v3969, %v4098
        %v4140 = vadd.f32 %v3972, %v4101
        %v4141 = vadd.f32 %v3975, %v4104
        %v4142 = vadd.f32 %v3978, %v4107
        %v4143 = vadd.f32 %v3981, %v4110
        %v4144 = vadd.f32 %v3984, %v4113
        %v4145 = vadd.f32 %v3987, %v4116
        %v4146 = vadd.f32 %v3990, %v4119
        %v4147 = vadd.f32 %v3993, %v4122
        %v4148 = vadd.f32 %v3996, %v4125
        %v4149 = vadd.f32 %v3999, %v4128
        %v4150 = vadd.f32 %v4002, %v4131
        %v4151 = vadd.f32 %v4005, %v4134
        %v4155 = vrot.slane %v2696, 7
        %v4156 = vrot.slane %v2697, 7
        %v4157 = vsel %vm539, %v4155, %v4156
        %v4158 = vrot.slane %v2698, 7
        %v4159 = vsel %vm539, %v4156, %v4158
        %v4162 = vld [vmem:[%s3120] sm:$0xff]
        %v4163 = vld [vmem:[%s3120 + $0x8] sm:$0xff]
        %v4164 = vld [vmem:[%s3120 + $0x10] sm:$0xff]
        %v4165 = vld [vmem:[%s3120 + $0x18] sm:$0xff]
        %v4166 = vld [vmem:[%s3120 + $0x20] sm:$0xff]
        %v4167 = vld [vmem:[%s3120 + $0x28] sm:$0xff]
        %v4168 = vld [vmem:[%s3120 + $0x30] sm:$0xff]
        %v4169 = vld [vmem:[%s3120 + $0x38] sm:$0xff]
        %v4170 = vld [vmem:[%s3120 + $0x40] sm:$0xff]
        %v4171 = vld [vmem:[%s3120 + $0x48] sm:$0xff]
        %v4172 = vld [vmem:[%s3120 + $0x50] sm:$0xff]
        %v4173 = vld [vmem:[%s3120 + $0x58] sm:$0xff]
        %v4174 = vld [vmem:[%s3120 + $0x60] sm:$0xff]
        %v4175 = vld [vmem:[%s3120 + $0x68] sm:$0xff]
        %v4176 = vld [vmem:[%s3120 + $0x70] sm:$0xff]
        %v4177 = vld [vmem:[%s3120 + $0x78] sm:$0xff]
        %4178 = vmatpush.msra.mxu0 %v4177
        %4179 = vmatpush.msra.mxu0 %v4176
        %4180 = vmatpush.msra.mxu0 %v4175
        %4181 = vmatpush.msra.mxu0 %v4174
        %4182 = vmatpush.msra.mxu0 %v4173
        %4183 = vmatpush.msra.mxu0 %v4172
        %4184 = vmatpush.msra.mxu0 %v4171
        %4185 = vmatpush.msra.mxu0 %v4170
        %4186 = vmatpush.msra.mxu0 %v4169
        %4187 = vmatpush.msra.mxu0 %v4168
        %4188 = vmatpush.msra.mxu0 %v4167
        %4189 = vmatpush.msra.mxu0 %v4166
        %4190 = vmatpush.msra.mxu0 %v4165
        %4191 = vmatpush.msra.mxu0 %v4164
        %4192 = vmatpush.msra.mxu0 %v4163
        %4193 = vmatpush.msra.mxu0 %v4162
        %4194 = vmatmul.f32.gmra.mxu0 %v3427
        %v4195 = vpop.f32.mrf.mxu0
        %v4196 = vadd.f32 0.0, %v4195
        %4197 = vmatmul.f32.gmra.mxu0 %v3429
        %v4198 = vpop.f32.mrf.mxu0
        %v4199 = vadd.f32 0.0, %v4198
        %4200 = vmatmul.f32.gmra.mxu0 %v3805
        %v4201 = vpop.f32.mrf.mxu0
        %v4202 = vadd.f32 0.0, %v4201
        %4203 = vmatmul.f32.gmra.mxu0 %v3807
        %v4204 = vpop.f32.mrf.mxu0
        %v4205 = vadd.f32 0.0, %v4204
        %4206 = vmatmul.f32.gmra.mxu0 %v3810
        %v4207 = vpop.f32.mrf.mxu0
        %v4208 = vadd.f32 0.0, %v4207
        %4209 = vmatmul.f32.gmra.mxu0 %v3812
        %v4210 = vpop.f32.mrf.mxu0
        %v4211 = vadd.f32 0.0, %v4210
        %4212 = vmatmul.f32.gmra.mxu0 %v3815
        %v4213 = vpop.f32.mrf.mxu0
        %v4214 = vadd.f32 0.0, %v4213
        %4215 = vmatmul.f32.gmra.mxu0 %v3817
        %v4216 = vpop.f32.mrf.mxu0
        %v4217 = vadd.f32 0.0, %v4216
        %4218 = vmatmul.f32.gmra.mxu0 %v3820
        %v4219 = vpop.f32.mrf.mxu0
        %v4220 = vadd.f32 0.0, %v4219
        %4221 = vmatmul.f32.gmra.mxu0 %v3822
        %v4222 = vpop.f32.mrf.mxu0
        %v4223 = vadd.f32 0.0, %v4222
        %4224 = vmatmul.f32.gmra.mxu0 %v3825
        %v4225 = vpop.f32.mrf.mxu0
        %v4226 = vadd.f32 0.0, %v4225
        %4227 = vmatmul.f32.gmra.mxu0 %v3827
        %v4228 = vpop.f32.mrf.mxu0
        %v4229 = vadd.f32 0.0, %v4228
        %4230 = vmatmul.f32.gmra.mxu0 %v3830
        %v4231 = vpop.f32.mrf.mxu0
        %v4232 = vadd.f32 0.0, %v4231
        %4233 = vmatmul.f32.gmra.mxu0 %v3832
        %v4234 = vpop.f32.mrf.mxu0
        %v4235 = vadd.f32 0.0, %v4234
        %4236 = vmatmul.f32.gmra.mxu0 %v4157
        %v4237 = vpop.f32.mrf.mxu0
        %v4238 = vadd.f32 0.0, %v4237
        %4239 = vmatmul.f32.gmra.mxu0 %v4159
        %v4240 = vpop.f32.mrf.mxu0
        %v4241 = vadd.f32 0.0, %v4240
        %4242 = vdwg.mxu0
        %v4243 = vadd.f32 %v4136, %v4196
        %v4244 = vadd.f32 %v4137, %v4199
        %v4245 = vadd.f32 %v4138, %v4202
        %v4246 = vadd.f32 %v4139, %v4205
        %v4247 = vadd.f32 %v4140, %v4208
        %v4248 = vadd.f32 %v4141, %v4211
        %v4249 = vadd.f32 %v4142, %v4214
        %v4250 = vadd.f32 %v4143, %v4217
        %v4251 = vadd.f32 %v4144, %v4220
        %v4252 = vadd.f32 %v4145, %v4223
        %v4253 = vadd.f32 %v4146, %v4226
        %v4254 = vadd.f32 %v4147, %v4229
        %v4255 = vadd.f32 %v4148, %v4232
        %v4256 = vadd.f32 %v4149, %v4235
        %v4257 = vadd.f32 %v4150, %v4238
        %v4258 = vadd.f32 %v4151, %v4241
        %v4259 = vld [vmem:[%s3218] sm:$0xff]
        %v4260 = vld [vmem:[%s3218 + $0x8] sm:$0xff]
        %v4261 = vld [vmem:[%s3218 + $0x10] sm:$0xff]
        %v4262 = vld [vmem:[%s3218 + $0x18] sm:$0xff]
        %v4263 = vld [vmem:[%s3218 + $0x20] sm:$0xff]
        %v4264 = vld [vmem:[%s3218 + $0x28] sm:$0xff]
        %v4265 = vld [vmem:[%s3218 + $0x30] sm:$0xff]
        %v4266 = vld [vmem:[%s3218 + $0x38] sm:$0xff]
        %v4267 = vld [vmem:[%s3218 + $0x40] sm:$0xff]
        %v4268 = vld [vmem:[%s3218 + $0x48] sm:$0xff]
        %v4269 = vld [vmem:[%s3218 + $0x50] sm:$0xff]
        %v4270 = vld [vmem:[%s3218 + $0x58] sm:$0xff]
        %v4271 = vld [vmem:[%s3218 + $0x60] sm:$0xff]
        %v4272 = vld [vmem:[%s3218 + $0x68] sm:$0xff]
        %v4273 = vld [vmem:[%s3218 + $0x70] sm:$0xff]
        %v4274 = vld [vmem:[%s3218 + $0x78] sm:$0xff]
        %4275 = vmatpush.msra.mxu0 %v4274
        %4276 = vmatpush.msra.mxu0 %v4273
        %4277 = vmatpush.msra.mxu0 %v4272
        %4278 = vmatpush.msra.mxu0 %v4271
        %4279 = vmatpush.msra.mxu0 %v4270
        %4280 = vmatpush.msra.mxu0 %v4269
        %4281 = vmatpush.msra.mxu0 %v4268
        %4282 = vmatpush.msra.mxu0 %v4267
        %4283 = vmatpush.msra.mxu0 %v4266
        %4284 = vmatpush.msra.mxu0 %v4265
        %4285 = vmatpush.msra.mxu0 %v4264
        %4286 = vmatpush.msra.mxu0 %v4263
        %4287 = vmatpush.msra.mxu0 %v4262
        %4288 = vmatpush.msra.mxu0 %v4261
        %4289 = vmatpush.msra.mxu0 %v4260
        %4290 = vmatpush.msra.mxu0 %v4259
        %4291 = vmatmul.f32.gmra.mxu0 %v2669
        %v4292 = vpop.f32.mrf.mxu0
        %v4293 = vadd.f32 0.0, %v4292
        %4294 = vmatmul.f32.gmra.mxu0 %v2670
        %v4295 = vpop.f32.mrf.mxu0
        %v4296 = vadd.f32 0.0, %v4295
        %4297 = vmatmul.f32.gmra.mxu0 %v2673
        %v4298 = vpop.f32.mrf.mxu0
        %v4299 = vadd.f32 0.0, %v4298
        %4300 = vmatmul.f32.gmra.mxu0 %v2674
        %v4301 = vpop.f32.mrf.mxu0
        %v4302 = vadd.f32 0.0, %v4301
        %4303 = vmatmul.f32.gmra.mxu0 %v2677
        %v4304 = vpop.f32.mrf.mxu0
        %v4305 = vadd.f32 0.0, %v4304
        %4306 = vmatmul.f32.gmra.mxu0 %v2678
        %v4307 = vpop.f32.mrf.mxu0
        %v4308 = vadd.f32 0.0, %v4307
        %4309 = vmatmul.f32.gmra.mxu0 %v2681
        %v4310 = vpop.f32.mrf.mxu0
        %v4311 = vadd.f32 0.0, %v4310
        %4312 = vmatmul.f32.gmra.mxu0 %v2682
        %v4313 = vpop.f32.mrf.mxu0
        %v4314 = vadd.f32 0.0, %v4313
        %4315 = vmatmul.f32.gmra.mxu0 %v2685
        %v4316 = vpop.f32.mrf.mxu0
        %v4317 = vadd.f32 0.0, %v4316
        %4318 = vmatmul.f32.gmra.mxu0 %v2686
        %v4319 = vpop.f32.mrf.mxu0
        %v4320 = vadd.f32 0.0, %v4319
        %4321 = vmatmul.f32.gmra.mxu0 %v2689
        %v4322 = vpop.f32.mrf.mxu0
        %v4323 = vadd.f32 0.0, %v4322
        %4324 = vmatmul.f32.gmra.mxu0 %v2690
        %v4325 = vpop.f32.mrf.mxu0
        %v4326 = vadd.f32 0.0, %v4325
        %4327 = vmatmul.f32.gmra.mxu0 %v2693
        %v4328 = vpop.f32.mrf.mxu0
        %v4329 = vadd.f32 0.0, %v4328
        %4330 = vmatmul.f32.gmra.mxu0 %v2694
        %v4331 = vpop.f32.mrf.mxu0
        %v4332 = vadd.f32 0.0, %v4331
        %4333 = vmatmul.f32.gmra.mxu0 %v2697
        %v4334 = vpop.f32.mrf.mxu0
        %v4335 = vadd.f32 0.0, %v4334
        %4336 = vmatmul.f32.gmra.mxu0 %v2698
        %v4337 = vpop.f32.mrf.mxu0
        %v4338 = vadd.f32 0.0, %v4337
        %4339 = vdwg.mxu0
        %v4340 = vadd.f32 %v4243, %v4293
        %v4341 = vadd.f32 %v4244, %v4296
        %v4342 = vadd.f32 %v4245, %v4299
        %v4343 = vadd.f32 %v4246, %v4302
        %v4344 = vadd.f32 %v4247, %v4305
        %v4345 = vadd.f32 %v4248, %v4308
        %v4346 = vadd.f32 %v4249, %v4311
        %v4347 = vadd.f32 %v4250, %v4314
        %v4348 = vadd.f32 %v4251, %v4317
        %v4349 = vadd.f32 %v4252, %v4320
        %v4350 = vadd.f32 %v4253, %v4323
        %v4351 = vadd.f32 %v4254, %v4326
        %v4352 = vadd.f32 %v4255, %v4329
        %v4353 = vadd.f32 %v4256, %v4332
        %v4354 = vadd.f32 %v4257, %v4335
        %v4355 = vadd.f32 %v4258, %v4338
        %v4357 = vrot.slane %v2697, 1
        %v4358 = vrot.slane %v2698, 1
        %v4359 = vsel %vm767, %v4357, %v4358
        %v4360 = vrot.slane %v2699, 1
        %v4361 = vsel %vm767, %v4358, %v4360
        %v4364 = vld [vmem:[%s3324] sm:$0xff]
        %v4365 = vld [vmem:[%s3324 + $0x8] sm:$0xff]
        %v4366 = vld [vmem:[%s3324 + $0x10] sm:$0xff]
        %v4367 = vld [vmem:[%s3324 + $0x18] sm:$0xff]
        %v4368 = vld [vmem:[%s3324 + $0x20] sm:$0xff]
        %v4369 = vld [vmem:[%s3324 + $0x28] sm:$0xff]
        %v4370 = vld [vmem:[%s3324 + $0x30] sm:$0xff]
        %v4371 = vld [vmem:[%s3324 + $0x38] sm:$0xff]
        %v4372 = vld [vmem:[%s3324 + $0x40] sm:$0xff]
        %v4373 = vld [vmem:[%s3324 + $0x48] sm:$0xff]
        %v4374 = vld [vmem:[%s3324 + $0x50] sm:$0xff]
        %v4375 = vld [vmem:[%s3324 + $0x58] sm:$0xff]
        %v4376 = vld [vmem:[%s3324 + $0x60] sm:$0xff]
        %v4377 = vld [vmem:[%s3324 + $0x68] sm:$0xff]
        %v4378 = vld [vmem:[%s3324 + $0x70] sm:$0xff]
        %v4379 = vld [vmem:[%s3324 + $0x78] sm:$0xff]
        %4380 = vmatpush.msra.mxu0 %v4379
        %4381 = vmatpush.msra.mxu0 %v4378
        %4382 = vmatpush.msra.mxu0 %v4377
        %4383 = vmatpush.msra.mxu0 %v4376
        %4384 = vmatpush.msra.mxu0 %v4375
        %4385 = vmatpush.msra.mxu0 %v4374
        %4386 = vmatpush.msra.mxu0 %v4373
        %4387 = vmatpush.msra.mxu0 %v4372
        %4388 = vmatpush.msra.mxu0 %v4371
        %4389 = vmatpush.msra.mxu0 %v4370
        %4390 = vmatpush.msra.mxu0 %v4369
        %4391 = vmatpush.msra.mxu0 %v4368
        %4392 = vmatpush.msra.mxu0 %v4367
        %4393 = vmatpush.msra.mxu0 %v4366
        %4394 = vmatpush.msra.mxu0 %v4365
        %4395 = vmatpush.msra.mxu0 %v4364
        %4396 = vmatmul.f32.gmra.mxu0 %v3631
        %v4397 = vpop.f32.mrf.mxu0
        %v4398 = vadd.f32 0.0, %v4397
        %4399 = vmatmul.f32.gmra.mxu0 %v3633
        %v4400 = vpop.f32.mrf.mxu0
        %v4401 = vadd.f32 0.0, %v4400
        %4402 = vmatmul.f32.gmra.mxu0 %v4015
        %v4403 = vpop.f32.mrf.mxu0
        %v4404 = vadd.f32 0.0, %v4403
        %4405 = vmatmul.f32.gmra.mxu0 %v4017
        %v4406 = vpop.f32.mrf.mxu0
        %v4407 = vadd.f32 0.0, %v4406
        %4408 = vmatmul.f32.gmra.mxu0 %v4020
        %v4409 = vpop.f32.mrf.mxu0
        %v4410 = vadd.f32 0.0, %v4409
        %4411 = vmatmul.f32.gmra.mxu0 %v4022
        %v4412 = vpop.f32.mrf.mxu0
        %v4413 = vadd.f32 0.0, %v4412
        %4414 = vmatmul.f32.gmra.mxu0 %v4025
        %v4415 = vpop.f32.mrf.mxu0
        %v4416 = vadd.f32 0.0, %v4415
        %4417 = vmatmul.f32.gmra.mxu0 %v4027
        %v4418 = vpop.f32.mrf.mxu0
        %v4419 = vadd.f32 0.0, %v4418
        %4420 = vmatmul.f32.gmra.mxu0 %v4030
        %v4421 = vpop.f32.mrf.mxu0
        %v4422 = vadd.f32 0.0, %v4421
        %4423 = vmatmul.f32.gmra.mxu0 %v4032
        %v4424 = vpop.f32.mrf.mxu0
        %v4425 = vadd.f32 0.0, %v4424
        %4426 = vmatmul.f32.gmra.mxu0 %v4035
        %v4427 = vpop.f32.mrf.mxu0
        %v4428 = vadd.f32 0.0, %v4427
        %4429 = vmatmul.f32.gmra.mxu0 %v4037
        %v4430 = vpop.f32.mrf.mxu0
        %v4431 = vadd.f32 0.0, %v4430
        %4432 = vmatmul.f32.gmra.mxu0 %v4040
        %v4433 = vpop.f32.mrf.mxu0
        %v4434 = vadd.f32 0.0, %v4433
        %4435 = vmatmul.f32.gmra.mxu0 %v4042
        %v4436 = vpop.f32.mrf.mxu0
        %v4437 = vadd.f32 0.0, %v4436
        %4438 = vmatmul.f32.gmra.mxu0 %v4359
        %v4439 = vpop.f32.mrf.mxu0
        %v4440 = vadd.f32 0.0, %v4439
        %4441 = vmatmul.f32.gmra.mxu0 %v4361
        %v4442 = vpop.f32.mrf.mxu0
        %v4443 = vadd.f32 0.0, %v4442
        %4444 = vdwg.mxu0
        %v4445 = vadd.f32 %v4340, %v4398
        %v4446 = vadd.f32 %v4341, %v4401
        %v4447 = vadd.f32 %v4342, %v4404
        %v4448 = vadd.f32 %v4343, %v4407
        %v4449 = vadd.f32 %v4344, %v4410
        %v4450 = vadd.f32 %v4345, %v4413
        %v4451 = vadd.f32 %v4346, %v4416
        %v4452 = vadd.f32 %v4347, %v4419
        %v4453 = vadd.f32 %v4348, %v4422
        %v4454 = vadd.f32 %v4349, %v4425
        %v4455 = vadd.f32 %v4350, %v4428
        %v4456 = vadd.f32 %v4351, %v4431
        %v4457 = vadd.f32 %v4352, %v4434
        %v4458 = vadd.f32 %v4353, %v4437
        %v4459 = vadd.f32 %v4354, %v4440
        %v4460 = vadd.f32 %v4355, %v4443
        %v4464 = vrot.slane %v2700, 7
        %v4465 = vrot.slane %v2701, 7
        %v4466 = vsel %vm539, %v4464, %v4465
        %v4467 = vrot.slane %v2702, 7
        %v4468 = vsel %vm539, %v4465, %v4467
        %v4471 = vld [vmem:[%s3432] sm:$0xff]
        %v4472 = vld [vmem:[%s3432 + $0x8] sm:$0xff]
        %v4473 = vld [vmem:[%s3432 + $0x10] sm:$0xff]
        %v4474 = vld [vmem:[%s3432 + $0x18] sm:$0xff]
        %v4475 = vld [vmem:[%s3432 + $0x20] sm:$0xff]
        %v4476 = vld [vmem:[%s3432 + $0x28] sm:$0xff]
        %v4477 = vld [vmem:[%s3432 + $0x30] sm:$0xff]
        %v4478 = vld [vmem:[%s3432 + $0x38] sm:$0xff]
        %v4479 = vld [vmem:[%s3432 + $0x40] sm:$0xff]
        %v4480 = vld [vmem:[%s3432 + $0x48] sm:$0xff]
        %v4481 = vld [vmem:[%s3432 + $0x50] sm:$0xff]
        %v4482 = vld [vmem:[%s3432 + $0x58] sm:$0xff]
        %v4483 = vld [vmem:[%s3432 + $0x60] sm:$0xff]
        %v4484 = vld [vmem:[%s3432 + $0x68] sm:$0xff]
        %v4485 = vld [vmem:[%s3432 + $0x70] sm:$0xff]
        %v4486 = vld [vmem:[%s3432 + $0x78] sm:$0xff]
        %4487 = vmatpush.msra.mxu0 %v4486
        %4488 = vmatpush.msra.mxu0 %v4485
        %4489 = vmatpush.msra.mxu0 %v4484
        %4490 = vmatpush.msra.mxu0 %v4483
        %4491 = vmatpush.msra.mxu0 %v4482
        %4492 = vmatpush.msra.mxu0 %v4481
        %4493 = vmatpush.msra.mxu0 %v4480
        %4494 = vmatpush.msra.mxu0 %v4479
        %4495 = vmatpush.msra.mxu0 %v4478
        %4496 = vmatpush.msra.mxu0 %v4477
        %4497 = vmatpush.msra.mxu0 %v4476
        %4498 = vmatpush.msra.mxu0 %v4475
        %4499 = vmatpush.msra.mxu0 %v4474
        %4500 = vmatpush.msra.mxu0 %v4473
        %4501 = vmatpush.msra.mxu0 %v4472
        %4502 = vmatpush.msra.mxu0 %v4471
        %4503 = vmatmul.f32.gmra.mxu0 %v3805
        %v4504 = vpop.f32.mrf.mxu0
        %v4505 = vadd.f32 0.0, %v4504
        %4506 = vmatmul.f32.gmra.mxu0 %v3807
        %v4507 = vpop.f32.mrf.mxu0
        %v4508 = vadd.f32 0.0, %v4507
        %4509 = vmatmul.f32.gmra.mxu0 %v3810
        %v4510 = vpop.f32.mrf.mxu0
        %v4511 = vadd.f32 0.0, %v4510
        %4512 = vmatmul.f32.gmra.mxu0 %v3812
        %v4513 = vpop.f32.mrf.mxu0
        %v4514 = vadd.f32 0.0, %v4513
        %4515 = vmatmul.f32.gmra.mxu0 %v3815
        %v4516 = vpop.f32.mrf.mxu0
        %v4517 = vadd.f32 0.0, %v4516
        %4518 = vmatmul.f32.gmra.mxu0 %v3817
        %v4519 = vpop.f32.mrf.mxu0
        %v4520 = vadd.f32 0.0, %v4519
        %4521 = vmatmul.f32.gmra.mxu0 %v3820
        %v4522 = vpop.f32.mrf.mxu0
        %v4523 = vadd.f32 0.0, %v4522
        %4524 = vmatmul.f32.gmra.mxu0 %v3822
        %v4525 = vpop.f32.mrf.mxu0
        %v4526 = vadd.f32 0.0, %v4525
        %4527 = vmatmul.f32.gmra.mxu0 %v3825
        %v4528 = vpop.f32.mrf.mxu0
        %v4529 = vadd.f32 0.0, %v4528
        %4530 = vmatmul.f32.gmra.mxu0 %v3827
        %v4531 = vpop.f32.mrf.mxu0
        %v4532 = vadd.f32 0.0, %v4531
        %4533 = vmatmul.f32.gmra.mxu0 %v3830
        %v4534 = vpop.f32.mrf.mxu0
        %v4535 = vadd.f32 0.0, %v4534
        %4536 = vmatmul.f32.gmra.mxu0 %v3832
        %v4537 = vpop.f32.mrf.mxu0
        %v4538 = vadd.f32 0.0, %v4537
        %4539 = vmatmul.f32.gmra.mxu0 %v4157
        %v4540 = vpop.f32.mrf.mxu0
        %v4541 = vadd.f32 0.0, %v4540
        %4542 = vmatmul.f32.gmra.mxu0 %v4159
        %v4543 = vpop.f32.mrf.mxu0
        %v4544 = vadd.f32 0.0, %v4543
        %4545 = vmatmul.f32.gmra.mxu0 %v4466
        %v4546 = vpop.f32.mrf.mxu0
        %v4547 = vadd.f32 0.0, %v4546
        %4548 = vmatmul.f32.gmra.mxu0 %v4468
        %v4549 = vpop.f32.mrf.mxu0
        %v4550 = vadd.f32 0.0, %v4549
        %4551 = vdwg.mxu0
        %v4552 = vadd.f32 %v4445, %v4505
        %v4553 = vadd.f32 %v4446, %v4508
        %v4554 = vadd.f32 %v4447, %v4511
        %v4555 = vadd.f32 %v4448, %v4514
        %v4556 = vadd.f32 %v4449, %v4517
        %v4557 = vadd.f32 %v4450, %v4520
        %v4558 = vadd.f32 %v4451, %v4523
        %v4559 = vadd.f32 %v4452, %v4526
        %v4560 = vadd.f32 %v4453, %v4529
        %v4561 = vadd.f32 %v4454, %v4532
        %v4562 = vadd.f32 %v4455, %v4535
        %v4563 = vadd.f32 %v4456, %v4538
        %v4564 = vadd.f32 %v4457, %v4541
        %v4565 = vadd.f32 %v4458, %v4544
        %v4566 = vadd.f32 %v4459, %v4547
        %v4567 = vadd.f32 %v4460, %v4550
        %v4568 = vld [vmem:[%s3530] sm:$0xff]
        %v4569 = vld [vmem:[%s3530 + $0x8] sm:$0xff]
        %v4570 = vld [vmem:[%s3530 + $0x10] sm:$0xff]
        %v4571 = vld [vmem:[%s3530 + $0x18] sm:$0xff]
        %v4572 = vld [vmem:[%s3530 + $0x20] sm:$0xff]
        %v4573 = vld [vmem:[%s3530 + $0x28] sm:$0xff]
        %v4574 = vld [vmem:[%s3530 + $0x30] sm:$0xff]
        %v4575 = vld [vmem:[%s3530 + $0x38] sm:$0xff]
        %v4576 = vld [vmem:[%s3530 + $0x40] sm:$0xff]
        %v4577 = vld [vmem:[%s3530 + $0x48] sm:$0xff]
        %v4578 = vld [vmem:[%s3530 + $0x50] sm:$0xff]
        %v4579 = vld [vmem:[%s3530 + $0x58] sm:$0xff]
        %v4580 = vld [vmem:[%s3530 + $0x60] sm:$0xff]
        %v4581 = vld [vmem:[%s3530 + $0x68] sm:$0xff]
        %v4582 = vld [vmem:[%s3530 + $0x70] sm:$0xff]
        %v4583 = vld [vmem:[%s3530 + $0x78] sm:$0xff]
        %4584 = vmatpush.msra.mxu0 %v4583
        %4585 = vmatpush.msra.mxu0 %v4582
        %4586 = vmatpush.msra.mxu0 %v4581
        %4587 = vmatpush.msra.mxu0 %v4580
        %4588 = vmatpush.msra.mxu0 %v4579
        %4589 = vmatpush.msra.mxu0 %v4578
        %4590 = vmatpush.msra.mxu0 %v4577
        %4591 = vmatpush.msra.mxu0 %v4576
        %4592 = vmatpush.msra.mxu0 %v4575
        %4593 = vmatpush.msra.mxu0 %v4574
        %4594 = vmatpush.msra.mxu0 %v4573
        %4595 = vmatpush.msra.mxu0 %v4572
        %4596 = vmatpush.msra.mxu0 %v4571
        %4597 = vmatpush.msra.mxu0 %v4570
        %4598 = vmatpush.msra.mxu0 %v4569
        %4599 = vmatpush.msra.mxu0 %v4568
        %4600 = vmatmul.f32.gmra.mxu0 %v2673
        %v4601 = vpop.f32.mrf.mxu0
        %v4602 = vadd.f32 0.0, %v4601
        %4603 = vmatmul.f32.gmra.mxu0 %v2674
        %v4604 = vpop.f32.mrf.mxu0
        %v4605 = vadd.f32 0.0, %v4604
        %4606 = vmatmul.f32.gmra.mxu0 %v2677
        %v4607 = vpop.f32.mrf.mxu0
        %v4608 = vadd.f32 0.0, %v4607
        %4609 = vmatmul.f32.gmra.mxu0 %v2678
        %v4610 = vpop.f32.mrf.mxu0
        %v4611 = vadd.f32 0.0, %v4610
        %4612 = vmatmul.f32.gmra.mxu0 %v2681
        %v4613 = vpop.f32.mrf.mxu0
        %v4614 = vadd.f32 0.0, %v4613
        %4615 = vmatmul.f32.gmra.mxu0 %v2682
        %v4616 = vpop.f32.mrf.mxu0
        %v4617 = vadd.f32 0.0, %v4616
        %4618 = vmatmul.f32.gmra.mxu0 %v2685
        %v4619 = vpop.f32.mrf.mxu0
        %v4620 = vadd.f32 0.0, %v4619
        %4621 = vmatmul.f32.gmra.mxu0 %v2686
        %v4622 = vpop.f32.mrf.mxu0
        %v4623 = vadd.f32 0.0, %v4622
        %4624 = vmatmul.f32.gmra.mxu0 %v2689
        %v4625 = vpop.f32.mrf.mxu0
        %v4626 = vadd.f32 0.0, %v4625
        %4627 = vmatmul.f32.gmra.mxu0 %v2690
        %v4628 = vpop.f32.mrf.mxu0
        %v4629 = vadd.f32 0.0, %v4628
        %4630 = vmatmul.f32.gmra.mxu0 %v2693
        %v4631 = vpop.f32.mrf.mxu0
        %v4632 = vadd.f32 0.0, %v4631
        %4633 = vmatmul.f32.gmra.mxu0 %v2694
        %v4634 = vpop.f32.mrf.mxu0
        %v4635 = vadd.f32 0.0, %v4634
        %4636 = vmatmul.f32.gmra.mxu0 %v2697
        %v4637 = vpop.f32.mrf.mxu0
        %v4638 = vadd.f32 0.0, %v4637
        %4639 = vmatmul.f32.gmra.mxu0 %v2698
        %v4640 = vpop.f32.mrf.mxu0
        %v4641 = vadd.f32 0.0, %v4640
        %4642 = vmatmul.f32.gmra.mxu0 %v2701
        %v4643 = vpop.f32.mrf.mxu0
        %v4644 = vadd.f32 0.0, %v4643
        %4645 = vmatmul.f32.gmra.mxu0 %v2702
        %v4646 = vpop.f32.mrf.mxu0
        %v4647 = vadd.f32 0.0, %v4646
        %4648 = vdwg.mxu0
        %v4649 = vadd.f32 %v4552, %v4602
        %v4650 = vadd.f32 %v4553, %v4605
        %v4651 = vadd.f32 %v4554, %v4608
        %v4652 = vadd.f32 %v4555, %v4611
        %v4653 = vadd.f32 %v4556, %v4614
        %v4654 = vadd.f32 %v4557, %v4617
        %v4655 = vadd.f32 %v4558, %v4620
        %v4656 = vadd.f32 %v4559, %v4623
        %v4657 = vadd.f32 %v4560, %v4626
        %v4658 = vadd.f32 %v4561, %v4629
        %v4659 = vadd.f32 %v4562, %v4632
        %v4660 = vadd.f32 %v4563, %v4635
        %v4661 = vadd.f32 %v4564, %v4638
        %v4662 = vadd.f32 %v4565, %v4641
        %v4663 = vadd.f32 %v4566, %v4644
        %v4664 = vadd.f32 %v4567, %v4647
        %v4666 = vrot.slane %v2701, 1
        %v4667 = vrot.slane %v2702, 1
        %v4668 = vsel %vm767, %v4666, %v4667
        %v4669 = vrot.slane %v2703, 1
        %v4670 = vsel %vm767, %v4667, %v4669
        %v4673 = vld [vmem:[%s3636] sm:$0xff]
        %v4674 = vld [vmem:[%s3636 + $0x8] sm:$0xff]
        %v4675 = vld [vmem:[%s3636 + $0x10] sm:$0xff]
        %v4676 = vld [vmem:[%s3636 + $0x18] sm:$0xff]
        %v4677 = vld [vmem:[%s3636 + $0x20] sm:$0xff]
        %v4678 = vld [vmem:[%s3636 + $0x28] sm:$0xff]
        %v4679 = vld [vmem:[%s3636 + $0x30] sm:$0xff]
        %v4680 = vld [vmem:[%s3636 + $0x38] sm:$0xff]
        %v4681 = vld [vmem:[%s3636 + $0x40] sm:$0xff]
        %v4682 = vld [vmem:[%s3636 + $0x48] sm:$0xff]
        %v4683 = vld [vmem:[%s3636 + $0x50] sm:$0xff]
        %v4684 = vld [vmem:[%s3636 + $0x58] sm:$0xff]
        %v4685 = vld [vmem:[%s3636 + $0x60] sm:$0xff]
        %v4686 = vld [vmem:[%s3636 + $0x68] sm:$0xff]
        %v4687 = vld [vmem:[%s3636 + $0x70] sm:$0xff]
        %v4688 = vld [vmem:[%s3636 + $0x78] sm:$0xff]
        %4689 = vmatpush.msra.mxu0 %v4688
        %4690 = vmatpush.msra.mxu0 %v4687
        %4691 = vmatpush.msra.mxu0 %v4686
        %4692 = vmatpush.msra.mxu0 %v4685
        %4693 = vmatpush.msra.mxu0 %v4684
        %4694 = vmatpush.msra.mxu0 %v4683
        %4695 = vmatpush.msra.mxu0 %v4682
        %4696 = vmatpush.msra.mxu0 %v4681
        %4697 = vmatpush.msra.mxu0 %v4680
        %4698 = vmatpush.msra.mxu0 %v4679
        %4699 = vmatpush.msra.mxu0 %v4678
        %4700 = vmatpush.msra.mxu0 %v4677
        %4701 = vmatpush.msra.mxu0 %v4676
        %4702 = vmatpush.msra.mxu0 %v4675
        %4703 = vmatpush.msra.mxu0 %v4674
        %4704 = vmatpush.msra.mxu0 %v4673
        %4705 = vmatmul.f32.gmra.mxu0 %v4015
        %v4706 = vpop.f32.mrf.mxu0
        %v4707 = vadd.f32 0.0, %v4706
        %4708 = vmatmul.f32.gmra.mxu0 %v4017
        %v4709 = vpop.f32.mrf.mxu0
        %v4710 = vadd.f32 0.0, %v4709
        %4711 = vmatmul.f32.gmra.mxu0 %v4020
        %v4712 = vpop.f32.mrf.mxu0
        %v4713 = vadd.f32 0.0, %v4712
        %4714 = vmatmul.f32.gmra.mxu0 %v4022
        %v4715 = vpop.f32.mrf.mxu0
        %v4716 = vadd.f32 0.0, %v4715
        %4717 = vmatmul.f32.gmra.mxu0 %v4025
        %v4718 = vpop.f32.mrf.mxu0
        %v4719 = vadd.f32 0.0, %v4718
        %4720 = vmatmul.f32.gmra.mxu0 %v4027
        %v4721 = vpop.f32.mrf.mxu0
        %v4722 = vadd.f32 0.0, %v4721
        %4723 = vmatmul.f32.gmra.mxu0 %v4030
        %v4724 = vpop.f32.mrf.mxu0
        %v4725 = vadd.f32 0.0, %v4724
        %4726 = vmatmul.f32.gmra.mxu0 %v4032
        %v4727 = vpop.f32.mrf.mxu0
        %v4728 = vadd.f32 0.0, %v4727
        %4729 = vmatmul.f32.gmra.mxu0 %v4035
        %v4730 = vpop.f32.mrf.mxu0
        %v4731 = vadd.f32 0.0, %v4730
        %4732 = vmatmul.f32.gmra.mxu0 %v4037
        %v4733 = vpop.f32.mrf.mxu0
        %v4734 = vadd.f32 0.0, %v4733
        %4735 = vmatmul.f32.gmra.mxu0 %v4040
        %v4736 = vpop.f32.mrf.mxu0
        %v4737 = vadd.f32 0.0, %v4736
        %4738 = vmatmul.f32.gmra.mxu0 %v4042
        %v4739 = vpop.f32.mrf.mxu0
        %v4740 = vadd.f32 0.0, %v4739
        %4741 = vmatmul.f32.gmra.mxu0 %v4359
        %v4742 = vpop.f32.mrf.mxu0
        %v4743 = vadd.f32 0.0, %v4742
        %4744 = vmatmul.f32.gmra.mxu0 %v4361
        %v4745 = vpop.f32.mrf.mxu0
        %v4746 = vadd.f32 0.0, %v4745
        %4747 = vmatmul.f32.gmra.mxu0 %v4668
        %v4748 = vpop.f32.mrf.mxu0
        %v4749 = vadd.f32 0.0, %v4748
        %4750 = vmatmul.f32.gmra.mxu0 %v4670
        %v4751 = vpop.f32.mrf.mxu0
        %v4752 = vadd.f32 0.0, %v4751
        %4753 = vdwg.mxu0
        %v4754 = vadd.f32 %v4649, %v4707
        %v4755 = vadd.f32 %v4650, %v4710
        %v4756 = vadd.f32 %v4651, %v4713
        %v4757 = vadd.f32 %v4652, %v4716
        %v4758 = vadd.f32 %v4653, %v4719
        %v4759 = vadd.f32 %v4654, %v4722
        %v4760 = vadd.f32 %v4655, %v4725
        %v4761 = vadd.f32 %v4656, %v4728
        %v4762 = vadd.f32 %v4657, %v4731
        %v4763 = vadd.f32 %v4658, %v4734
        %v4764 = vadd.f32 %v4659, %v4737
        %v4765 = vadd.f32 %v4660, %v4740
        %v4766 = vadd.f32 %v4661, %v4743
        %v4767 = vadd.f32 %v4662, %v4746
        %v4768 = vadd.f32 %v4663, %v4749
        %v4769 = vadd.f32 %v4664, %v4752
        %v4770 = vadd.f32 %v4754, %v3735
        %v4771 = vadd.f32 %v4755, %v3735
        %v4772 = vadd.f32 %v4756, %v3735
        %v4773 = vadd.f32 %v4757, %v3735
        %v4774 = vadd.f32 %v4758, %v3735
        %v4775 = vadd.f32 %v4759, %v3735
        %v4776 = vadd.f32 %v4760, %v3735
        %v4777 = vadd.f32 %v4761, %v3735
        %v4778 = vadd.f32 %v4762, %v3735
        %v4779 = vadd.f32 %v4763, %v3735
        %v4780 = vadd.f32 %v4764, %v3735
        %v4781 = vadd.f32 %v4765, %v3735
        %v4782 = vadd.f32 %v4766, %v3735
        %v4783 = vadd.f32 %v4767, %v3735
        %v4784 = vadd.f32 %v4768, %v3735
        %v4785 = vadd.f32 %v4769, %v3735
        %v4786 = vmax.f32 %v4770, 0.0
        %v4787 = vmax.f32 %v4771, 0.0
        %v4788 = vmax.f32 %v4772, 0.0
        %v4789 = vmax.f32 %v4773, 0.0
        %v4790 = vmax.f32 %v4774, 0.0
        %v4791 = vmax.f32 %v4775, 0.0
        %v4792 = vmax.f32 %v4776, 0.0
        %v4793 = vmax.f32 %v4777, 0.0
        %v4794 = vmax.f32 %v4778, 0.0
        %v4795 = vmax.f32 %v4779, 0.0
        %v4796 = vmax.f32 %v4780, 0.0
        %v4797 = vmax.f32 %v4781, 0.0
        %v4798 = vmax.f32 %v4782, 0.0
        %v4799 = vmax.f32 %v4783, 0.0
        %v4800 = vmax.f32 %v4784, 0.0
        %v4801 = vmax.f32 %v4785, 0.0
        %s4802 = scalar_lea.vmem %s251, 128 [#allocation9]
        %4803 = vst [vmem:[%s4802] sm:$0xff] %v4786
        %4804 = vst [vmem:[%s4802 + $0x8] sm:$0xff] %v4787
        %4805 = vst [vmem:[%s4802 + $0x10] sm:$0xff] %v4788
        %4806 = vst [vmem:[%s4802 + $0x18] sm:$0xff] %v4789
        %4807 = vst [vmem:[%s4802 + $0x20] sm:$0xff] %v4790
        %4808 = vst [vmem:[%s4802 + $0x28] sm:$0xff] %v4791
        %4809 = vst [vmem:[%s4802 + $0x30] sm:$0xff] %v4792
        %4810 = vst [vmem:[%s4802 + $0x38] sm:$0xff] %v4793
        %4811 = vst [vmem:[%s4802 + $0x40] sm:$0xff] %v4794
        %4812 = vst [vmem:[%s4802 + $0x48] sm:$0xff] %v4795
        %4813 = vst [vmem:[%s4802 + $0x50] sm:$0xff] %v4796
        %4814 = vst [vmem:[%s4802 + $0x58] sm:$0xff] %v4797
        %4815 = vst [vmem:[%s4802 + $0x60] sm:$0xff] %v4798
        %4816 = vst [vmem:[%s4802 + $0x68] sm:$0xff] %v4799
        %4817 = vst [vmem:[%s4802 + $0x70] sm:$0xff] %v4800
        %4818 = vst [vmem:[%s4802 + $0x78] sm:$0xff] %v4801
        %s4819 = sand.u32 %s139, 1
        %s4820 = scalar_lea.sflag [#allocation6], %s4819
        %s4821 = sand.u32 %s139, 1
        %s4822 = smul.addr %s4821, 256
        %s4823 = scalar_lea.vmem [#allocation9], %s4822
        // Predicated region
        $region49: #{tpu_custom_call.1} parent=39 // pred_check
          %p4824 = pneg %p149
        $region50: #{tpu_custom_call.1} parent=39 // pred_check_branch
          %4826 = sbr.rel (%p4824) target = $region52
        $region51: #{tpu_custom_call.1} parent=39 // pred_region
          %4828 = vsyncadd %s4820, 0
          %s4829 = smul.addr %s21, 32
          %s4830 = smul.addr %s4829, 8
          %s4831 = scalar_lea.hbm %s5, %s4830
          %s4832 = sshll.u32 %s4823, 4
          %s4833 = int_to_ptr.vmem [resolvable:$true] %s4832
          %s4834 = sshll.u32 %s4831, 4
          %s4835 = int_to_ptr.hbm [resolvable:$true] %s4834
          %4840 = dma.vmem_to_hbm [thread:$0]  %s4833, 4096, %s4835, %s4820, 128, 128, 8
        $region52: #{tpu_custom_call.1} parent=39 // pred_fallthru
          _
      $region40: #{tpu_custom_call.1} parent=5 // pred_fallthru
        _
      %p4841 = scmp.le.s32.totalorder 2, %s16
      // Predicated region
      $region53: #{tpu_custom_call.1} parent=5 // pred_check
        %p4842 = pneg %p4841
      $region54: #{tpu_custom_call.1} parent=5 // pred_check_branch
        %4844 = sbr.rel (%p4842) target = $region56
      $region55: #{tpu_custom_call.1} parent=5 // pred_region
        %s4845 = ssub.s32 %s16, 2
        // Predicated region
        $region57: #{tpu_custom_call.1} parent=55 // pred_check
          %p4846 = pneg %p155
        $region58: #{tpu_custom_call.1} parent=55 // pred_check_branch
          %4848 = sbr.rel (%p4846) target = $region60
        $region59: #{tpu_custom_call.1} parent=55 // pred_region
          %s4849 = sand.u32 %s140, 1
          %s4850 = scalar_lea.sflag [#allocation6], %s4849
          %s4851 = sand.u32 %s140, 1
          %s4852 = smul.addr %s4851, 256
          %s4853 = scalar_lea.vmem [#allocation9], %s4852
          %4855 = dma.done %s4850, 4096
        $region60: #{tpu_custom_call.1} parent=55 // pred_fallthru
          _
      $region56: #{tpu_custom_call.1} parent=5 // pred_fallthru
        _
    $region6: #{tpu_custom_call.1} parent=1 // loop_footer
      %s20 = sadd.s32 1, %s16
    $region7: #{tpu_custom_call.1} parent=1 // loop_footer_branch
      %15 = sbr.rel target = $region3
    $region8: #{tpu_custom_call.1} parent=1 // loop_exit
      _
    %4856 = vsyncpa [#allocation5], 1
    %s4857 = scalar_lea.sflag [#allocation5], 1
    %4858 = vsyncpa %s4857, 1
    %4859 = vsyncpa [#allocation8], 1
    %4860 = vsyncpa [#allocation6], 1
    %s4861 = scalar_lea.sflag [#allocation6], 1
    %4862 = vsyncpa %s4861, 1

</llo_original>
